<compile_context>
chip_gen: v7x
topology: tpu7x:2x2x1
jax: 0.10.0
libtpu: 0.0.40
codegen_flags: <defaults>
</compile_context>

<pallas_src>
import functools

import jax
import jax.numpy as jnp
from jax import lax
from jax.experimental import pallas as pl
from jax.experimental.pallas import tpu as pltpu


def _round_up(x, m):
    return (x + m - 1) // m * m


def fold_bn(bias, gamma, beta, mean, var, eps=1e-5):
    scale = gamma / jnp.sqrt(var + eps)
    shift = (bias - mean) * scale + beta
    return scale, shift


def _vmem_capacity_bytes():
    try:
        return int(pltpu.get_tpu_info().vmem_capacity_bytes)
    except Exception:
        return 64 * 2**20          # conservative (v7x-sized) fallback


def _vmem_estimate(th, W, Cin, C1p, C2p, isz):
    """Per-grid-step VMEM footprint (bytes), incl. compiler temporaries."""
    r1 = th + 2
    xcol = 2 * r1 * W * 9 * Cin * isz                   # im2col input block (x2 buffers)
    wts = 2 * (9 * Cin * C1p + 9 * C1p * C2p) * isz     # resident weights (x2 buffers)
    affine = 2 * 2 * (C1p + C2p) * 4                    # scale/shift
    outb = 2 * th * W * C2p * 4                         # output block (x2 buffers)
    fold = r1 * W * 3 * C1p * isz                       # folded y1 scratch
    temps = 3 * r1 * W * C1p * 4                        # acc1 -> affine -> relu chain temps
    acc2 = 2 * th * W * C2p * 4                         # conv2 accumulator + store temp
    matin = th * W * 3 * C1p * isz                      # one loaded fold slice
    return xcol + wts + affine + outb + fold + temps + acc2 + matin


def _pick_row_tile(H, W, N, Cin, C1p, C2p, isz, budget):
    """Pick the row-tile height TH.  Returns (TH, ragged)."""
    if N >= 2 or H < 16:
        cap = H                        # batch axis already feeds both TensorCores
    else:
        cap = max(8, H // 2)           # keep >= 2 row tiles so both TCs get work

    def fits(th):
        return _vmem_estimate(th, W, Cin, C1p, C2p, isz) <= budget

    best_div, best_any = 1, 1
    for th in range(1, cap + 1):
        if not fits(th):
            continue
        best_any = th
        if H % th == 0:
            best_div = th
    # Prefer an exact divisor of H (no in-kernel row masking).  Fall back to a
    # ragged tiling (H padded up, rows masked in-kernel) only when divisors
    # would force much smaller tiles -- avoids the TH=1 perf cliff for prime H.
    if best_any >= 2 * best_div and best_any >= 8:
        return best_any, True
    return best_div, False


def _double_conv_kernel(x_ref, w1_ref, s1_ref, t1_ref, w2_ref, s2_ref, t2_ref,
                        o_ref, fold_ref, *, TH, H, W, C1p, C2p, HT, ragged):
    """Fused (conv3x3 -> BN -> ReLU) x 2 for one (batch, row-tile) grid step.

    x_ref   : (1, 1, (TH+2)*W, 9*Cin)  host-built im2col patch for conv1 (incl. halo)
    w1_ref  : (9*Cin, C1p)             conv1 weights, taps folded onto K
    w2_ref  : (3, 3*C1p, C2p)          conv2 weights per row tap, col taps folded onto K
    s*/t*   : (1, C)                   folded BN scale / shift (f32)
    o_ref   : (1, 1, TH*W, C2p)        lane-dense output block
    fold_ref: (TH+2, W, 3*C1p)         y1 staged with its 3 column taps folded onto lanes
    """
    R1 = TH + 2
    i = pl.program_id(1)

    # ---- conv1 + BN + ReLU: one deep MXU contraction over the im2col patch ----
    acc1 = jnp.dot(x_ref[0, 0], w1_ref[...], preferred_element_type=jnp.float32)
    y1 = jnp.maximum(acc1 * s1_ref[...] + t1_ref[...], 0.0)        # (R1*W, C1p) f32

    if ragged:
        # padded-H tiling: zero every y1 row that falls outside the image
        jj = lax.broadcasted_iota(jnp.int32, (R1 * W, 1), 0) // W
        abs_row = i * TH - 1 + jj
        y1 = jnp.where((abs_row >= 0) & (abs_row < H), y1, 0.0)

    y1 = y1.astype(fold_ref.dtype).reshape(R1, W, C1p)

    # ---- stage y1 ONCE with its 3 column taps folded onto lanes ----
    # conv2's zero padding in W is built in via the two border-column stores;
    # no full-scratch zero fill, no per-kh concatenate/relayout later.
    zcol = jnp.zeros((R1, 1, C1p), fold_ref.dtype)
    fold_ref[:, :, C1p:2 * C1p] = y1                               # center tap (kw=1)
    if W > 1:
        fold_ref[:, 1:W, 0:C1p] = y1[:, 0:W - 1, :]                # left tap  (kw=0)
        fold_ref[:, 0:W - 1, 2 * C1p:3 * C1p] = y1[:, 1:W, :]      # right tap (kw=2)
    fold_ref[:, 0:1, 0:C1p] = zcol
    fold_ref[:, W - 1:W, 2 * C1p:3 * C1p] = zcol

    if not ragged:
        # conv2's zero padding in H: only the two edge tiles have out-of-image
        # halo rows, so zero them conditionally instead of masking every step.
        zrow = jnp.zeros((1, W, 3 * C1p), fold_ref.dtype)

        @pl.when(i == 0)
        def _():
            fold_ref[0:1, :, :] = zrow

        @pl.when(i == HT - 1)
        def _():
            fold_ref[R1 - 1:R1, :, :] = zrow

    # ---- conv2 + BN + ReLU: 3 matmuls (one per row tap), K = 3*C1p ----
    # Row slices of the folded scratch are leading-dim views: aligned, no relayout.
    acc2 = jnp.dot(fold_ref[0:TH, :, :].reshape(TH * W, 3 * C1p), w2_ref[0],
                   preferred_element_type=jnp.float32)
    for kh in (1, 2):
        acc2 = acc2 + jnp.dot(
            fold_ref[kh:kh + TH, :, :].reshape(TH * W, 3 * C1p), w2_ref[kh],
            preferred_element_type=jnp.float32)

    o_ref[0, 0, :, :] = jnp.maximum(
        acc2 * s2_ref[...] + t2_ref[...], 0.0).astype(o_ref.dtype)


def inconv_forward(x_nchw, params, *, compute_dtype=jnp.bfloat16, lane=128):
    """Pallas implementation of inconv.forward (NCHW in / NCHW out, like PyTorch)."""
    N, Cin, H, W = x_nchw.shape
    C1 = params["w1"].shape[-1]
    C2 = params["w2"].shape[-1]
    C1p = _round_up(C1, lane)
    C2p = _round_up(C2, lane)
    out_dtype = x_nchw.dtype
    isz = jnp.dtype(compute_dtype).itemsize

    # Generation-aware VMEM budgeting (v5e/v6e: 128 MiB physical, v7x: 64 MiB).
    phys = _vmem_capacity_bytes()
    budget = min(phys // 3, 48 * 2**20)
    TH, ragged = _pick_row_tile(H, W, N, Cin, C1p, C2p, isz, budget)
    HT = -(-H // TH)
    Hp = HT * TH
    R1 = TH + 2

    # NCHW -> NHWC, compute dtype (halves HBM traffic for bf16).
    x = jnp.transpose(x_nchw, (0, 2, 3, 1)).astype(compute_dtype)

    # Host-side im2col for conv1 only: pad H by 2 (+ragged pad) / W by 1, gather
    # the 9 taps for each row tile (incl. the 1-row halo each side needed by
    # conv2) and fold them onto the channel axis.
    xp = jnp.pad(x, ((0, 0), (2, 2 + Hp - H), (1, 1), (0, 0)))
    tiles = []
    for i in range(HT):
        r0 = i * TH
        taps = [xp[:, r0 + kh:r0 + kh + R1, kw:kw + W, :]
                for kh in range(3) for kw in range(3)]
        tiles.append(jnp.concatenate(taps, axis=-1).reshape(N, R1 * W, 9 * Cin))
    xcol = jnp.stack(tiles, axis=1)                          # (N, HT, R1*W, 9*Cin)

    # Fold BN (+conv bias) into per-channel scale/shift; pad channels to the
    # 128-lane boundary with ZERO weights/shift so padded lanes are exactly 0
    # after ReLU and never leak into conv2 or the sliced output.
    s1, t1 = fold_bn(params["b1"], params["g1"], params["beta1"],
                     params["m1"], params["v1"])
    s2, t2 = fold_bn(params["b2"], params["g2"], params["beta2"],
                     params["m2"], params["v2"])

    w1 = jnp.pad(params["w1"], ((0, 0), (0, 0), (0, 0), (0, C1p - C1)))
    w1 = w1.reshape(9 * Cin, C1p).astype(compute_dtype)
    w2 = jnp.pad(params["w2"], ((0, 0), (0, 0), (0, C1p - C1), (0, C2p - C2)))
    w2 = w2.reshape(3, 3 * C1p, C2p).astype(compute_dtype)

    s1p = jnp.pad(s1, (0, C1p - C1)).reshape(1, C1p).astype(jnp.float32)
    t1p = jnp.pad(t1, (0, C1p - C1)).reshape(1, C1p).astype(jnp.float32)
    s2p = jnp.pad(s2, (0, C2p - C2)).reshape(1, C2p).astype(jnp.float32)
    t2p = jnp.pad(t2, (0, C2p - C2)).reshape(1, C2p).astype(jnp.float32)

    kernel = functools.partial(_double_conv_kernel, TH=TH, H=H, W=W,
                               C1p=C1p, C2p=C2p, HT=HT, ragged=ragged)

    # Always set an explicit scoped-VMEM limit (v5e's 16 MiB default is a cliff),
    # but keep ~25% physical headroom for Mosaic internals (matters on v7x).
    est = _vmem_estimate(TH, W, Cin, C1p, C2p, isz)
    vmem_limit = int(min(phys * 3 // 4, max(int(2.5 * est) + (4 << 20), 32 << 20)))

    out = pl.pallas_call(
        kernel,
        out_shape=jax.ShapeDtypeStruct((N, HT, TH * W, C2p), out_dtype),
        grid_spec=pltpu.PrefetchScalarGridSpec(
            num_scalar_prefetch=0,
            grid=(N, HT),
            in_specs=[
                pl.BlockSpec((1, 1, R1 * W, 9 * Cin), lambda n, i: (n, i, 0, 0)),
                pl.BlockSpec((9 * Cin, C1p), lambda n, i: (0, 0)),
                pl.BlockSpec((1, C1p), lambda n, i: (0, 0)),
                pl.BlockSpec((1, C1p), lambda n, i: (0, 0)),
                pl.BlockSpec((3, 3 * C1p, C2p), lambda n, i: (0, 0, 0)),
                pl.BlockSpec((1, C2p), lambda n, i: (0, 0)),
                pl.BlockSpec((1, C2p), lambda n, i: (0, 0)),
            ],
            out_specs=pl.BlockSpec((1, 1, TH * W, C2p), lambda n, i: (n, i, 0, 0)),
            scratch_shapes=[pltpu.VMEM((R1, W, 3 * C1p), compute_dtype)],
        ),
        compiler_params=pltpu.CompilerParams(
            dimension_semantics=("parallel", "parallel"),
            vmem_limit_bytes=vmem_limit),
    )(xcol, w1, s1p, t1p, w2, s2p, t2p)

    # Output blocks are lane-dense (padded channels last); PyTorch parity needs
    # NCHW, so one channel-slice + transpose pass remains on the host.  Drop it
    # (return NHWC) if the consumer accepts channels-last.
    y = out.reshape(N, Hp, W, C2p)[:, :H, :, :C2]
    return jnp.transpose(y, (0, 3, 1, 2))                    # NHWC -> NCHW


def _reference_forward(x_nchw, params, compute_dtype=jnp.float32):
    """Plain-JAX reference (lax conv) for validation."""
    x = jnp.transpose(x_nchw, (0, 2, 3, 1))

    def step(x, w, bias, g, beta, m, v):
        y = lax.conv_general_dilated(
            x.astype(compute_dtype), w.astype(compute_dtype),
            window_strides=(1, 1), padding="SAME",
            dimension_numbers=("NHWC", "HWIO", "NHWC"),
            preferred_element_type=jnp.float32)
        y = y + bias
        s = g / jnp.sqrt(v + 1e-5)
        y = (y - m) * s + beta
        return jnp.maximum(y, 0.0)

    y = step(x, params["w1"], params["b1"], params["g1"], params["beta1"],
             params["m1"], params["v1"])
    y = step(y, params["w2"], params["b2"], params["g2"], params["beta2"],
             params["m2"], params["v2"])
    return jnp.transpose(y, (0, 3, 1, 2)).astype(x_nchw.dtype)


def make_params(key, in_ch, out_ch):
    ks = jax.random.split(key, 8)
    return {
        # conv weights stored HWIO (3,3,Cin,Cout)
        "w1": 0.1 * jax.random.normal(ks[0], (3, 3, in_ch, out_ch), jnp.float32),
        "b1": 0.1 * jax.random.normal(ks[1], (out_ch,), jnp.float32),
        "w2": 0.1 * jax.random.normal(ks[2], (3, 3, out_ch, out_ch), jnp.float32),
        "b2": 0.1 * jax.random.normal(ks[3], (out_ch,), jnp.float32),
        # BN params (inference / running-stats semantics)
        "g1": 1.0 + 0.05 * jax.random.normal(ks[4], (out_ch,), jnp.float32),
        "beta1": 0.05 * jax.random.normal(ks[5], (out_ch,), jnp.float32),
        "m1": 0.05 * jax.random.normal(ks[6], (out_ch,), jnp.float32),
        "v1": jnp.abs(1.0 + 0.05 * jax.random.normal(ks[7], (out_ch,), jnp.float32)),
        "g2": jnp.ones((out_ch,), jnp.float32),
        "beta2": jnp.zeros((out_ch,), jnp.float32),
        "m2": jnp.zeros((out_ch,), jnp.float32),
        "v2": jnp.ones((out_ch,), jnp.float32),
    }


if __name__ == "__main__":
    key = jax.random.PRNGKey(0)
    kx, kp = jax.random.split(key)

    N, in_ch, out_ch, H, W = 2, 4, 8, 16, 16
    x = jax.random.normal(kx, (N, in_ch, H, W), jnp.float32)   # NCHW like PyTorch
    params = make_params(kp, in_ch, out_ch)

    # 1) f32 compute path vs f32 reference (structural correctness).
    out_f32 = jax.block_until_ready(
        inconv_forward(x, params, compute_dtype=jnp.float32))
    ref_f32 = jax.block_until_ready(_reference_forward(x, params, jnp.float32))
    assert out_f32.shape == (N, out_ch, H, W)
    assert jnp.allclose(out_f32, ref_f32, atol=5e-3, rtol=5e-3), \
        "f32 kernel mismatch vs reference"

    # 2) bf16 compute path (production config) vs a bf16-cast reference.
    out_bf16 = jax.block_until_ready(
        inconv_forward(x, params, compute_dtype=jnp.bfloat16))
    ref_bf16 = jax.block_until_ready(_reference_forward(x, params, jnp.bfloat16))
    assert out_bf16.shape == (N, out_ch, H, W)
    assert jnp.allclose(out_bf16, ref_bf16, atol=2e-2, rtol=2e-2), \
        "bf16 kernel mismatch vs reference"

    print("KERNEL_OK")
</pallas_src>

<mosaic_0001>
module attributes {stable_mosaic.version = 11 : i64} {
  func.func @_double_conv_kernel(%arg0: i32, %arg1: i32, %arg2: memref<1x1x288x36xf32, #tpu.memory_space<vmem>>, %arg3: memref<36x128xf32, #tpu.memory_space<vmem>>, %arg4: memref<1x128xf32, #tpu.memory_space<vmem>>, %arg5: memref<1x128xf32, #tpu.memory_space<vmem>>, %arg6: memref<3x384x128xf32, #tpu.memory_space<vmem>>, %arg7: memref<1x128xf32, #tpu.memory_space<vmem>>, %arg8: memref<1x128xf32, #tpu.memory_space<vmem>>, %arg9: memref<1x1x256x128xf32, #tpu.memory_space<vmem>>, %arg10: memref<18x16x384xf32, #tpu.memory_space<vmem>>) attributes {dimension_semantics = [#tpu.dimension_semantics<parallel>, #tpu.dimension_semantics<parallel>], iteration_bounds = array<i64: 2, 1>, scalar_prefetch = 0 : i64, scratch_operands = 1 : i64, tpu.core_type = #tpu.core_type<tc>, window_params = [{transform_indices = @transform_0, window_bounds = array<i64: 1, 1, 288, 36>}, {pipeline_mode = #tpu.pipeline_mode<synchronous>, transform_indices = @transform_1, window_bounds = array<i64: 36, 128>}, {pipeline_mode = #tpu.pipeline_mode<synchronous>, transform_indices = @transform_2, window_bounds = array<i64: 1, 128>}, {pipeline_mode = #tpu.pipeline_mode<synchronous>, transform_indices = @transform_3, window_bounds = array<i64: 1, 128>}, {pipeline_mode = #tpu.pipeline_mode<synchronous>, transform_indices = @transform_4, window_bounds = array<i64: 3, 384, 128>}, {pipeline_mode = #tpu.pipeline_mode<synchronous>, transform_indices = @transform_5, window_bounds = array<i64: 1, 128>}, {pipeline_mode = #tpu.pipeline_mode<synchronous>, transform_indices = @transform_6, window_bounds = array<i64: 1, 128>}, {transform_indices = @transform_7, window_bounds = array<i64: 1, 1, 256, 128>}]} {
    %c0 = arith.constant 0 : index
    %c0_0 = arith.constant 0 : index
    %c0_1 = arith.constant 0 : index
    %c0_2 = arith.constant 0 : index
    %0 = vector.load %arg2[%c0, %c0_0, %c0_1, %c0_2] : memref<1x1x288x36xf32, #tpu.memory_space<vmem>>, vector<1x1x288x36xf32>
    %1 = vector.shape_cast %0 : vector<1x1x288x36xf32> to vector<288x36xf32>
    %c0_3 = arith.constant 0 : index
    %c0_4 = arith.constant 0 : index
    %2 = vector.load %arg3[%c0_3, %c0_4] : memref<36x128xf32, #tpu.memory_space<vmem>>, vector<36x128xf32>
    %cst = arith.constant dense<0.000000e+00> : vector<288x128xf32>
    %3 = tpu.matmul %1, %2, %cst {dimension_numbers = #tpu.dot_dimension_numbers<[1], [0], [0], [1], [0, 0, 1, 1], [], []>} : vector<288x36xf32>, vector<36x128xf32>, vector<288x128xf32> -> vector<288x128xf32>
    %c0_5 = arith.constant 0 : index
    %c0_6 = arith.constant 0 : index
    %4 = vector.load %arg4[%c0_5, %c0_6] : memref<1x128xf32, #tpu.memory_space<vmem>>, vector<1x128xf32>
    %5 = vector.broadcast %4 : vector<1x128xf32> to vector<288x128xf32>
    %6 = arith.mulf %3, %5 : vector<288x128xf32>
    %c0_7 = arith.constant 0 : index
    %c0_8 = arith.constant 0 : index
    %7 = vector.load %arg5[%c0_7, %c0_8] : memref<1x128xf32, #tpu.memory_space<vmem>>, vector<1x128xf32>
    %8 = vector.broadcast %7 : vector<1x128xf32> to vector<288x128xf32>
    %9 = arith.addf %6, %8 : vector<288x128xf32>
    %cst_9 = arith.constant 0.000000e+00 : f32
    %10 = vector.broadcast %cst_9 : f32 to vector<288x128xf32>
    %11 = arith.maximumf %9, %10 : vector<288x128xf32>
    %12 = vector.shape_cast %11 : vector<288x128xf32> to vector<18x16x128xf32>
    %cst_10 = arith.constant 0.000000e+00 : f32
    %13 = vector.broadcast %cst_10 : f32 to vector<18x1x128xf32>
    %c0_11 = arith.constant 0 : index
    %c0_12 = arith.constant 0 : index
    %c128 = arith.constant 128 : index
    %14 = vector.load %arg10[%c0_11, %c0_12, %c128] : memref<18x16x384xf32, #tpu.memory_space<vmem>>, vector<18x16x128xf32>
    tpu.vector_store %arg10[%c0_11, %c0_12, %c128], %12 {strides = array<i32>} : memref<18x16x384xf32, #tpu.memory_space<vmem>>, vector<18x16x128xf32>,
    %15 = vector.extract_strided_slice %12 {offsets = [0, 0, 0], sizes = [18, 15, 128], strides = [1, 1, 1]} : vector<18x16x128xf32> to vector<18x15x128xf32>
    %c0_13 = arith.constant 0 : index
    %c1 = arith.constant 1 : index
    %c0_14 = arith.constant 0 : index
    %16 = vector.load %arg10[%c0_13, %c1, %c0_14] : memref<18x16x384xf32, #tpu.memory_space<vmem>>, vector<18x15x128xf32>
    tpu.vector_store %arg10[%c0_13, %c1, %c0_14], %15 {strides = array<i32>} : memref<18x16x384xf32, #tpu.memory_space<vmem>>, vector<18x15x128xf32>,
    %17 = vector.extract_strided_slice %12 {offsets = [0, 1, 0], sizes = [18, 15, 128], strides = [1, 1, 1]} : vector<18x16x128xf32> to vector<18x15x128xf32>
    %c0_15 = arith.constant 0 : index
    %c0_16 = arith.constant 0 : index
    %c256 = arith.constant 256 : index
    %18 = vector.load %arg10[%c0_15, %c0_16, %c256] : memref<18x16x384xf32, #tpu.memory_space<vmem>>, vector<18x15x128xf32>
    tpu.vector_store %arg10[%c0_15, %c0_16, %c256], %17 {strides = array<i32>} : memref<18x16x384xf32, #tpu.memory_space<vmem>>, vector<18x15x128xf32>,
    %c0_17 = arith.constant 0 : index
    %c0_18 = arith.constant 0 : index
    %c0_19 = arith.constant 0 : index
    %19 = vector.load %arg10[%c0_17, %c0_18, %c0_19] : memref<18x16x384xf32, #tpu.memory_space<vmem>>, vector<18x1x128xf32>
    tpu.vector_store %arg10[%c0_17, %c0_18, %c0_19], %13 {strides = array<i32>} : memref<18x16x384xf32, #tpu.memory_space<vmem>>, vector<18x1x128xf32>,
    %c0_20 = arith.constant 0 : index
    %c15 = arith.constant 15 : index
    %c256_21 = arith.constant 256 : index
    %20 = vector.load %arg10[%c0_20, %c15, %c256_21] : memref<18x16x384xf32, #tpu.memory_space<vmem>>, vector<18x1x128xf32>
    tpu.vector_store %arg10[%c0_20, %c15, %c256_21], %13 {strides = array<i32>} : memref<18x16x384xf32, #tpu.memory_space<vmem>>, vector<18x1x128xf32>,
    %cst_22 = arith.constant 0.000000e+00 : f32
    %21 = vector.broadcast %cst_22 : f32 to vector<1x16x384xf32>
    %c0_i32 = arith.constant 0 : i32
    %22 = arith.cmpi eq, %arg1, %c0_i32 : i32
    %23 = arith.extui %22 : i1 to i32
    %c0_i32_23 = arith.constant 0 : i32
    %24 = arith.cmpi ne, %23, %c0_i32_23 : i32
    scf.if %24 {
      %c0_55 = arith.constant 0 : index
      %c0_56 = arith.constant 0 : index
      %c0_57 = arith.constant 0 : index
      %56 = vector.load %arg10[%c0_55, %c0_56, %c0_57] : memref<18x16x384xf32, #tpu.memory_space<vmem>>, vector<1x16x384xf32>
      tpu.vector_store %arg10[%c0_55, %c0_56, %c0_57], %21 {strides = array<i32>} : memref<18x16x384xf32, #tpu.memory_space<vmem>>, vector<1x16x384xf32>,
    } else {
    }
    %c0_i32_24 = arith.constant 0 : i32
    %25 = arith.cmpi eq, %arg1, %c0_i32_24 : i32
    %26 = arith.extui %25 : i1 to i32
    %c0_i32_25 = arith.constant 0 : i32
    %27 = arith.cmpi ne, %26, %c0_i32_25 : i32
    scf.if %27 {
      %c17 = arith.constant 17 : index
      %c0_55 = arith.constant 0 : index
      %c0_56 = arith.constant 0 : index
      %56 = vector.load %arg10[%c17, %c0_55, %c0_56] : memref<18x16x384xf32, #tpu.memory_space<vmem>>, vector<1x16x384xf32>
      tpu.vector_store %arg10[%c17, %c0_55, %c0_56], %21 {strides = array<i32>} : memref<18x16x384xf32, #tpu.memory_space<vmem>>, vector<1x16x384xf32>,
    } else {
    }
    %c0_26 = arith.constant 0 : index
    %c0_27 = arith.constant 0 : index
    %c0_28 = arith.constant 0 : index
    %28 = vector.load %arg10[%c0_26, %c0_27, %c0_28] : memref<18x16x384xf32, #tpu.memory_space<vmem>>, vector<16x16x384xf32>
    %29 = vector.shape_cast %28 : vector<16x16x384xf32> to vector<256x384xf32>
    %c0_29 = arith.constant 0 : index
    %c0_30 = arith.constant 0 : index
    %c0_31 = arith.constant 0 : index
    %30 = vector.load %arg6[%c0_29, %c0_30, %c0_31] : memref<3x384x128xf32, #tpu.memory_space<vmem>>, vector<1x384x128xf32>
    %31 = vector.shape_cast %30 : vector<1x384x128xf32> to vector<384x128xf32>
    %cst_32 = arith.constant dense<0.000000e+00> : vector<256x128xf32>
    %32 = tpu.matmul %29, %31, %cst_32 {dimension_numbers = #tpu.dot_dimension_numbers<[1], [0], [0], [1], [0, 0, 1, 1], [], []>} : vector<256x384xf32>, vector<384x128xf32>, vector<256x128xf32> -> vector<256x128xf32>
    %c1_33 = arith.constant 1 : index
    %c0_34 = arith.constant 0 : index
    %c0_35 = arith.constant 0 : index
    %33 = vector.load %arg10[%c1_33, %c0_34, %c0_35] : memref<18x16x384xf32, #tpu.memory_space<vmem>>, vector<16x16x384xf32>
    %34 = vector.shape_cast %33 : vector<16x16x384xf32> to vector<256x384xf32>
    %c1_36 = arith.constant 1 : index
    %c0_37 = arith.constant 0 : index
    %c0_38 = arith.constant 0 : index
    %35 = vector.load %arg6[%c1_36, %c0_37, %c0_38] : memref<3x384x128xf32, #tpu.memory_space<vmem>>, vector<1x384x128xf32>
    %36 = vector.shape_cast %35 : vector<1x384x128xf32> to vector<384x128xf32>
    %cst_39 = arith.constant dense<0.000000e+00> : vector<256x128xf32>
    %37 = tpu.matmul %34, %36, %cst_39 {dimension_numbers = #tpu.dot_dimension_numbers<[1], [0], [0], [1], [0, 0, 1, 1], [], []>} : vector<256x384xf32>, vector<384x128xf32>, vector<256x128xf32> -> vector<256x128xf32>
    %38 = arith.addf %32, %37 : vector<256x128xf32>
    %c2 = arith.constant 2 : index
    %c0_40 = arith.constant 0 : index
    %c0_41 = arith.constant 0 : index
    %39 = vector.load %arg10[%c2, %c0_40, %c0_41] : memref<18x16x384xf32, #tpu.memory_space<vmem>>, vector<16x16x384xf32>
    %40 = vector.shape_cast %39 : vector<16x16x384xf32> to vector<256x384xf32>
    %c2_42 = arith.constant 2 : index
    %c0_43 = arith.constant 0 : index
    %c0_44 = arith.constant 0 : index
    %41 = vector.load %arg6[%c2_42, %c0_43, %c0_44] : memref<3x384x128xf32, #tpu.memory_space<vmem>>, vector<1x384x128xf32>
    %42 = vector.shape_cast %41 : vector<1x384x128xf32> to vector<384x128xf32>
    %cst_45 = arith.constant dense<0.000000e+00> : vector<256x128xf32>
    %43 = tpu.matmul %40, %42, %cst_45 {dimension_numbers = #tpu.dot_dimension_numbers<[1], [0], [0], [1], [0, 0, 1, 1], [], []>} : vector<256x384xf32>, vector<384x128xf32>, vector<256x128xf32> -> vector<256x128xf32>
    %44 = arith.addf %38, %43 : vector<256x128xf32>
    %c0_46 = arith.constant 0 : index
    %c0_47 = arith.constant 0 : index
    %45 = vector.load %arg7[%c0_46, %c0_47] : memref<1x128xf32, #tpu.memory_space<vmem>>, vector<1x128xf32>
    %46 = vector.broadcast %45 : vector<1x128xf32> to vector<256x128xf32>
    %47 = arith.mulf %44, %46 : vector<256x128xf32>
    %c0_48 = arith.constant 0 : index
    %c0_49 = arith.constant 0 : index
    %48 = vector.load %arg8[%c0_48, %c0_49] : memref<1x128xf32, #tpu.memory_space<vmem>>, vector<1x128xf32>
    %49 = vector.broadcast %48 : vector<1x128xf32> to vector<256x128xf32>
    %50 = arith.addf %47, %49 : vector<256x128xf32>
    %cst_50 = arith.constant 0.000000e+00 : f32
    %51 = vector.broadcast %cst_50 : f32 to vector<256x128xf32>
    %52 = arith.maximumf %50, %51 : vector<256x128xf32>
    %c0_51 = arith.constant 0 : index
    %c0_52 = arith.constant 0 : index
    %c0_53 = arith.constant 0 : index
    %c0_54 = arith.constant 0 : index
    %53 = vector.load %arg9[%c0_51, %c0_52, %c0_53, %c0_54] : memref<1x1x256x128xf32, #tpu.memory_space<vmem>>, vector<1x1x256x128xf32>
    %54 = vector.shape_cast %53 : vector<1x1x256x128xf32> to vector<256x128xf32>
    %55 = vector.shape_cast %52 : vector<256x128xf32> to vector<1x1x256x128xf32>
    tpu.vector_store %arg9[%c0_51, %c0_52, %c0_53, %c0_54], %55 {strides = array<i32>} : memref<1x1x256x128xf32, #tpu.memory_space<vmem>>, vector<1x1x256x128xf32>,
    return
  }
  func.func @transform_0(%arg0: i32, %arg1: i32) -> (i32, i32, i32, i32) {
    %c0_i32 = arith.constant 0 : i32
    %c0_i32_0 = arith.constant 0 : i32
    %c0_i32_1 = arith.constant 0 : i32
    return %arg0, %arg1, %c0_i32, %c0_i32_0 : i32, i32, i32, i32
  }
  func.func @transform_1(%arg0: i32, %arg1: i32) -> (i32, i32) {
    %c0_i32 = arith.constant 0 : i32
    %c0_i32_0 = arith.constant 0 : i32
    %c0_i32_1 = arith.constant 0 : i32
    return %c0_i32, %c0_i32_0 : i32, i32
  }
  func.func @transform_2(%arg0: i32, %arg1: i32) -> (i32, i32) {
    %c0_i32 = arith.constant 0 : i32
    %c0_i32_0 = arith.constant 0 : i32
    %c0_i32_1 = arith.constant 0 : i32
    return %c0_i32, %c0_i32_0 : i32, i32
  }
  func.func @transform_3(%arg0: i32, %arg1: i32) -> (i32, i32) {
    %c0_i32 = arith.constant 0 : i32
    %c0_i32_0 = arith.constant 0 : i32
    %c0_i32_1 = arith.constant 0 : i32
    return %c0_i32, %c0_i32_0 : i32, i32
  }
  func.func @transform_4(%arg0: i32, %arg1: i32) -> (i32, i32, i32) {
    %c0_i32 = arith.constant 0 : i32
    %c0_i32_0 = arith.constant 0 : i32
    %c0_i32_1 = arith.constant 0 : i32
    %c0_i32_2 = arith.constant 0 : i32
    return %c0_i32, %c0_i32_0, %c0_i32_1 : i32, i32, i32
  }
  func.func @transform_5(%arg0: i32, %arg1: i32) -> (i32, i32) {
    %c0_i32 = arith.constant 0 : i32
    %c0_i32_0 = arith.constant 0 : i32
    %c0_i32_1 = arith.constant 0 : i32
    return %c0_i32, %c0_i32_0 : i32, i32
  }
  func.func @transform_6(%arg0: i32, %arg1: i32) -> (i32, i32) {
    %c0_i32 = arith.constant 0 : i32
    %c0_i32_0 = arith.constant 0 : i32
    %c0_i32_1 = arith.constant 0 : i32
    return %c0_i32, %c0_i32_0 : i32, i32
  }
  func.func @transform_7(%arg0: i32, %arg1: i32) -> (i32, i32, i32, i32) {
    %c0_i32 = arith.constant 0 : i32
    %c0_i32_0 = arith.constant 0 : i32
    %c0_i32_1 = arith.constant 0 : i32
    return %arg0, %arg1, %c0_i32, %c0_i32_0 : i32, i32, i32, i32
  }
}

</mosaic_0001>

<llo_original>
// kernel: tpu_custom_call.1
$region0: #{tpu_custom_call.1}
  #allocation0 [shape = 'u32[]', space=smem, size = 0x4, offset = 0x4, fixed_abs, tag = 'smem constant byte address 0x4 - core index']
  #allocation1 [shape = 'u32[144,128]{1,0:T(1,128)}', space=vmem, size = 0x12000, scoped, tag = 'internal scratch']
  #allocation2 [shape = 'f32[18,16,384]{2,1,0:T(8,128)}', space=vmem, size = 0x6c000, scoped, tag = 'scratch operand']
  %s0 = inlined_call_operand.vmem [shape: f32[2,1,288,36], index: 0, kind: input, shape index: {}]
  %s1 = inlined_call_operand.vmem [shape: f32[36,128], index: 1, kind: input, shape index: {}]
  %s2 = inlined_call_operand.vmem [shape: f32[1,128], index: 2, kind: input, shape index: {}]
  %s3 = inlined_call_operand.vmem [shape: f32[1,128], index: 3, kind: input, shape index: {}]
  %s4 = inlined_call_operand.hbm [shape: f32[3,384,128], index: 4, kind: input, shape index: {}]
  %s5 = inlined_call_operand.vmem [shape: f32[1,128], index: 5, kind: input, shape index: {}]
  %s6 = inlined_call_operand.vmem [shape: f32[1,128], index: 6, kind: input, shape index: {}]
  %s7 = inlined_call_operand.hbm [shape: f32[2,1,256,128], index: 7, kind: output, shape index: {}]
  %s8 = sld [smem:[#allocation0]]
  $region69: #{tpu_custom_call.1} parent=0
    _
  %s10 = ssub.s32 1, %s8
  %s11 = scalar_select 0, %s10, %s8
  $region1: #{tpu_custom_call.1} parent=0
    #allocation3 [shape = 'u8[589824]{0}', space=vmem, size = 0x90000, scoped, tag = 'input window, operand 4, single buffered']
    #allocation4 [shape = 's32[2]{0}', space=sflag, size = 0x8, scoped, tag = 'scoped memory for tpu_custom_call.1']
    #allocation5 [shape = 's32[2]{0}', space=sflag, size = 0x8, scoped, tag = 'scoped memory for tpu_custom_call.1']
    #allocation6 [shape = 'u8[262144]{0}', space=vmem, size = 0x40000, scoped, tag = 'output window, operand 0']
    %12 = vsyncpa [#allocation4], 0
    %13 = vsyncpa [#allocation5], 0
    %s14 = scalar_lea.sflag [#allocation5], 1
    %15 = vsyncpa %s14, 0
    loop: start=0, step=1, limit=4
    $region2: #{tpu_custom_call.1} parent=1 // loop_pre_header
      _
    $region3: #{tpu_custom_call.1} parent=1 // loop_header
      %s17 = sphi 0, %s21
      %p18 = scmp.ge.s32.totalorder %s17, 4
      %s24 = sphi 0, %s36
      %s25 = sphi 0, %s32
      %s26 = sphi 0, %s24
      %s27 = sphi 0, %s25
      %s28 = sphi 0, %s26
      %s29 = sphi 0, %s27
      %s41 = sphi 0, %s43
      %s44 = sphi 0, %s41
      %s45 = sphi 0, %s44
      %s61 = sphi 0, %s45
      %s65 = sphi 0, %s65
      %s67 = sphi 0, %s65
      %s68 = sphi 0, %s67
      %s82 = sphi 0, %s68
      %s86 = sphi 0, %s86
      %s88 = sphi 0, %s86
      %s89 = sphi 0, %s88
      %s103 = sphi 0, %s89
      %s107 = sphi 0, %s107
      %s109 = sphi 0, %s107
      %s110 = sphi 0, %s109
      %s124 = sphi 0, %s110
      %s128 = sphi 0, %s128
      %s130 = sphi 0, %s128
      %s131 = sphi 0, %s130
      %s145 = sphi 0, %s131
      %s149 = sphi 0, %s149
      %s151 = sphi 0, %s149
      %s152 = sphi 0, %s151
      %s166 = sphi 0, %s152
      %s170 = sphi 0, %s170
      %s172 = sphi 0, %s170
      %s173 = sphi 0, %s172
      %s187 = sphi 0, %s173
      %s195 = sphi 0, %s197
      %s198 = sphi 0, %s195
      %s199 = sphi 0, %s198
      %s215 = sphi 0, %s199
    $region4: #{tpu_custom_call.1} parent=1 // loop_header_branch
      %20 = sbr.rel (%p18) target = $region8
    $region5: #{tpu_custom_call.1} parent=1 // loop_body
      %s22 = ssub.s32 %s17, 1
      %s23 = ssub.s32 %s17, 2
      %s30 = sadd.s32 1, %s25
      %p31 = scmp.ge.s32.totalorder %s30, 1
      %s32 = scalar_select %p31, 0, %s30
      %s33 = sadd.s32 1, %s24
      %s34 = scalar_select %p31, %s33, %s24
      %p35 = scmp.ge.s32.totalorder %s34, 2
      %s36 = scalar_select %p35, 0, %s34
      %s37 = ssub.s32 %s24, %s36
      %s38 = ssub.s32 %s25, %s32
      %s39 = sor.u32 %s37, %s38
      %p40 = scmp.eq.s32.totalorder %s39, 0
      %s42 = sadd.s32 %s41, 1
      %s43 = scalar_select %p40, %s41, %s42
      %p46 = pneg %p40
      %p47 = scmp.eq.s32.totalorder %s17, 1
      %p48 = por %p46, %p47
      %p49 = scmp.ne.s32.totalorder %s41, %s44
      %p50 = scmp.eq.s32.totalorder %s17, 0
      %p51 = por %p49, %p50
      %p52 = scmp.ne.s32.totalorder %s41, %s44
      %p53 = scmp.eq.s32.totalorder %s22, 1
      %p54 = por %p52, %p53
      %p55 = scmp.ne.s32.totalorder %s44, %s45
      %p56 = scmp.eq.s32.totalorder %s22, 0
      %p57 = por %p55, %p56
      %p58 = scmp.ne.s32.totalorder %s44, %s45
      %p59 = scmp.eq.s32.totalorder %s23, 1
      %p60 = por %p58, %p59
      %p62 = scmp.ne.s32.totalorder %s45, %s61
      %p63 = scmp.eq.s32.totalorder %s23, 0
      %p64 = por %p62, %p63
      %s66 = sadd.s32 %s65, 1
      %p69 = scmp.eq.s32.totalorder %s17, 1
      %p70 = scmp.ne.s32.totalorder %s65, %s67
      %p71 = scmp.eq.s32.totalorder %s17, 0
      %p72 = por %p70, %p71
      %p73 = scmp.ne.s32.totalorder %s65, %s67
      %p74 = scmp.eq.s32.totalorder %s22, 1
      %p75 = por %p73, %p74
      %p76 = scmp.ne.s32.totalorder %s67, %s68
      %p77 = scmp.eq.s32.totalorder %s22, 0
      %p78 = por %p76, %p77
      %p79 = scmp.ne.s32.totalorder %s67, %s68
      %p80 = scmp.eq.s32.totalorder %s23, 1
      %p81 = por %p79, %p80
      %p83 = scmp.ne.s32.totalorder %s68, %s82
      %p84 = scmp.eq.s32.totalorder %s23, 0
      %p85 = por %p83, %p84
      %s87 = sadd.s32 %s86, 1
      %p90 = scmp.eq.s32.totalorder %s17, 1
      %p91 = scmp.ne.s32.totalorder %s86, %s88
      %p92 = scmp.eq.s32.totalorder %s17, 0
      %p93 = por %p91, %p92
      %p94 = scmp.ne.s32.totalorder %s86, %s88
      %p95 = scmp.eq.s32.totalorder %s22, 1
      %p96 = por %p94, %p95
      %p97 = scmp.ne.s32.totalorder %s88, %s89
      %p98 = scmp.eq.s32.totalorder %s22, 0
      %p99 = por %p97, %p98
      %p100 = scmp.ne.s32.totalorder %s88, %s89
      %p101 = scmp.eq.s32.totalorder %s23, 1
      %p102 = por %p100, %p101
      %p104 = scmp.ne.s32.totalorder %s89, %s103
      %p105 = scmp.eq.s32.totalorder %s23, 0
      %p106 = por %p104, %p105
      %s108 = sadd.s32 %s107, 1
      %p111 = scmp.eq.s32.totalorder %s17, 1
      %p112 = scmp.ne.s32.totalorder %s107, %s109
      %p113 = scmp.eq.s32.totalorder %s17, 0
      %p114 = por %p112, %p113
      %p115 = scmp.ne.s32.totalorder %s107, %s109
      %p116 = scmp.eq.s32.totalorder %s22, 1
      %p117 = por %p115, %p116
      %p118 = scmp.ne.s32.totalorder %s109, %s110
      %p119 = scmp.eq.s32.totalorder %s22, 0
      %p120 = por %p118, %p119
      %p121 = scmp.ne.s32.totalorder %s109, %s110
      %p122 = scmp.eq.s32.totalorder %s23, 1
      %p123 = por %p121, %p122
      %p125 = scmp.ne.s32.totalorder %s110, %s124
      %p126 = scmp.eq.s32.totalorder %s23, 0
      %p127 = por %p125, %p126
      %s129 = sadd.s32 %s128, 1
      %p132 = scmp.eq.s32.totalorder %s17, 1
      %p133 = scmp.ne.s32.totalorder %s128, %s130
      %p134 = scmp.eq.s32.totalorder %s17, 0
      %p135 = por %p133, %p134
      %p136 = scmp.ne.s32.totalorder %s128, %s130
      %p137 = scmp.eq.s32.totalorder %s22, 1
      %p138 = por %p136, %p137
      %p139 = scmp.ne.s32.totalorder %s130, %s131
      %p140 = scmp.eq.s32.totalorder %s22, 0
      %p141 = por %p139, %p140
      %p142 = scmp.ne.s32.totalorder %s130, %s131
      %p143 = scmp.eq.s32.totalorder %s23, 1
      %p144 = por %p142, %p143
      %p146 = scmp.ne.s32.totalorder %s131, %s145
      %p147 = scmp.eq.s32.totalorder %s23, 0
      %p148 = por %p146, %p147
      %s150 = sadd.s32 %s149, 1
      %p153 = scmp.eq.s32.totalorder %s17, 1
      %p154 = scmp.ne.s32.totalorder %s149, %s151
      %p155 = scmp.eq.s32.totalorder %s17, 0
      %p156 = por %p154, %p155
      %p157 = scmp.ne.s32.totalorder %s149, %s151
      %p158 = scmp.eq.s32.totalorder %s22, 1
      %p159 = por %p157, %p158
      %p160 = scmp.ne.s32.totalorder %s151, %s152
      %p161 = scmp.eq.s32.totalorder %s22, 0
      %p162 = por %p160, %p161
      %p163 = scmp.ne.s32.totalorder %s151, %s152
      %p164 = scmp.eq.s32.totalorder %s23, 1
      %p165 = por %p163, %p164
      %p167 = scmp.ne.s32.totalorder %s152, %s166
      %p168 = scmp.eq.s32.totalorder %s23, 0
      %p169 = por %p167, %p168
      %s171 = sadd.s32 %s170, 1
      %p174 = scmp.eq.s32.totalorder %s17, 1
      %p175 = scmp.ne.s32.totalorder %s170, %s172
      %p176 = scmp.eq.s32.totalorder %s17, 0
      %p177 = por %p175, %p176
      %p178 = scmp.ne.s32.totalorder %s170, %s172
      %p179 = scmp.eq.s32.totalorder %s22, 1
      %p180 = por %p178, %p179
      %p181 = scmp.ne.s32.totalorder %s172, %s173
      %p182 = scmp.eq.s32.totalorder %s22, 0
      %p183 = por %p181, %p182
      %p184 = scmp.ne.s32.totalorder %s172, %s173
      %p185 = scmp.eq.s32.totalorder %s23, 1
      %p186 = por %p184, %p185
      %p188 = scmp.ne.s32.totalorder %s173, %s187
      %p189 = scmp.eq.s32.totalorder %s23, 0
      %p190 = por %p188, %p189
      %s191 = ssub.s32 %s24, %s36
      %s192 = ssub.s32 %s25, %s32
      %s193 = sor.u32 %s191, %s192
      %p194 = scmp.eq.s32.totalorder %s193, 0
      %s196 = sadd.s32 %s195, 1
      %s197 = scalar_select %p194, %s195, %s196
      %p200 = pneg %p194
      %p201 = scmp.eq.s32.totalorder %s17, 1
      %p202 = por %p200, %p201
      %p203 = scmp.ne.s32.totalorder %s195, %s198
      %p204 = scmp.eq.s32.totalorder %s17, 0
      %p205 = por %p203, %p204
      %p206 = scmp.ne.s32.totalorder %s195, %s198
      %p207 = scmp.eq.s32.totalorder %s22, 1
      %p208 = por %p206, %p207
      %p209 = scmp.ne.s32.totalorder %s198, %s199
      %p210 = scmp.eq.s32.totalorder %s22, 0
      %p211 = por %p209, %p210
      %p212 = scmp.ne.s32.totalorder %s198, %s199
      %p213 = scmp.eq.s32.totalorder %s23, 1
      %p214 = por %p212, %p213
      %p216 = scmp.ne.s32.totalorder %s199, %s215
      %p217 = scmp.eq.s32.totalorder %s23, 0
      %p218 = por %p216, %p217
      %p219 = scmp.le.s32.totalorder 1, %s17
      %p220 = scmp.lt.s32.totalorder %s17, 3
      %p221 = pnand %p219, %p220
      %p222 = pneg %p221
      // Predicated region
      $region9: #{tpu_custom_call.1} parent=5 // pred_check
        _
      $region10: #{tpu_custom_call.1} parent=5 // pred_check_branch
        %224 = sbr.rel (%p221) target = $region12
      $region11: #{tpu_custom_call.1} parent=5 // pred_region
        %s225 = ssub.s32 %s17, 1
        // Predicated region
        $region13: #{tpu_custom_call.1} parent=11 // pred_check
          %p226 = pneg %p78
        $region14: #{tpu_custom_call.1} parent=11 // pred_check_branch
          %228 = sbr.rel (%p226) target = $region16
        $region15: #{tpu_custom_call.1} parent=11 // pred_region
          _
        $region16: #{tpu_custom_call.1} parent=11 // pred_fallthru
          _
        // Predicated region
        $region17: #{tpu_custom_call.1} parent=11 // pred_check
          %p229 = pneg %p99
        $region18: #{tpu_custom_call.1} parent=11 // pred_check_branch
          %231 = sbr.rel (%p229) target = $region20
        $region19: #{tpu_custom_call.1} parent=11 // pred_region
          _
        $region20: #{tpu_custom_call.1} parent=11 // pred_fallthru
          _
        // Predicated region
        $region21: #{tpu_custom_call.1} parent=11 // pred_check
          %p232 = pneg %p120
        $region22: #{tpu_custom_call.1} parent=11 // pred_check_branch
          %234 = sbr.rel (%p232) target = $region24
        $region23: #{tpu_custom_call.1} parent=11 // pred_region
          _
        $region24: #{tpu_custom_call.1} parent=11 // pred_fallthru
          _
        // Predicated region
        $region25: #{tpu_custom_call.1} parent=11 // pred_check
          %p235 = pneg %p141
        $region26: #{tpu_custom_call.1} parent=11 // pred_check_branch
          %237 = sbr.rel (%p235) target = $region28
        $region27: #{tpu_custom_call.1} parent=11 // pred_region
          %s239 = ssub.s32 18432, 18432
          %240 = vsyncadd [#allocation4], %s239
          %s241 = sshll.u32 [#allocation3], 4
          %s242 = int_to_ptr.vmem [resolvable:$true] %s241
          %247 = dma.hbm_to_vmem [thread:$0]  %s4, 18432, %s242, [#allocation4], 128, 128, 8
        $region28: #{tpu_custom_call.1} parent=11 // pred_fallthru
          _
        // Predicated region
        $region29: #{tpu_custom_call.1} parent=11 // pred_check
          %p248 = pneg %p162
        $region30: #{tpu_custom_call.1} parent=11 // pred_check_branch
          %250 = sbr.rel (%p248) target = $region32
        $region31: #{tpu_custom_call.1} parent=11 // pred_region
          _
        $region32: #{tpu_custom_call.1} parent=11 // pred_fallthru
          _
        // Predicated region
        $region33: #{tpu_custom_call.1} parent=11 // pred_check
          %p251 = pneg %p183
        $region34: #{tpu_custom_call.1} parent=11 // pred_check_branch
          %253 = sbr.rel (%p251) target = $region36
        $region35: #{tpu_custom_call.1} parent=11 // pred_region
          _
        $region36: #{tpu_custom_call.1} parent=11 // pred_fallthru
          _
      $region12: #{tpu_custom_call.1} parent=5 // pred_fallthru
        _
      %p254 = scmp.lt.s32.totalorder %s17, 2
      // Predicated region
      $region37: #{tpu_custom_call.1} parent=5 // pred_check
        %p255 = pneg %p254
      $region38: #{tpu_custom_call.1} parent=5 // pred_check_branch
        %257 = sbr.rel (%p255) target = $region40
      $region39: #{tpu_custom_call.1} parent=5 // pred_region
        // Predicated region
        $region41: #{tpu_custom_call.1} parent=39 // pred_check
          %p258 = pneg %p51
        $region42: #{tpu_custom_call.1} parent=39 // pred_check_branch
          %260 = sbr.rel (%p258) target = $region44
        $region43: #{tpu_custom_call.1} parent=39 // pred_region
          %p261 = scmp.lt.s32.totalorder %s24, 1
          %s262 = scalar_select %p261, %s24, 1
          %p263 = scmp.lt.s32.totalorder %s25, 0
          %s264 = scalar_select %p263, %s25, 0
          %s265 = smul.addr %s264, 36
          %s266 = smul.addr %s262, 36
          %s267 = sadd.s32 %s265, %s266
          %s268 = smul.addr %s267, 8
          %s269 = scalar_lea.vmem %s0, %s268
        $region44: #{tpu_custom_call.1} parent=39 // pred_fallthru
          _
      $region40: #{tpu_custom_call.1} parent=5 // pred_fallthru
        _
      %p270 = scmp.le.s32.totalorder 1, %s17
      %p271 = scmp.lt.s32.totalorder %s17, 3
      %p272 = pnand %p270, %p271
      %p273 = pneg %p272
      // Predicated region
      $region45: #{tpu_custom_call.1} parent=5 // pred_check
        _
      $region46: #{tpu_custom_call.1} parent=5 // pred_check_branch
        %275 = sbr.rel (%p272) target = $region48
      $region47: #{tpu_custom_call.1} parent=5 // pred_region
        %s276 = ssub.s32 %s17, 1
        // Predicated region
        $region49: #{tpu_custom_call.1} parent=47 // pred_check
          %p277 = pneg %p141
        $region50: #{tpu_custom_call.1} parent=47 // pred_check_branch
          %279 = sbr.rel (%p277) target = $region52
        $region51: #{tpu_custom_call.1} parent=47 // pred_region
          %280 = dma.done [#allocation4], 18432
        $region52: #{tpu_custom_call.1} parent=47 // pred_fallthru
          _
        %p281 = scmp.lt.s32.totalorder %s26, 1
        %s282 = scalar_select %p281, %s26, 1
        %p283 = scmp.lt.s32.totalorder %s27, 0
        %s284 = scalar_select %p283, %s27, 0
        %s285 = smul.addr %s284, 36
        %s286 = smul.addr %s282, 36
        %s287 = sadd.s32 %s285, %s286
        %s288 = smul.addr %s287, 8
        %s289 = scalar_lea.vmem %s0, %s288
        %p290 = pneg %p57
        %p291 = pneg %p54
        %p292 = pneg %p78
        %p293 = pneg %p75
        %p294 = pneg %p99
        %p295 = pneg %p96
        %p296 = pneg %p120
        %p297 = pneg %p117
        %p298 = pneg %p141
        %p299 = pneg %p138
        %p300 = pneg %p162
        %p301 = pneg %p159
        %p302 = pneg %p183
        %p303 = pneg %p180
        %p304 = pneg %p211
        %p305 = pneg %p208
        %s306 = sand.u32 %s198, 1
        %s307 = scalar_lea.sflag [#allocation5], %s306
        %s308 = sand.u32 %s198, 1
        %s309 = smul.addr %s308, 256
        %s310 = scalar_lea.vmem [#allocation6], %s309
        %p311 = scmp.lt.s32.totalorder %s26, 1
        %s312 = scalar_select %p311, %s26, 1
        %p313 = scmp.lt.s32.totalorder %s27, 0
        %s314 = scalar_select %p313, %s27, 0
        %s315 = smul.addr %s314, 36
        %s316 = smul.addr %s312, 36
        %s317 = sadd.s32 %s315, %s316
        %s318 = smul.addr %s317, 8
        %s319 = scalar_lea.vmem %s0, %s318
        %v320 = vld [vmem:[%s319] sm:$0xff]
        %v321 = vld [vmem:[%s319 + $0x8] sm:$0xff]
        %v322 = vld [vmem:[%s319 + $0x10] sm:$0xff]
        %v323 = vld [vmem:[%s319 + $0x18] sm:$0xff]
        %v324 = vld [vmem:[%s319 + $0x20] sm:$0xff]
        %v325 = vld [vmem:[%s319 + $0x28] sm:$0xff]
        %v326 = vld [vmem:[%s319 + $0x30] sm:$0xff]
        %v327 = vld [vmem:[%s319 + $0x38] sm:$0xff]
        %v328 = vld [vmem:[%s319 + $0x40] sm:$0xff]
        %v329 = vld [vmem:[%s319 + $0x48] sm:$0xff]
        %v330 = vld [vmem:[%s319 + $0x50] sm:$0xff]
        %v331 = vld [vmem:[%s319 + $0x58] sm:$0xff]
        %v332 = vld [vmem:[%s319 + $0x60] sm:$0xff]
        %v333 = vld [vmem:[%s319 + $0x68] sm:$0xff]
        %v334 = vld [vmem:[%s319 + $0x70] sm:$0xff]
        %v335 = vld [vmem:[%s319 + $0x78] sm:$0xff]
        %v336 = vld [vmem:[%s319 + $0x80] sm:$0xff]
        %v337 = vld [vmem:[%s319 + $0x88] sm:$0xff]
        %v338 = vld [vmem:[%s319 + $0x90] sm:$0xff]
        %v339 = vld [vmem:[%s319 + $0x98] sm:$0xff]
        %v340 = vld [vmem:[%s319 + $0xa0] sm:$0xff]
        %v341 = vld [vmem:[%s319 + $0xa8] sm:$0xff]
        %v342 = vld [vmem:[%s319 + $0xb0] sm:$0xff]
        %v343 = vld [vmem:[%s319 + $0xb8] sm:$0xff]
        %v344 = vld [vmem:[%s319 + $0xc0] sm:$0xff]
        %v345 = vld [vmem:[%s319 + $0xc8] sm:$0xff]
        %v346 = vld [vmem:[%s319 + $0xd0] sm:$0xff]
        %v347 = vld [vmem:[%s319 + $0xd8] sm:$0xff]
        %v348 = vld [vmem:[%s319 + $0xe0] sm:$0xff]
        %v349 = vld [vmem:[%s319 + $0xe8] sm:$0xff]
        %v350 = vld [vmem:[%s319 + $0xf0] sm:$0xff]
        %v351 = vld [vmem:[%s319 + $0xf8] sm:$0xff]
        %v352 = vld [vmem:[%s319 + $0x100] sm:$0xff]
        %v353 = vld [vmem:[%s319 + $0x108] sm:$0xff]
        %v354 = vld [vmem:[%s319 + $0x110] sm:$0xff]
        %v355 = vld [vmem:[%s319 + $0x118] sm:$0xff]
        %v356 = vld [vmem:[%s1] sm:$0xff]
        %v357 = vld [vmem:[%s1 + $0x8] sm:$0xff]
        %v358 = vld [vmem:[%s1 + $0x10] sm:$0xff]
        %v359 = vld [vmem:[%s1 + $0x18] sm:$0xff]
        %v360 = vld [vmem:[%s1 + $0x20] sm:$0xf]
        %vm361 = vcmask 293888
        %v363 = vsel %vm361, %v320, 0
        %v366 = vsel %vm361, %v321, 0
        %v369 = vsel %vm361, %v322, 0
        %v372 = vsel %vm361, %v323, 0
        %v375 = vsel %vm361, %v324, 0
        %v378 = vsel %vm361, %v325, 0
        %v381 = vsel %vm361, %v326, 0
        %v384 = vsel %vm361, %v327, 0
        %v387 = vsel %vm361, %v328, 0
        %v390 = vsel %vm361, %v329, 0
        %v393 = vsel %vm361, %v330, 0
        %v396 = vsel %vm361, %v331, 0
        %v399 = vsel %vm361, %v332, 0
        %v402 = vsel %vm361, %v333, 0
        %v405 = vsel %vm361, %v334, 0
        %v408 = vsel %vm361, %v335, 0
        %v411 = vsel %vm361, %v336, 0
        %v414 = vsel %vm361, %v337, 0
        %v417 = vsel %vm361, %v338, 0
        %v420 = vsel %vm361, %v339, 0
        %v423 = vsel %vm361, %v340, 0
        %v426 = vsel %vm361, %v341, 0
        %v429 = vsel %vm361, %v342, 0
        %v432 = vsel %vm361, %v343, 0
        %v435 = vsel %vm361, %v344, 0
        %v438 = vsel %vm361, %v345, 0
        %v441 = vsel %vm361, %v346, 0
        %v444 = vsel %vm361, %v347, 0
        %v447 = vsel %vm361, %v348, 0
        %v450 = vsel %vm361, %v349, 0
        %v453 = vsel %vm361, %v350, 0
        %v456 = vsel %vm361, %v351, 0
        %v459 = vsel %vm361, %v352, 0
        %v462 = vsel %vm361, %v353, 0
        %v465 = vsel %vm361, %v354, 0
        %v468 = vsel %vm361, %v355, 0
        %vm470 = vcmask 1043456
        %v472 = vsel %vm470, %v360, 0
        %474 = vmatprep.subr.mxu0 0.0
        %475 = vmatpush1.msra.mxu0 %v356
        %476 = vmatprep.subr.mxu0 0.0
        %477 = vmatpush1.msra.mxu0 %v357
        %478 = vmatprep.subr.mxu0 0.0
        %479 = vmatpush1.msra.mxu0 %v358
        %480 = vmatprep.subr.mxu0 0.0
        %481 = vmatpush1.msra.mxu0 %v359
        %482 = vmatprep.subr.mxu0 0.0
        %483 = vmatpush1.msra.mxu0 %v472
        %484 = vmatprep.subr.mxu0 0.0
        %485 = vmatpush1.msra.mxu0 0.0
        %486 = vmatprep.subr.mxu0 0.0
        %487 = vmatpush1.msra.mxu0 0.0
        %488 = vmatprep.subr.mxu0 0.0
        %489 = vmatpush1.msra.mxu0 0.0
        %490 = vmatprep.subr.mxu0 0.0
        %491 = vmatpush1.msra.mxu0 0.0
        %492 = vmatprep.subr.mxu0 0.0
        %493 = vmatpush1.msra.mxu0 0.0
        %494 = vmatprep.subr.mxu0 0.0
        %495 = vmatpush1.msra.mxu0 0.0
        %496 = vmatprep.subr.mxu0 0.0
        %497 = vmatpush1.msra.mxu0 0.0
        %498 = vmatprep.subr.mxu0 0.0
        %499 = vmatpush1.msra.mxu0 0.0
        %500 = vmatprep.subr.mxu0 0.0
        %501 = vmatpush1.msra.mxu0 0.0
        %502 = vmatprep.subr.mxu0 0.0
        %503 = vmatpush1.msra.mxu0 0.0
        %504 = vmatprep.subr.mxu0 0.0
        %505 = vmatpush1.msra.mxu0 0.0
        %506 = vmatprep.subr.mxu0 0.0
        %507 = vmatpush1.msra.mxu0 0.0
        %508 = vmatprep.subr.mxu0 0.0
        %509 = vmatpush1.msra.mxu0 0.0
        %510 = vmatprep.subr.mxu0 0.0
        %511 = vmatpush1.msra.mxu0 0.0
        %512 = vmatprep.subr.mxu0 0.0
        %513 = vmatpush1.msra.mxu0 0.0
        %514 = vmatprep.subr.mxu0 0.0
        %515 = vmatpush1.msra.mxu0 0.0
        %516 = vmatprep.subr.mxu0 0.0
        %517 = vmatpush1.msra.mxu0 0.0
        %518 = vmatprep.subr.mxu0 0.0
        %519 = vmatpush1.msra.mxu0 0.0
        %520 = vmatprep.subr.mxu0 0.0
        %521 = vmatpush1.msra.mxu0 0.0
        %522 = vmatprep.subr.mxu0 0.0
        %523 = vmatpush1.msra.mxu0 0.0
        %524 = vmatprep.subr.mxu0 0.0
        %525 = vmatpush1.msra.mxu0 0.0
        %526 = vmatprep.subr.mxu0 0.0
        %527 = vmatpush1.msra.mxu0 0.0
        %528 = vmatprep.subr.mxu0 0.0
        %529 = vmatpush1.msra.mxu0 0.0
        %530 = vmatprep.subr.mxu0 0.0
        %531 = vmatpush1.msra.mxu0 0.0
        %532 = vmatprep.subr.mxu0 0.0
        %533 = vmatpush1.msra.mxu0 0.0
        %534 = vmatprep.subr.mxu0 0.0
        %535 = vmatpush1.msra.mxu0 0.0
        %536 = vmatprep.subr.mxu0 0.0
        %537 = vmatpush1.msra.mxu0 0.0
        %538 = vmatprep.mubr.f32.mxu0 0.0
        %539 = vmatmul.mubr.f32.gmra.mrb[0].mxu0 %v363
        %v540 = vpop.f32.mrb[0].mxu0
        %v541 = vadd.f32 0.0, %v540
        %v542 = vpop.f32.mrb[0].mxu0
        %543 = vmatprep.mubr.f32.mxu0 0.0
        %544 = vmatmul.mubr.f32.gmra.mrb[0].mxu0 %v366
        %v545 = vpop.f32.mrb[0].mxu0
        %v546 = vadd.f32 0.0, %v545
        %v547 = vpop.f32.mrb[0].mxu0
        %548 = vmatprep.mubr.f32.mxu0 0.0
        %549 = vmatmul.mubr.f32.gmra.mrb[0].mxu0 %v369
        %v550 = vpop.f32.mrb[0].mxu0
        %v551 = vadd.f32 0.0, %v550
        %v552 = vpop.f32.mrb[0].mxu0
        %553 = vmatprep.mubr.f32.mxu0 0.0
        %554 = vmatmul.mubr.f32.gmra.mrb[0].mxu0 %v372
        %v555 = vpop.f32.mrb[0].mxu0
        %v556 = vadd.f32 0.0, %v555
        %v557 = vpop.f32.mrb[0].mxu0
        %558 = vmatprep.mubr.f32.mxu0 0.0
        %559 = vmatmul.mubr.f32.gmra.mrb[0].mxu0 %v375
        %v560 = vpop.f32.mrb[0].mxu0
        %v561 = vadd.f32 0.0, %v560
        %v562 = vpop.f32.mrb[0].mxu0
        %563 = vmatprep.mubr.f32.mxu0 0.0
        %564 = vmatmul.mubr.f32.gmra.mrb[0].mxu0 %v378
        %v565 = vpop.f32.mrb[0].mxu0
        %v566 = vadd.f32 0.0, %v565
        %v567 = vpop.f32.mrb[0].mxu0
        %568 = vmatprep.mubr.f32.mxu0 0.0
        %569 = vmatmul.mubr.f32.gmra.mrb[0].mxu0 %v381
        %v570 = vpop.f32.mrb[0].mxu0
        %v571 = vadd.f32 0.0, %v570
        %v572 = vpop.f32.mrb[0].mxu0
        %573 = vmatprep.mubr.f32.mxu0 0.0
        %574 = vmatmul.mubr.f32.gmra.mrb[0].mxu0 %v384
        %v575 = vpop.f32.mrb[0].mxu0
        %v576 = vadd.f32 0.0, %v575
        %v577 = vpop.f32.mrb[0].mxu0
        %578 = vmatprep.mubr.f32.mxu0 0.0
        %579 = vmatmul.mubr.f32.gmra.mrb[0].mxu0 %v387
        %v580 = vpop.f32.mrb[0].mxu0
        %v581 = vadd.f32 0.0, %v580
        %v582 = vpop.f32.mrb[0].mxu0
        %583 = vmatprep.mubr.f32.mxu0 0.0
        %584 = vmatmul.mubr.f32.gmra.mrb[0].mxu0 %v390
        %v585 = vpop.f32.mrb[0].mxu0
        %v586 = vadd.f32 0.0, %v585
        %v587 = vpop.f32.mrb[0].mxu0
        %588 = vmatprep.mubr.f32.mxu0 0.0
        %589 = vmatmul.mubr.f32.gmra.mrb[0].mxu0 %v393
        %v590 = vpop.f32.mrb[0].mxu0
        %v591 = vadd.f32 0.0, %v590
        %v592 = vpop.f32.mrb[0].mxu0
        %593 = vmatprep.mubr.f32.mxu0 0.0
        %594 = vmatmul.mubr.f32.gmra.mrb[0].mxu0 %v396
        %v595 = vpop.f32.mrb[0].mxu0
        %v596 = vadd.f32 0.0, %v595
        %v597 = vpop.f32.mrb[0].mxu0
        %598 = vmatprep.mubr.f32.mxu0 0.0
        %599 = vmatmul.mubr.f32.gmra.mrb[0].mxu0 %v399
        %v600 = vpop.f32.mrb[0].mxu0
        %v601 = vadd.f32 0.0, %v600
        %v602 = vpop.f32.mrb[0].mxu0
        %603 = vmatprep.mubr.f32.mxu0 0.0
        %604 = vmatmul.mubr.f32.gmra.mrb[0].mxu0 %v402
        %v605 = vpop.f32.mrb[0].mxu0
        %v606 = vadd.f32 0.0, %v605
        %v607 = vpop.f32.mrb[0].mxu0
        %608 = vmatprep.mubr.f32.mxu0 0.0
        %609 = vmatmul.mubr.f32.gmra.mrb[0].mxu0 %v405
        %v610 = vpop.f32.mrb[0].mxu0
        %v611 = vadd.f32 0.0, %v610
        %v612 = vpop.f32.mrb[0].mxu0
        %613 = vmatprep.mubr.f32.mxu0 0.0
        %614 = vmatmul.mubr.f32.gmra.mrb[0].mxu0 %v408
        %v615 = vpop.f32.mrb[0].mxu0
        %v616 = vadd.f32 0.0, %v615
        %v617 = vpop.f32.mrb[0].mxu0
        %618 = vmatprep.mubr.f32.mxu0 0.0
        %619 = vmatmul.mubr.f32.gmra.mrb[0].mxu0 %v411
        %v620 = vpop.f32.mrb[0].mxu0
        %v621 = vadd.f32 0.0, %v620
        %v622 = vpop.f32.mrb[0].mxu0
        %623 = vmatprep.mubr.f32.mxu0 0.0
        %624 = vmatmul.mubr.f32.gmra.mrb[0].mxu0 %v414
        %v625 = vpop.f32.mrb[0].mxu0
        %v626 = vadd.f32 0.0, %v625
        %v627 = vpop.f32.mrb[0].mxu0
        %628 = vmatprep.mubr.f32.mxu0 0.0
        %629 = vmatmul.mubr.f32.gmra.mrb[0].mxu0 %v417
        %v630 = vpop.f32.mrb[0].mxu0
        %v631 = vadd.f32 0.0, %v630
        %v632 = vpop.f32.mrb[0].mxu0
        %633 = vmatprep.mubr.f32.mxu0 0.0
        %634 = vmatmul.mubr.f32.gmra.mrb[0].mxu0 %v420
        %v635 = vpop.f32.mrb[0].mxu0
        %v636 = vadd.f32 0.0, %v635
        %v637 = vpop.f32.mrb[0].mxu0
        %638 = vmatprep.mubr.f32.mxu0 0.0
        %639 = vmatmul.mubr.f32.gmra.mrb[0].mxu0 %v423
        %v640 = vpop.f32.mrb[0].mxu0
        %v641 = vadd.f32 0.0, %v640
        %v642 = vpop.f32.mrb[0].mxu0
        %643 = vmatprep.mubr.f32.mxu0 0.0
        %644 = vmatmul.mubr.f32.gmra.mrb[0].mxu0 %v426
        %v645 = vpop.f32.mrb[0].mxu0
        %v646 = vadd.f32 0.0, %v645
        %v647 = vpop.f32.mrb[0].mxu0
        %648 = vmatprep.mubr.f32.mxu0 0.0
        %649 = vmatmul.mubr.f32.gmra.mrb[0].mxu0 %v429
        %v650 = vpop.f32.mrb[0].mxu0
        %v651 = vadd.f32 0.0, %v650
        %v652 = vpop.f32.mrb[0].mxu0
        %653 = vmatprep.mubr.f32.mxu0 0.0
        %654 = vmatmul.mubr.f32.gmra.mrb[0].mxu0 %v432
        %v655 = vpop.f32.mrb[0].mxu0
        %v656 = vadd.f32 0.0, %v655
        %v657 = vpop.f32.mrb[0].mxu0
        %658 = vmatprep.mubr.f32.mxu0 0.0
        %659 = vmatmul.mubr.f32.gmra.mrb[0].mxu0 %v435
        %v660 = vpop.f32.mrb[0].mxu0
        %v661 = vadd.f32 0.0, %v660
        %v662 = vpop.f32.mrb[0].mxu0
        %663 = vmatprep.mubr.f32.mxu0 0.0
        %664 = vmatmul.mubr.f32.gmra.mrb[0].mxu0 %v438
        %v665 = vpop.f32.mrb[0].mxu0
        %v666 = vadd.f32 0.0, %v665
        %v667 = vpop.f32.mrb[0].mxu0
        %668 = vmatprep.mubr.f32.mxu0 0.0
        %669 = vmatmul.mubr.f32.gmra.mrb[0].mxu0 %v441
        %v670 = vpop.f32.mrb[0].mxu0
        %v671 = vadd.f32 0.0, %v670
        %v672 = vpop.f32.mrb[0].mxu0
        %673 = vmatprep.mubr.f32.mxu0 0.0
        %674 = vmatmul.mubr.f32.gmra.mrb[0].mxu0 %v444
        %v675 = vpop.f32.mrb[0].mxu0
        %v676 = vadd.f32 0.0, %v675
        %v677 = vpop.f32.mrb[0].mxu0
        %678 = vmatprep.mubr.f32.mxu0 0.0
        %679 = vmatmul.mubr.f32.gmra.mrb[0].mxu0 %v447
        %v680 = vpop.f32.mrb[0].mxu0
        %v681 = vadd.f32 0.0, %v680
        %v682 = vpop.f32.mrb[0].mxu0
        %683 = vmatprep.mubr.f32.mxu0 0.0
        %684 = vmatmul.mubr.f32.gmra.mrb[0].mxu0 %v450
        %v685 = vpop.f32.mrb[0].mxu0
        %v686 = vadd.f32 0.0, %v685
        %v687 = vpop.f32.mrb[0].mxu0
        %688 = vmatprep.mubr.f32.mxu0 0.0
        %689 = vmatmul.mubr.f32.gmra.mrb[0].mxu0 %v453
        %v690 = vpop.f32.mrb[0].mxu0
        %v691 = vadd.f32 0.0, %v690
        %v692 = vpop.f32.mrb[0].mxu0
        %693 = vmatprep.mubr.f32.mxu0 0.0
        %694 = vmatmul.mubr.f32.gmra.mrb[0].mxu0 %v456
        %v695 = vpop.f32.mrb[0].mxu0
        %v696 = vadd.f32 0.0, %v695
        %v697 = vpop.f32.mrb[0].mxu0
        %698 = vmatprep.mubr.f32.mxu0 0.0
        %699 = vmatmul.mubr.f32.gmra.mrb[0].mxu0 %v459
        %v700 = vpop.f32.mrb[0].mxu0
        %v701 = vadd.f32 0.0, %v700
        %v702 = vpop.f32.mrb[0].mxu0
        %703 = vmatprep.mubr.f32.mxu0 0.0
        %704 = vmatmul.mubr.f32.gmra.mrb[0].mxu0 %v462
        %v705 = vpop.f32.mrb[0].mxu0
        %v706 = vadd.f32 0.0, %v705
        %v707 = vpop.f32.mrb[0].mxu0
        %708 = vmatprep.mubr.f32.mxu0 0.0
        %709 = vmatmul.mubr.f32.gmra.mrb[0].mxu0 %v465
        %v710 = vpop.f32.mrb[0].mxu0
        %v711 = vadd.f32 0.0, %v710
        %v712 = vpop.f32.mrb[0].mxu0
        %713 = vmatprep.mubr.f32.mxu0 0.0
        %714 = vmatmul.mubr.f32.gmra.mrb[0].mxu0 %v468
        %v715 = vpop.f32.mrb[0].mxu0
        %v716 = vadd.f32 0.0, %v715
        %v717 = vpop.f32.mrb[0].mxu0
        %718 = vdwg.mxu0
        %v719 = vld [vmem:[%s2] sm:$0x1]
        %v721 = vlaneseq
        %v722 = vshrl.u32 %v721, 7
        %v723 = vsub.s32 0, %v722
        %v724 = vrot.slane %v719, %v723
        %v726 = vmul.f32 %v541, %v724
        %v727 = vmul.f32 %v546, %v724
        %v728 = vmul.f32 %v551, %v724
        %v729 = vmul.f32 %v556, %v724
        %v730 = vmul.f32 %v561, %v724
        %v731 = vmul.f32 %v566, %v724
        %v732 = vmul.f32 %v571, %v724
        %v733 = vmul.f32 %v576, %v724
        %v734 = vmul.f32 %v581, %v724
        %v735 = vmul.f32 %v586, %v724
        %v736 = vmul.f32 %v591, %v724
        %v737 = vmul.f32 %v596, %v724
        %v738 = vmul.f32 %v601, %v724
        %v739 = vmul.f32 %v606, %v724
        %v740 = vmul.f32 %v611, %v724
        %v741 = vmul.f32 %v616, %v724
        %v742 = vmul.f32 %v621, %v724
        %v743 = vmul.f32 %v626, %v724
        %v744 = vmul.f32 %v631, %v724
        %v745 = vmul.f32 %v636, %v724
        %v746 = vmul.f32 %v641, %v724
        %v747 = vmul.f32 %v646, %v724
        %v748 = vmul.f32 %v651, %v724
        %v749 = vmul.f32 %v656, %v724
        %v750 = vmul.f32 %v661, %v724
        %v751 = vmul.f32 %v666, %v724
        %v752 = vmul.f32 %v671, %v724
        %v753 = vmul.f32 %v676, %v724
        %v754 = vmul.f32 %v681, %v724
        %v755 = vmul.f32 %v686, %v724
        %v756 = vmul.f32 %v691, %v724
        %v757 = vmul.f32 %v696, %v724
        %v758 = vmul.f32 %v701, %v724
        %v759 = vmul.f32 %v706, %v724
        %v760 = vmul.f32 %v711, %v724
        %v761 = vmul.f32 %v716, %v724
        %v762 = vld [vmem:[%s3] sm:$0x1]
        %v764 = vlaneseq
        %v765 = vshrl.u32 %v764, 7
        %v766 = vsub.s32 0, %v765
        %v767 = vrot.slane %v762, %v766
        %v769 = vadd.f32 %v726, %v767
        %v770 = vadd.f32 %v727, %v767
        %v771 = vadd.f32 %v728, %v767
        %v772 = vadd.f32 %v729, %v767
        %v773 = vadd.f32 %v730, %v767
        %v774 = vadd.f32 %v731, %v767
        %v775 = vadd.f32 %v732, %v767
        %v776 = vadd.f32 %v733, %v767
        %v777 = vadd.f32 %v734, %v767
        %v778 = vadd.f32 %v735, %v767
        %v779 = vadd.f32 %v736, %v767
        %v780 = vadd.f32 %v737, %v767
        %v781 = vadd.f32 %v738, %v767
        %v782 = vadd.f32 %v739, %v767
        %v783 = vadd.f32 %v740, %v767
        %v784 = vadd.f32 %v741, %v767
        %v785 = vadd.f32 %v742, %v767
        %v786 = vadd.f32 %v743, %v767
        %v787 = vadd.f32 %v744, %v767
        %v788 = vadd.f32 %v745, %v767
        %v789 = vadd.f32 %v746, %v767
        %v790 = vadd.f32 %v747, %v767
        %v791 = vadd.f32 %v748, %v767
        %v792 = vadd.f32 %v749, %v767
        %v793 = vadd.f32 %v750, %v767
        %v794 = vadd.f32 %v751, %v767
        %v795 = vadd.f32 %v752, %v767
        %v796 = vadd.f32 %v753, %v767
        %v797 = vadd.f32 %v754, %v767
        %v798 = vadd.f32 %v755, %v767
        %v799 = vadd.f32 %v756, %v767
        %v800 = vadd.f32 %v757, %v767
        %v801 = vadd.f32 %v758, %v767
        %v802 = vadd.f32 %v759, %v767
        %v803 = vadd.f32 %v760, %v767
        %v804 = vadd.f32 %v761, %v767
        %v805 = vmax.f32 %v769, 0.0
        %v806 = vmax.f32 %v770, 0.0
        %v807 = vmax.f32 %v771, 0.0
        %v808 = vmax.f32 %v772, 0.0
        %v809 = vmax.f32 %v773, 0.0
        %v810 = vmax.f32 %v774, 0.0
        %v811 = vmax.f32 %v775, 0.0
        %v812 = vmax.f32 %v776, 0.0
        %v813 = vmax.f32 %v777, 0.0
        %v814 = vmax.f32 %v778, 0.0
        %v815 = vmax.f32 %v779, 0.0
        %v816 = vmax.f32 %v780, 0.0
        %v817 = vmax.f32 %v781, 0.0
        %v818 = vmax.f32 %v782, 0.0
        %v819 = vmax.f32 %v783, 0.0
        %v820 = vmax.f32 %v784, 0.0
        %v821 = vmax.f32 %v785, 0.0
        %v822 = vmax.f32 %v786, 0.0
        %v823 = vmax.f32 %v787, 0.0
        %v824 = vmax.f32 %v788, 0.0
        %v825 = vmax.f32 %v789, 0.0
        %v826 = vmax.f32 %v790, 0.0
        %v827 = vmax.f32 %v791, 0.0
        %v828 = vmax.f32 %v792, 0.0
        %v829 = vmax.f32 %v793, 0.0
        %v830 = vmax.f32 %v794, 0.0
        %v831 = vmax.f32 %v795, 0.0
        %v832 = vmax.f32 %v796, 0.0
        %v833 = vmax.f32 %v797, 0.0
        %v834 = vmax.f32 %v798, 0.0
        %v835 = vmax.f32 %v799, 0.0
        %v836 = vmax.f32 %v800, 0.0
        %v837 = vmax.f32 %v801, 0.0
        %v838 = vmax.f32 %v802, 0.0
        %v839 = vmax.f32 %v803, 0.0
        %v840 = vmax.f32 %v804, 0.0
        %841 = vst [vmem:[#allocation2 + $0x8] sm:$0xff] %v805
        %842 = vst [vmem:[#allocation2 + $0x20] sm:$0xff] %v806
        %843 = vst [vmem:[#allocation2 + $0x38] sm:$0xff] %v807
        %844 = vst [vmem:[#allocation2 + $0x50] sm:$0xff] %v808
        %845 = vst [vmem:[#allocation2 + $0x68] sm:$0xff] %v809
        %846 = vst [vmem:[#allocation2 + $0x80] sm:$0xff] %v810
        %847 = vst [vmem:[#allocation2 + $0x98] sm:$0xff] %v811
        %848 = vst [vmem:[#allocation2 + $0xb0] sm:$0xff] %v812
        %849 = vst [vmem:[#allocation2 + $0xc8] sm:$0xff] %v813
        %850 = vst [vmem:[#allocation2 + $0xe0] sm:$0xff] %v814
        %851 = vst [vmem:[#allocation2 + $0xf8] sm:$0xff] %v815
        %852 = vst [vmem:[#allocation2 + $0x110] sm:$0xff] %v816
        %853 = vst [vmem:[#allocation2 + $0x128] sm:$0xff] %v817
        %854 = vst [vmem:[#allocation2 + $0x140] sm:$0xff] %v818
        %855 = vst [vmem:[#allocation2 + $0x158] sm:$0xff] %v819
        %856 = vst [vmem:[#allocation2 + $0x170] sm:$0xff] %v820
        %857 = vst [vmem:[#allocation2 + $0x188] sm:$0xff] %v821
        %858 = vst [vmem:[#allocation2 + $0x1a0] sm:$0xff] %v822
        %859 = vst [vmem:[#allocation2 + $0x1b8] sm:$0xff] %v823
        %860 = vst [vmem:[#allocation2 + $0x1d0] sm:$0xff] %v824
        %861 = vst [vmem:[#allocation2 + $0x1e8] sm:$0xff] %v825
        %862 = vst [vmem:[#allocation2 + $0x200] sm:$0xff] %v826
        %863 = vst [vmem:[#allocation2 + $0x218] sm:$0xff] %v827
        %864 = vst [vmem:[#allocation2 + $0x230] sm:$0xff] %v828
        %865 = vst [vmem:[#allocation2 + $0x248] sm:$0xff] %v829
        %866 = vst [vmem:[#allocation2 + $0x260] sm:$0xff] %v830
        %867 = vst [vmem:[#allocation2 + $0x278] sm:$0xff] %v831
        %868 = vst [vmem:[#allocation2 + $0x290] sm:$0xff] %v832
        %869 = vst [vmem:[#allocation2 + $0x2a8] sm:$0xff] %v833
        %870 = vst [vmem:[#allocation2 + $0x2c0] sm:$0xff] %v834
        %871 = vst [vmem:[#allocation2 + $0x2d8] sm:$0xff] %v835
        %872 = vst [vmem:[#allocation2 + $0x2f0] sm:$0xff] %v836
        %873 = vst [vmem:[#allocation2 + $0x308] sm:$0xff] %v837
        %874 = vst [vmem:[#allocation2 + $0x320] sm:$0xff] %v838
        %875 = vst [vmem:[#allocation2 + $0x338] sm:$0xff] %v839
        %876 = vst [vmem:[#allocation2 + $0x350] sm:$0xff] %v840
        %vm913 = vcmask 1040384
        %v914 = vrot.slane %v805, 7
        %v915 = vrot.slane %v806, 7
        %v916 = vsel %vm913, %v914, %v915
        %v917 = vrot.slane %v807, 7
        %v918 = vrot.slane %v808, 7
        %v919 = vsel %vm913, %v917, %v918
        %v920 = vrot.slane %v809, 7
        %v921 = vrot.slane %v810, 7
        %v922 = vsel %vm913, %v920, %v921
        %v923 = vrot.slane %v811, 7
        %v924 = vrot.slane %v812, 7
        %v925 = vsel %vm913, %v923, %v924
        %v926 = vrot.slane %v813, 7
        %v927 = vrot.slane %v814, 7
        %v928 = vsel %vm913, %v926, %v927
        %v929 = vrot.slane %v815, 7
        %v930 = vrot.slane %v816, 7
        %v931 = vsel %vm913, %v929, %v930
        %v932 = vrot.slane %v817, 7
        %v933 = vrot.slane %v818, 7
        %v934 = vsel %vm913, %v932, %v933
        %v935 = vrot.slane %v819, 7
        %v936 = vrot.slane %v820, 7
        %v937 = vsel %vm913, %v935, %v936
        %v938 = vrot.slane %v821, 7
        %v939 = vrot.slane %v822, 7
        %v940 = vsel %vm913, %v938, %v939
        %v941 = vrot.slane %v823, 7
        %v942 = vrot.slane %v824, 7
        %v943 = vsel %vm913, %v941, %v942
        %v944 = vrot.slane %v825, 7
        %v945 = vrot.slane %v826, 7
        %v946 = vsel %vm913, %v944, %v945
        %v947 = vrot.slane %v827, 7
        %v948 = vrot.slane %v828, 7
        %v949 = vsel %vm913, %v947, %v948
        %v950 = vrot.slane %v829, 7
        %v951 = vrot.slane %v830, 7
        %v952 = vsel %vm913, %v950, %v951
        %v953 = vrot.slane %v831, 7
        %v954 = vrot.slane %v832, 7
        %v955 = vsel %vm913, %v953, %v954
        %v956 = vrot.slane %v833, 7
        %v957 = vrot.slane %v834, 7
        %v958 = vsel %vm913, %v956, %v957
        %v959 = vrot.slane %v835, 7
        %v960 = vrot.slane %v836, 7
        %v961 = vsel %vm913, %v959, %v960
        %v962 = vrot.slane %v837, 7
        %v963 = vrot.slane %v838, 7
        %v964 = vsel %vm913, %v962, %v963
        %v965 = vrot.slane %v839, 7
        %v966 = vrot.slane %v840, 7
        %v967 = vsel %vm913, %v965, %v966
        %1004 = vst [vmem:[#allocation2] sm:$0xfe] %v914
        %1005 = vst [vmem:[#allocation2 + $0x18] sm:$0xff] %v916
        %1006 = vst [vmem:[#allocation2 + $0x30] sm:$0xfe] %v917
        %1007 = vst [vmem:[#allocation2 + $0x48] sm:$0xff] %v919
        %1008 = vst [vmem:[#allocation2 + $0x60] sm:$0xfe] %v920
        %1009 = vst [vmem:[#allocation2 + $0x78] sm:$0xff] %v922
        %1010 = vst [vmem:[#allocation2 + $0x90] sm:$0xfe] %v923
        %1011 = vst [vmem:[#allocation2 + $0xa8] sm:$0xff] %v925
        %1012 = vst [vmem:[#allocation2 + $0xc0] sm:$0xfe] %v926
        %1013 = vst [vmem:[#allocation2 + $0xd8] sm:$0xff] %v928
        %1014 = vst [vmem:[#allocation2 + $0xf0] sm:$0xfe] %v929
        %1015 = vst [vmem:[#allocation2 + $0x108] sm:$0xff] %v931
        %1016 = vst [vmem:[#allocation2 + $0x120] sm:$0xfe] %v932
        %1017 = vst [vmem:[#allocation2 + $0x138] sm:$0xff] %v934
        %1018 = vst [vmem:[#allocation2 + $0x150] sm:$0xfe] %v935
        %1019 = vst [vmem:[#allocation2 + $0x168] sm:$0xff] %v937
        %1020 = vst [vmem:[#allocation2 + $0x180] sm:$0xfe] %v938
        %1021 = vst [vmem:[#allocation2 + $0x198] sm:$0xff] %v940
        %1022 = vst [vmem:[#allocation2 + $0x1b0] sm:$0xfe] %v941
        %1023 = vst [vmem:[#allocation2 + $0x1c8] sm:$0xff] %v943
        %1024 = vst [vmem:[#allocation2 + $0x1e0] sm:$0xfe] %v944
        %1025 = vst [vmem:[#allocation2 + $0x1f8] sm:$0xff] %v946
        %1026 = vst [vmem:[#allocation2 + $0x210] sm:$0xfe] %v947
        %1027 = vst [vmem:[#allocation2 + $0x228] sm:$0xff] %v949
        %1028 = vst [vmem:[#allocation2 + $0x240] sm:$0xfe] %v950
        %1029 = vst [vmem:[#allocation2 + $0x258] sm:$0xff] %v952
        %1030 = vst [vmem:[#allocation2 + $0x270] sm:$0xfe] %v953
        %1031 = vst [vmem:[#allocation2 + $0x288] sm:$0xff] %v955
        %1032 = vst [vmem:[#allocation2 + $0x2a0] sm:$0xfe] %v956
        %1033 = vst [vmem:[#allocation2 + $0x2b8] sm:$0xff] %v958
        %1034 = vst [vmem:[#allocation2 + $0x2d0] sm:$0xfe] %v959
        %1035 = vst [vmem:[#allocation2 + $0x2e8] sm:$0xff] %v961
        %1036 = vst [vmem:[#allocation2 + $0x300] sm:$0xfe] %v962
        %1037 = vst [vmem:[#allocation2 + $0x318] sm:$0xff] %v964
        %1038 = vst [vmem:[#allocation2 + $0x330] sm:$0xfe] %v965
        %1039 = vst [vmem:[#allocation2 + $0x348] sm:$0xff] %v967
        %vm1040 = vcmask 1046528
        %v1041 = vrot.slane %v805, 1
        %v1042 = vrot.slane %v806, 1
        %v1043 = vsel %vm1040, %v1041, %v1042
        %v1044 = vrot.slane %v807, 1
        %v1045 = vrot.slane %v808, 1
        %v1046 = vsel %vm1040, %v1044, %v1045
        %v1047 = vrot.slane %v809, 1
        %v1048 = vrot.slane %v810, 1
        %v1049 = vsel %vm1040, %v1047, %v1048
        %v1050 = vrot.slane %v811, 1
        %v1051 = vrot.slane %v812, 1
        %v1052 = vsel %vm1040, %v1050, %v1051
        %v1053 = vrot.slane %v813, 1
        %v1054 = vrot.slane %v814, 1
        %v1055 = vsel %vm1040, %v1053, %v1054
        %v1056 = vrot.slane %v815, 1
        %v1057 = vrot.slane %v816, 1
        %v1058 = vsel %vm1040, %v1056, %v1057
        %v1059 = vrot.slane %v817, 1
        %v1060 = vrot.slane %v818, 1
        %v1061 = vsel %vm1040, %v1059, %v1060
        %v1062 = vrot.slane %v819, 1
        %v1063 = vrot.slane %v820, 1
        %v1064 = vsel %vm1040, %v1062, %v1063
        %v1065 = vrot.slane %v821, 1
        %v1066 = vrot.slane %v822, 1
        %v1067 = vsel %vm1040, %v1065, %v1066
        %v1068 = vrot.slane %v823, 1
        %v1069 = vrot.slane %v824, 1
        %v1070 = vsel %vm1040, %v1068, %v1069
        %v1071 = vrot.slane %v825, 1
        %v1072 = vrot.slane %v826, 1
        %v1073 = vsel %vm1040, %v1071, %v1072
        %v1074 = vrot.slane %v827, 1
        %v1075 = vrot.slane %v828, 1
        %v1076 = vsel %vm1040, %v1074, %v1075
        %v1077 = vrot.slane %v829, 1
        %v1078 = vrot.slane %v830, 1
        %v1079 = vsel %vm1040, %v1077, %v1078
        %v1080 = vrot.slane %v831, 1
        %v1081 = vrot.slane %v832, 1
        %v1082 = vsel %vm1040, %v1080, %v1081
        %v1083 = vrot.slane %v833, 1
        %v1084 = vrot.slane %v834, 1
        %v1085 = vsel %vm1040, %v1083, %v1084
        %v1086 = vrot.slane %v835, 1
        %v1087 = vrot.slane %v836, 1
        %v1088 = vsel %vm1040, %v1086, %v1087
        %v1089 = vrot.slane %v837, 1
        %v1090 = vrot.slane %v838, 1
        %v1091 = vsel %vm1040, %v1089, %v1090
        %v1092 = vrot.slane %v839, 1
        %v1093 = vrot.slane %v840, 1
        %v1094 = vsel %vm1040, %v1092, %v1093
        %1131 = vst [vmem:[#allocation2 + $0x10] sm:$0xff] %v1043
        %1132 = vst [vmem:[#allocation2 + $0x28] sm:$0x7f] %v1042
        %1133 = vst [vmem:[#allocation2 + $0x40] sm:$0xff] %v1046
        %1134 = vst [vmem:[#allocation2 + $0x58] sm:$0x7f] %v1045
        %1135 = vst [vmem:[#allocation2 + $0x70] sm:$0xff] %v1049
        %1136 = vst [vmem:[#allocation2 + $0x88] sm:$0x7f] %v1048
        %1137 = vst [vmem:[#allocation2 + $0xa0] sm:$0xff] %v1052
        %1138 = vst [vmem:[#allocation2 + $0xb8] sm:$0x7f] %v1051
        %1139 = vst [vmem:[#allocation2 + $0xd0] sm:$0xff] %v1055
        %1140 = vst [vmem:[#allocation2 + $0xe8] sm:$0x7f] %v1054
        %1141 = vst [vmem:[#allocation2 + $0x100] sm:$0xff] %v1058
        %1142 = vst [vmem:[#allocation2 + $0x118] sm:$0x7f] %v1057
        %1143 = vst [vmem:[#allocation2 + $0x130] sm:$0xff] %v1061
        %1144 = vst [vmem:[#allocation2 + $0x148] sm:$0x7f] %v1060
        %1145 = vst [vmem:[#allocation2 + $0x160] sm:$0xff] %v1064
        %1146 = vst [vmem:[#allocation2 + $0x178] sm:$0x7f] %v1063
        %1147 = vst [vmem:[#allocation2 + $0x190] sm:$0xff] %v1067
        %1148 = vst [vmem:[#allocation2 + $0x1a8] sm:$0x7f] %v1066
        %1149 = vst [vmem:[#allocation2 + $0x1c0] sm:$0xff] %v1070
        %1150 = vst [vmem:[#allocation2 + $0x1d8] sm:$0x7f] %v1069
        %1151 = vst [vmem:[#allocation2 + $0x1f0] sm:$0xff] %v1073
        %1152 = vst [vmem:[#allocation2 + $0x208] sm:$0x7f] %v1072
        %1153 = vst [vmem:[#allocation2 + $0x220] sm:$0xff] %v1076
        %1154 = vst [vmem:[#allocation2 + $0x238] sm:$0x7f] %v1075
        %1155 = vst [vmem:[#allocation2 + $0x250] sm:$0xff] %v1079
        %1156 = vst [vmem:[#allocation2 + $0x268] sm:$0x7f] %v1078
        %1157 = vst [vmem:[#allocation2 + $0x280] sm:$0xff] %v1082
        %1158 = vst [vmem:[#allocation2 + $0x298] sm:$0x7f] %v1081
        %1159 = vst [vmem:[#allocation2 + $0x2b0] sm:$0xff] %v1085
        %1160 = vst [vmem:[#allocation2 + $0x2c8] sm:$0x7f] %v1084
        %1161 = vst [vmem:[#allocation2 + $0x2e0] sm:$0xff] %v1088
        %1162 = vst [vmem:[#allocation2 + $0x2f8] sm:$0x7f] %v1087
        %1163 = vst [vmem:[#allocation2 + $0x310] sm:$0xff] %v1091
        %1164 = vst [vmem:[#allocation2 + $0x328] sm:$0x7f] %v1090
        %1165 = vst [vmem:[#allocation2 + $0x340] sm:$0xff] %v1094
        %1166 = vst [vmem:[#allocation2 + $0x358] sm:$0x7f] %v1093
        %1167 = vst [vmem:[#allocation2] sm:$0x1] 0.0
        %1168 = vst [vmem:[#allocation2 + $0x30] sm:$0x1] 0.0
        %1169 = vst [vmem:[#allocation2 + $0x60] sm:$0x1] 0.0
        %1170 = vst [vmem:[#allocation2 + $0x90] sm:$0x1] 0.0
        %1171 = vst [vmem:[#allocation2 + $0xc0] sm:$0x1] 0.0
        %1172 = vst [vmem:[#allocation2 + $0xf0] sm:$0x1] 0.0
        %1173 = vst [vmem:[#allocation2 + $0x120] sm:$0x1] 0.0
        %1174 = vst [vmem:[#allocation2 + $0x150] sm:$0x1] 0.0
        %1175 = vst [vmem:[#allocation2 + $0x180] sm:$0x1] 0.0
        %1176 = vst [vmem:[#allocation2 + $0x1b0] sm:$0x1] 0.0
        %1177 = vst [vmem:[#allocation2 + $0x1e0] sm:$0x1] 0.0
        %1178 = vst [vmem:[#allocation2 + $0x210] sm:$0x1] 0.0
        %1179 = vst [vmem:[#allocation2 + $0x240] sm:$0x1] 0.0
        %1180 = vst [vmem:[#allocation2 + $0x270] sm:$0x1] 0.0
        %1181 = vst [vmem:[#allocation2 + $0x2a0] sm:$0x1] 0.0
        %1182 = vst [vmem:[#allocation2 + $0x2d0] sm:$0x1] 0.0
        %1183 = vst [vmem:[#allocation2 + $0x300] sm:$0x1] 0.0
        %1184 = vst [vmem:[#allocation2 + $0x330] sm:$0x1] 0.0
        %1185 = vst [vmem:[#allocation2 + $0x2f] sm:$0x1] 0.0
        %1186 = vst [vmem:[#allocation2 + $0x5f] sm:$0x1] 0.0
        %1187 = vst [vmem:[#allocation2 + $0x8f] sm:$0x1] 0.0
        %1188 = vst [vmem:[#allocation2 + $0xbf] sm:$0x1] 0.0
        %1189 = vst [vmem:[#allocation2 + $0xef] sm:$0x1] 0.0
        %1190 = vst [vmem:[#allocation2 + $0x11f] sm:$0x1] 0.0
        %1191 = vst [vmem:[#allocation2 + $0x14f] sm:$0x1] 0.0
        %1192 = vst [vmem:[#allocation2 + $0x17f] sm:$0x1] 0.0
        %1193 = vst [vmem:[#allocation2 + $0x1af] sm:$0x1] 0.0
        %1194 = vst [vmem:[#allocation2 + $0x1df] sm:$0x1] 0.0
        %1195 = vst [vmem:[#allocation2 + $0x20f] sm:$0x1] 0.0
        %1196 = vst [vmem:[#allocation2 + $0x23f] sm:$0x1] 0.0
        %1197 = vst [vmem:[#allocation2 + $0x26f] sm:$0x1] 0.0
        %1198 = vst [vmem:[#allocation2 + $0x29f] sm:$0x1] 0.0
        %1199 = vst [vmem:[#allocation2 + $0x2cf] sm:$0x1] 0.0
        %1200 = vst [vmem:[#allocation2 + $0x2ff] sm:$0x1] 0.0
        %1201 = vst [vmem:[#allocation2 + $0x32f] sm:$0x1] 0.0
        %1202 = vst [vmem:[#allocation2 + $0x35f] sm:$0x1] 0.0
        %p1203 = scmp.eq.s32.totalorder %s27, 0
        // Predicated region
        $region53: #{tpu_custom_call.1} parent=47 // pred_check
          %p1204 = pneg %p1203
        $region54: #{tpu_custom_call.1} parent=47 // pred_check_branch
          %1206 = sbr.rel (%p1204) target = $region56
        $region55: #{tpu_custom_call.1} parent=47 // pred_region
          %1207 = vst [vmem:[#allocation2] sm:$0xff] 0.0
          %1208 = vst [vmem:[#allocation2 + $0x8] sm:$0xff] 0.0
          %1209 = vst [vmem:[#allocation2 + $0x10] sm:$0xff] 0.0
          %1210 = vst [vmem:[#allocation2 + $0x18] sm:$0xff] 0.0
          %1211 = vst [vmem:[#allocation2 + $0x20] sm:$0xff] 0.0
          %1212 = vst [vmem:[#allocation2 + $0x28] sm:$0xff] 0.0
          %s1213 = scalar_lea.vmem [#allocation2], 816
          %1214 = vst [vmem:[%s1213] sm:$0xff] 0.0
          %1215 = vst [vmem:[%s1213 + $0x8] sm:$0xff] 0.0
          %1216 = vst [vmem:[%s1213 + $0x10] sm:$0xff] 0.0
          %1217 = vst [vmem:[%s1213 + $0x18] sm:$0xff] 0.0
          %1218 = vst [vmem:[%s1213 + $0x20] sm:$0xff] 0.0
          %1219 = vst [vmem:[%s1213 + $0x28] sm:$0xff] 0.0
        $region56: #{tpu_custom_call.1} parent=47 // pred_fallthru
          _
        %v1220 = vld [vmem:[#allocation2] sm:$0xff]
        %v1221 = vld [vmem:[#allocation2 + $0x8] sm:$0xff]
        %v1222 = vld [vmem:[#allocation2 + $0x10] sm:$0xff]
        %v1223 = vld [vmem:[#allocation2 + $0x18] sm:$0xff]
        %v1224 = vld [vmem:[#allocation2 + $0x20] sm:$0xff]
        %v1225 = vld [vmem:[#allocation2 + $0x28] sm:$0xff]
        %v1226 = vld [vmem:[#allocation2 + $0x30] sm:$0xff]
        %v1227 = vld [vmem:[#allocation2 + $0x38] sm:$0xff]
        %v1228 = vld [vmem:[#allocation2 + $0x40] sm:$0xff]
        %v1229 = vld [vmem:[#allocation2 + $0x48] sm:$0xff]
        %v1230 = vld [vmem:[#allocation2 + $0x50] sm:$0xff]
        %v1231 = vld [vmem:[#allocation2 + $0x58] sm:$0xff]
        %v1232 = vld [vmem:[#allocation2 + $0x60] sm:$0xff]
        %v1233 = vld [vmem:[#allocation2 + $0x68] sm:$0xff]
        %v1234 = vld [vmem:[#allocation2 + $0x70] sm:$0xff]
        %v1235 = vld [vmem:[#allocation2 + $0x78] sm:$0xff]
        %v1236 = vld [vmem:[#allocation2 + $0x80] sm:$0xff]
        %v1237 = vld [vmem:[#allocation2 + $0x88] sm:$0xff]
        %v1238 = vld [vmem:[#allocation2 + $0x90] sm:$0xff]
        %v1239 = vld [vmem:[#allocation2 + $0x98] sm:$0xff]
        %v1240 = vld [vmem:[#allocation2 + $0xa0] sm:$0xff]
        %v1241 = vld [vmem:[#allocation2 + $0xa8] sm:$0xff]
        %v1242 = vld [vmem:[#allocation2 + $0xb0] sm:$0xff]
        %v1243 = vld [vmem:[#allocation2 + $0xb8] sm:$0xff]
        %v1244 = vld [vmem:[#allocation2 + $0xc0] sm:$0xff]
        %v1245 = vld [vmem:[#allocation2 + $0xc8] sm:$0xff]
        %v1246 = vld [vmem:[#allocation2 + $0xd0] sm:$0xff]
        %v1247 = vld [vmem:[#allocation2 + $0xd8] sm:$0xff]
        %v1248 = vld [vmem:[#allocation2 + $0xe0] sm:$0xff]
        %v1249 = vld [vmem:[#allocation2 + $0xe8] sm:$0xff]
        %v1250 = vld [vmem:[#allocation2 + $0xf0] sm:$0xff]
        %v1251 = vld [vmem:[#allocation2 + $0xf8] sm:$0xff]
        %v1252 = vld [vmem:[#allocation2 + $0x100] sm:$0xff]
        %v1253 = vld [vmem:[#allocation2 + $0x108] sm:$0xff]
        %v1254 = vld [vmem:[#allocation2 + $0x110] sm:$0xff]
        %v1255 = vld [vmem:[#allocation2 + $0x118] sm:$0xff]
        %v1256 = vld [vmem:[#allocation2 + $0x120] sm:$0xff]
        %v1257 = vld [vmem:[#allocation2 + $0x128] sm:$0xff]
        %v1258 = vld [vmem:[#allocation2 + $0x130] sm:$0xff]
        %v1259 = vld [vmem:[#allocation2 + $0x138] sm:$0xff]
        %v1260 = vld [vmem:[#allocation2 + $0x140] sm:$0xff]
        %v1261 = vld [vmem:[#allocation2 + $0x148] sm:$0xff]
        %v1262 = vld [vmem:[#allocation2 + $0x150] sm:$0xff]
        %v1263 = vld [vmem:[#allocation2 + $0x158] sm:$0xff]
        %v1264 = vld [vmem:[#allocation2 + $0x160] sm:$0xff]
        %v1265 = vld [vmem:[#allocation2 + $0x168] sm:$0xff]
        %v1266 = vld [vmem:[#allocation2 + $0x170] sm:$0xff]
        %v1267 = vld [vmem:[#allocation2 + $0x178] sm:$0xff]
        %v1268 = vld [vmem:[#allocation2 + $0x180] sm:$0xff]
        %v1269 = vld [vmem:[#allocation2 + $0x188] sm:$0xff]
        %v1270 = vld [vmem:[#allocation2 + $0x190] sm:$0xff]
        %v1271 = vld [vmem:[#allocation2 + $0x198] sm:$0xff]
        %v1272 = vld [vmem:[#allocation2 + $0x1a0] sm:$0xff]
        %v1273 = vld [vmem:[#allocation2 + $0x1a8] sm:$0xff]
        %v1274 = vld [vmem:[#allocation2 + $0x1b0] sm:$0xff]
        %v1275 = vld [vmem:[#allocation2 + $0x1b8] sm:$0xff]
        %v1276 = vld [vmem:[#allocation2 + $0x1c0] sm:$0xff]
        %v1277 = vld [vmem:[#allocation2 + $0x1c8] sm:$0xff]
        %v1278 = vld [vmem:[#allocation2 + $0x1d0] sm:$0xff]
        %v1279 = vld [vmem:[#allocation2 + $0x1d8] sm:$0xff]
        %v1280 = vld [vmem:[#allocation2 + $0x1e0] sm:$0xff]
        %v1281 = vld [vmem:[#allocation2 + $0x1e8] sm:$0xff]
        %v1282 = vld [vmem:[#allocation2 + $0x1f0] sm:$0xff]
        %v1283 = vld [vmem:[#allocation2 + $0x1f8] sm:$0xff]
        %v1284 = vld [vmem:[#allocation2 + $0x200] sm:$0xff]
        %v1285 = vld [vmem:[#allocation2 + $0x208] sm:$0xff]
        %v1286 = vld [vmem:[#allocation2 + $0x210] sm:$0xff]
        %v1287 = vld [vmem:[#allocation2 + $0x218] sm:$0xff]
        %v1288 = vld [vmem:[#allocation2 + $0x220] sm:$0xff]
        %v1289 = vld [vmem:[#allocation2 + $0x228] sm:$0xff]
        %v1290 = vld [vmem:[#allocation2 + $0x230] sm:$0xff]
        %v1291 = vld [vmem:[#allocation2 + $0x238] sm:$0xff]
        %v1292 = vld [vmem:[#allocation2 + $0x240] sm:$0xff]
        %v1293 = vld [vmem:[#allocation2 + $0x248] sm:$0xff]
        %v1294 = vld [vmem:[#allocation2 + $0x250] sm:$0xff]
        %v1295 = vld [vmem:[#allocation2 + $0x258] sm:$0xff]
        %v1296 = vld [vmem:[#allocation2 + $0x260] sm:$0xff]
        %v1297 = vld [vmem:[#allocation2 + $0x268] sm:$0xff]
        %v1298 = vld [vmem:[#allocation2 + $0x270] sm:$0xff]
        %v1299 = vld [vmem:[#allocation2 + $0x278] sm:$0xff]
        %v1300 = vld [vmem:[#allocation2 + $0x280] sm:$0xff]
        %v1301 = vld [vmem:[#allocation2 + $0x288] sm:$0xff]
        %v1302 = vld [vmem:[#allocation2 + $0x290] sm:$0xff]
        %v1303 = vld [vmem:[#allocation2 + $0x298] sm:$0xff]
        %v1304 = vld [vmem:[#allocation2 + $0x2a0] sm:$0xff]
        %v1305 = vld [vmem:[#allocation2 + $0x2a8] sm:$0xff]
        %v1306 = vld [vmem:[#allocation2 + $0x2b0] sm:$0xff]
        %v1307 = vld [vmem:[#allocation2 + $0x2b8] sm:$0xff]
        %v1308 = vld [vmem:[#allocation2 + $0x2c0] sm:$0xff]
        %v1309 = vld [vmem:[#allocation2 + $0x2c8] sm:$0xff]
        %v1310 = vld [vmem:[#allocation2 + $0x2d0] sm:$0xff]
        %v1311 = vld [vmem:[#allocation2 + $0x2d8] sm:$0xff]
        %v1312 = vld [vmem:[#allocation2 + $0x2e0] sm:$0xff]
        %v1313 = vld [vmem:[#allocation2 + $0x2e8] sm:$0xff]
        %v1314 = vld [vmem:[#allocation2 + $0x2f0] sm:$0xff]
        %v1315 = vld [vmem:[#allocation2 + $0x2f8] sm:$0xff]
        %v1316 = vld [vmem:[#allocation3] sm:$0xff]
        %v1317 = vld [vmem:[#allocation3 + $0x8] sm:$0xff]
        %v1318 = vld [vmem:[#allocation3 + $0x10] sm:$0xff]
        %v1319 = vld [vmem:[#allocation3 + $0x18] sm:$0xff]
        %v1320 = vld [vmem:[#allocation3 + $0x20] sm:$0xff]
        %v1321 = vld [vmem:[#allocation3 + $0x28] sm:$0xff]
        %v1322 = vld [vmem:[#allocation3 + $0x30] sm:$0xff]
        %v1323 = vld [vmem:[#allocation3 + $0x38] sm:$0xff]
        %v1324 = vld [vmem:[#allocation3 + $0x40] sm:$0xff]
        %v1325 = vld [vmem:[#allocation3 + $0x48] sm:$0xff]
        %v1326 = vld [vmem:[#allocation3 + $0x50] sm:$0xff]
        %v1327 = vld [vmem:[#allocation3 + $0x58] sm:$0xff]
        %v1328 = vld [vmem:[#allocation3 + $0x60] sm:$0xff]
        %v1329 = vld [vmem:[#allocation3 + $0x68] sm:$0xff]
        %v1330 = vld [vmem:[#allocation3 + $0x70] sm:$0xff]
        %v1331 = vld [vmem:[#allocation3 + $0x78] sm:$0xff]
        %v1332 = vld [vmem:[#allocation3 + $0x80] sm:$0xff]
        %v1333 = vld [vmem:[#allocation3 + $0x88] sm:$0xff]
        %v1334 = vld [vmem:[#allocation3 + $0x90] sm:$0xff]
        %v1335 = vld [vmem:[#allocation3 + $0x98] sm:$0xff]
        %v1336 = vld [vmem:[#allocation3 + $0xa0] sm:$0xff]
        %v1337 = vld [vmem:[#allocation3 + $0xa8] sm:$0xff]
        %v1338 = vld [vmem:[#allocation3 + $0xb0] sm:$0xff]
        %v1339 = vld [vmem:[#allocation3 + $0xb8] sm:$0xff]
        %v1340 = vld [vmem:[#allocation3 + $0xc0] sm:$0xff]
        %v1341 = vld [vmem:[#allocation3 + $0xc8] sm:$0xff]
        %v1342 = vld [vmem:[#allocation3 + $0xd0] sm:$0xff]
        %v1343 = vld [vmem:[#allocation3 + $0xd8] sm:$0xff]
        %v1344 = vld [vmem:[#allocation3 + $0xe0] sm:$0xff]
        %v1345 = vld [vmem:[#allocation3 + $0xe8] sm:$0xff]
        %v1346 = vld [vmem:[#allocation3 + $0xf0] sm:$0xff]
        %v1347 = vld [vmem:[#allocation3 + $0xf8] sm:$0xff]
        %v1348 = vld [vmem:[#allocation3 + $0x100] sm:$0xff]
        %v1349 = vld [vmem:[#allocation3 + $0x108] sm:$0xff]
        %v1350 = vld [vmem:[#allocation3 + $0x110] sm:$0xff]
        %v1351 = vld [vmem:[#allocation3 + $0x118] sm:$0xff]
        %v1352 = vld [vmem:[#allocation3 + $0x120] sm:$0xff]
        %v1353 = vld [vmem:[#allocation3 + $0x128] sm:$0xff]
        %v1354 = vld [vmem:[#allocation3 + $0x130] sm:$0xff]
        %v1355 = vld [vmem:[#allocation3 + $0x138] sm:$0xff]
        %v1356 = vld [vmem:[#allocation3 + $0x140] sm:$0xff]
        %v1357 = vld [vmem:[#allocation3 + $0x148] sm:$0xff]
        %v1358 = vld [vmem:[#allocation3 + $0x150] sm:$0xff]
        %v1359 = vld [vmem:[#allocation3 + $0x158] sm:$0xff]
        %v1360 = vld [vmem:[#allocation3 + $0x160] sm:$0xff]
        %v1361 = vld [vmem:[#allocation3 + $0x168] sm:$0xff]
        %v1362 = vld [vmem:[#allocation3 + $0x170] sm:$0xff]
        %v1363 = vld [vmem:[#allocation3 + $0x178] sm:$0xff]
        %s1364 = scalar_lea.vmem [#allocation2], 48
        %v1365 = vld [vmem:[%s1364] sm:$0xff]
        %v1366 = vld [vmem:[%s1364 + $0x8] sm:$0xff]
        %v1367 = vld [vmem:[%s1364 + $0x10] sm:$0xff]
        %v1368 = vld [vmem:[%s1364 + $0x18] sm:$0xff]
        %v1369 = vld [vmem:[%s1364 + $0x20] sm:$0xff]
        %v1370 = vld [vmem:[%s1364 + $0x28] sm:$0xff]
        %v1371 = vld [vmem:[%s1364 + $0x30] sm:$0xff]
        %v1372 = vld [vmem:[%s1364 + $0x38] sm:$0xff]
        %v1373 = vld [vmem:[%s1364 + $0x40] sm:$0xff]
        %v1374 = vld [vmem:[%s1364 + $0x48] sm:$0xff]
        %v1375 = vld [vmem:[%s1364 + $0x50] sm:$0xff]
        %v1376 = vld [vmem:[%s1364 + $0x58] sm:$0xff]
        %v1377 = vld [vmem:[%s1364 + $0x60] sm:$0xff]
        %v1378 = vld [vmem:[%s1364 + $0x68] sm:$0xff]
        %v1379 = vld [vmem:[%s1364 + $0x70] sm:$0xff]
        %v1380 = vld [vmem:[%s1364 + $0x78] sm:$0xff]
        %v1381 = vld [vmem:[%s1364 + $0x80] sm:$0xff]
        %v1382 = vld [vmem:[%s1364 + $0x88] sm:$0xff]
        %v1383 = vld [vmem:[%s1364 + $0x90] sm:$0xff]
        %v1384 = vld [vmem:[%s1364 + $0x98] sm:$0xff]
        %v1385 = vld [vmem:[%s1364 + $0xa0] sm:$0xff]
        %v1386 = vld [vmem:[%s1364 + $0xa8] sm:$0xff]
        %v1387 = vld [vmem:[%s1364 + $0xb0] sm:$0xff]
        %v1388 = vld [vmem:[%s1364 + $0xb8] sm:$0xff]
        %v1389 = vld [vmem:[%s1364 + $0xc0] sm:$0xff]
        %v1390 = vld [vmem:[%s1364 + $0xc8] sm:$0xff]
        %v1391 = vld [vmem:[%s1364 + $0xd0] sm:$0xff]
        %v1392 = vld [vmem:[%s1364 + $0xd8] sm:$0xff]
        %v1393 = vld [vmem:[%s1364 + $0xe0] sm:$0xff]
        %v1394 = vld [vmem:[%s1364 + $0xe8] sm:$0xff]
        %v1395 = vld [vmem:[%s1364 + $0xf0] sm:$0xff]
        %v1396 = vld [vmem:[%s1364 + $0xf8] sm:$0xff]
        %v1397 = vld [vmem:[%s1364 + $0x100] sm:$0xff]
        %v1398 = vld [vmem:[%s1364 + $0x108] sm:$0xff]
        %v1399 = vld [vmem:[%s1364 + $0x110] sm:$0xff]
        %v1400 = vld [vmem:[%s1364 + $0x118] sm:$0xff]
        %v1401 = vld [vmem:[%s1364 + $0x120] sm:$0xff]
        %v1402 = vld [vmem:[%s1364 + $0x128] sm:$0xff]
        %v1403 = vld [vmem:[%s1364 + $0x130] sm:$0xff]
        %v1404 = vld [vmem:[%s1364 + $0x138] sm:$0xff]
        %v1405 = vld [vmem:[%s1364 + $0x140] sm:$0xff]
        %v1406 = vld [vmem:[%s1364 + $0x148] sm:$0xff]
        %v1407 = vld [vmem:[%s1364 + $0x150] sm:$0xff]
        %v1408 = vld [vmem:[%s1364 + $0x158] sm:$0xff]
        %v1409 = vld [vmem:[%s1364 + $0x160] sm:$0xff]
        %v1410 = vld [vmem:[%s1364 + $0x168] sm:$0xff]
        %v1411 = vld [vmem:[%s1364 + $0x170] sm:$0xff]
        %v1412 = vld [vmem:[%s1364 + $0x178] sm:$0xff]
        %v1413 = vld [vmem:[%s1364 + $0x180] sm:$0xff]
        %v1414 = vld [vmem:[%s1364 + $0x188] sm:$0xff]
        %v1415 = vld [vmem:[%s1364 + $0x190] sm:$0xff]
        %v1416 = vld [vmem:[%s1364 + $0x198] sm:$0xff]
        %v1417 = vld [vmem:[%s1364 + $0x1a0] sm:$0xff]
        %v1418 = vld [vmem:[%s1364 + $0x1a8] sm:$0xff]
        %v1419 = vld [vmem:[%s1364 + $0x1b0] sm:$0xff]
        %v1420 = vld [vmem:[%s1364 + $0x1b8] sm:$0xff]
        %v1421 = vld [vmem:[%s1364 + $0x1c0] sm:$0xff]
        %v1422 = vld [vmem:[%s1364 + $0x1c8] sm:$0xff]
        %v1423 = vld [vmem:[%s1364 + $0x1d0] sm:$0xff]
        %v1424 = vld [vmem:[%s1364 + $0x1d8] sm:$0xff]
        %v1425 = vld [vmem:[%s1364 + $0x1e0] sm:$0xff]
        %v1426 = vld [vmem:[%s1364 + $0x1e8] sm:$0xff]
        %v1427 = vld [vmem:[%s1364 + $0x1f0] sm:$0xff]
        %v1428 = vld [vmem:[%s1364 + $0x1f8] sm:$0xff]
        %v1429 = vld [vmem:[%s1364 + $0x200] sm:$0xff]
        %v1430 = vld [vmem:[%s1364 + $0x208] sm:$0xff]
        %v1431 = vld [vmem:[%s1364 + $0x210] sm:$0xff]
        %v1432 = vld [vmem:[%s1364 + $0x218] sm:$0xff]
        %v1433 = vld [vmem:[%s1364 + $0x220] sm:$0xff]
        %v1434 = vld [vmem:[%s1364 + $0x228] sm:$0xff]
        %v1435 = vld [vmem:[%s1364 + $0x230] sm:$0xff]
        %v1436 = vld [vmem:[%s1364 + $0x238] sm:$0xff]
        %v1437 = vld [vmem:[%s1364 + $0x240] sm:$0xff]
        %v1438 = vld [vmem:[%s1364 + $0x248] sm:$0xff]
        %v1439 = vld [vmem:[%s1364 + $0x250] sm:$0xff]
        %v1440 = vld [vmem:[%s1364 + $0x258] sm:$0xff]
        %v1441 = vld [vmem:[%s1364 + $0x260] sm:$0xff]
        %v1442 = vld [vmem:[%s1364 + $0x268] sm:$0xff]
        %v1443 = vld [vmem:[%s1364 + $0x270] sm:$0xff]
        %v1444 = vld [vmem:[%s1364 + $0x278] sm:$0xff]
        %v1445 = vld [vmem:[%s1364 + $0x280] sm:$0xff]
        %v1446 = vld [vmem:[%s1364 + $0x288] sm:$0xff]
        %v1447 = vld [vmem:[%s1364 + $0x290] sm:$0xff]
        %v1448 = vld [vmem:[%s1364 + $0x298] sm:$0xff]
        %v1449 = vld [vmem:[%s1364 + $0x2a0] sm:$0xff]
        %v1450 = vld [vmem:[%s1364 + $0x2a8] sm:$0xff]
        %v1451 = vld [vmem:[%s1364 + $0x2b0] sm:$0xff]
        %v1452 = vld [vmem:[%s1364 + $0x2b8] sm:$0xff]
        %v1453 = vld [vmem:[%s1364 + $0x2c0] sm:$0xff]
        %v1454 = vld [vmem:[%s1364 + $0x2c8] sm:$0xff]
        %v1455 = vld [vmem:[%s1364 + $0x2d0] sm:$0xff]
        %v1456 = vld [vmem:[%s1364 + $0x2d8] sm:$0xff]
        %v1457 = vld [vmem:[%s1364 + $0x2e0] sm:$0xff]
        %v1458 = vld [vmem:[%s1364 + $0x2e8] sm:$0xff]
        %v1459 = vld [vmem:[%s1364 + $0x2f0] sm:$0xff]
        %v1460 = vld [vmem:[%s1364 + $0x2f8] sm:$0xff]
        %s1461 = scalar_lea.vmem [#allocation3], 384
        %v1462 = vld [vmem:[%s1461] sm:$0xff]
        %v1463 = vld [vmem:[%s1461 + $0x8] sm:$0xff]
        %v1464 = vld [vmem:[%s1461 + $0x10] sm:$0xff]
        %v1465 = vld [vmem:[%s1461 + $0x18] sm:$0xff]
        %v1466 = vld [vmem:[%s1461 + $0x20] sm:$0xff]
        %v1467 = vld [vmem:[%s1461 + $0x28] sm:$0xff]
        %v1468 = vld [vmem:[%s1461 + $0x30] sm:$0xff]
        %v1469 = vld [vmem:[%s1461 + $0x38] sm:$0xff]
        %v1470 = vld [vmem:[%s1461 + $0x40] sm:$0xff]
        %v1471 = vld [vmem:[%s1461 + $0x48] sm:$0xff]
        %v1472 = vld [vmem:[%s1461 + $0x50] sm:$0xff]
        %v1473 = vld [vmem:[%s1461 + $0x58] sm:$0xff]
        %v1474 = vld [vmem:[%s1461 + $0x60] sm:$0xff]
        %v1475 = vld [vmem:[%s1461 + $0x68] sm:$0xff]
        %v1476 = vld [vmem:[%s1461 + $0x70] sm:$0xff]
        %v1477 = vld [vmem:[%s1461 + $0x78] sm:$0xff]
        %v1478 = vld [vmem:[%s1461 + $0x80] sm:$0xff]
        %v1479 = vld [vmem:[%s1461 + $0x88] sm:$0xff]
        %v1480 = vld [vmem:[%s1461 + $0x90] sm:$0xff]
        %v1481 = vld [vmem:[%s1461 + $0x98] sm:$0xff]
        %v1482 = vld [vmem:[%s1461 + $0xa0] sm:$0xff]
        %v1483 = vld [vmem:[%s1461 + $0xa8] sm:$0xff]
        %v1484 = vld [vmem:[%s1461 + $0xb0] sm:$0xff]
        %v1485 = vld [vmem:[%s1461 + $0xb8] sm:$0xff]
        %v1486 = vld [vmem:[%s1461 + $0xc0] sm:$0xff]
        %v1487 = vld [vmem:[%s1461 + $0xc8] sm:$0xff]
        %v1488 = vld [vmem:[%s1461 + $0xd0] sm:$0xff]
        %v1489 = vld [vmem:[%s1461 + $0xd8] sm:$0xff]
        %v1490 = vld [vmem:[%s1461 + $0xe0] sm:$0xff]
        %v1491 = vld [vmem:[%s1461 + $0xe8] sm:$0xff]
        %v1492 = vld [vmem:[%s1461 + $0xf0] sm:$0xff]
        %v1493 = vld [vmem:[%s1461 + $0xf8] sm:$0xff]
        %v1494 = vld [vmem:[%s1461 + $0x100] sm:$0xff]
        %v1495 = vld [vmem:[%s1461 + $0x108] sm:$0xff]
        %v1496 = vld [vmem:[%s1461 + $0x110] sm:$0xff]
        %v1497 = vld [vmem:[%s1461 + $0x118] sm:$0xff]
        %v1498 = vld [vmem:[%s1461 + $0x120] sm:$0xff]
        %v1499 = vld [vmem:[%s1461 + $0x128] sm:$0xff]
        %v1500 = vld [vmem:[%s1461 + $0x130] sm:$0xff]
        %v1501 = vld [vmem:[%s1461 + $0x138] sm:$0xff]
        %v1502 = vld [vmem:[%s1461 + $0x140] sm:$0xff]
        %v1503 = vld [vmem:[%s1461 + $0x148] sm:$0xff]
        %v1504 = vld [vmem:[%s1461 + $0x150] sm:$0xff]
        %v1505 = vld [vmem:[%s1461 + $0x158] sm:$0xff]
        %v1506 = vld [vmem:[%s1461 + $0x160] sm:$0xff]
        %v1507 = vld [vmem:[%s1461 + $0x168] sm:$0xff]
        %v1508 = vld [vmem:[%s1461 + $0x170] sm:$0xff]
        %v1509 = vld [vmem:[%s1461 + $0x178] sm:$0xff]
        %1510 = vmatprep.subr.mxu0 0.0
        %1511 = vmatpush1.msra.mxu0 %v1462
        %1512 = vmatprep.subr.mxu0 0.0
        %1513 = vmatpush1.msra.mxu0 %v1463
        %1514 = vmatprep.subr.mxu0 0.0
        %1515 = vmatpush1.msra.mxu0 %v1464
        %1516 = vmatprep.subr.mxu0 0.0
        %1517 = vmatpush1.msra.mxu0 %v1465
        %1518 = vmatprep.subr.mxu0 0.0
        %1519 = vmatpush1.msra.mxu0 %v1466
        %1520 = vmatprep.subr.mxu0 0.0
        %1521 = vmatpush1.msra.mxu0 %v1467
        %1522 = vmatprep.subr.mxu0 0.0
        %1523 = vmatpush1.msra.mxu0 %v1468
        %1524 = vmatprep.subr.mxu0 0.0
        %1525 = vmatpush1.msra.mxu0 %v1469
        %1526 = vmatprep.subr.mxu0 0.0
        %1527 = vmatpush1.msra.mxu0 %v1470
        %1528 = vmatprep.subr.mxu0 0.0
        %1529 = vmatpush1.msra.mxu0 %v1471
        %1530 = vmatprep.subr.mxu0 0.0
        %1531 = vmatpush1.msra.mxu0 %v1472
        %1532 = vmatprep.subr.mxu0 0.0
        %1533 = vmatpush1.msra.mxu0 %v1473
        %1534 = vmatprep.subr.mxu0 0.0
        %1535 = vmatpush1.msra.mxu0 %v1474
        %1536 = vmatprep.subr.mxu0 0.0
        %1537 = vmatpush1.msra.mxu0 %v1475
        %1538 = vmatprep.subr.mxu0 0.0
        %1539 = vmatpush1.msra.mxu0 %v1476
        %1540 = vmatprep.subr.mxu0 0.0
        %1541 = vmatpush1.msra.mxu0 %v1477
        %1542 = vmatprep.subr.mxu0 0.0
        %1543 = vmatpush1.msra.mxu0 %v1478
        %1544 = vmatprep.subr.mxu0 0.0
        %1545 = vmatpush1.msra.mxu0 %v1479
        %1546 = vmatprep.subr.mxu0 0.0
        %1547 = vmatpush1.msra.mxu0 %v1480
        %1548 = vmatprep.subr.mxu0 0.0
        %1549 = vmatpush1.msra.mxu0 %v1481
        %1550 = vmatprep.subr.mxu0 0.0
        %1551 = vmatpush1.msra.mxu0 %v1482
        %1552 = vmatprep.subr.mxu0 0.0
        %1553 = vmatpush1.msra.mxu0 %v1483
        %1554 = vmatprep.subr.mxu0 0.0
        %1555 = vmatpush1.msra.mxu0 %v1484
        %1556 = vmatprep.subr.mxu0 0.0
        %1557 = vmatpush1.msra.mxu0 %v1485
        %1558 = vmatprep.subr.mxu0 0.0
        %1559 = vmatpush1.msra.mxu0 %v1486
        %1560 = vmatprep.subr.mxu0 0.0
        %1561 = vmatpush1.msra.mxu0 %v1487
        %1562 = vmatprep.subr.mxu0 0.0
        %1563 = vmatpush1.msra.mxu0 %v1488
        %1564 = vmatprep.subr.mxu0 0.0
        %1565 = vmatpush1.msra.mxu0 %v1489
        %1566 = vmatprep.subr.mxu0 0.0
        %1567 = vmatpush1.msra.mxu0 %v1490
        %1568 = vmatprep.subr.mxu0 0.0
        %1569 = vmatpush1.msra.mxu0 %v1491
        %1570 = vmatprep.subr.mxu0 0.0
        %1571 = vmatpush1.msra.mxu0 %v1492
        %1572 = vmatprep.subr.mxu0 0.0
        %1573 = vmatpush1.msra.mxu0 %v1493
        %1574 = vmatprep.mubr.f32.mxu0 %v1366
        %1575 = vmatmul.mubr.f32.gmra.mrb[0].mxu0 %v1365
        %v1576 = vpop.f32.mrb[0].mxu0
        %v1577 = vadd.f32 0.0, %v1576
        %v1578 = vpop.f32.mrb[0].mxu0
        %1579 = vmatprep.mubr.f32.mxu0 %v1369
        %1580 = vmatmul.mubr.f32.gmra.mrb[0].mxu0 %v1368
        %v1581 = vpop.f32.mrb[0].mxu0
        %v1582 = vadd.f32 0.0, %v1581
        %v1583 = vpop.f32.mrb[0].mxu0
        %1584 = vmatprep.mubr.f32.mxu0 %v1372
        %1585 = vmatmul.mubr.f32.gmra.mrb[0].mxu0 %v1371
        %v1586 = vpop.f32.mrb[0].mxu0
        %v1587 = vadd.f32 0.0, %v1586
        %v1588 = vpop.f32.mrb[0].mxu0
        %1589 = vmatprep.mubr.f32.mxu0 %v1375
        %1590 = vmatmul.mubr.f32.gmra.mrb[0].mxu0 %v1374
        %v1591 = vpop.f32.mrb[0].mxu0
        %v1592 = vadd.f32 0.0, %v1591
        %v1593 = vpop.f32.mrb[0].mxu0
        %1594 = vmatprep.mubr.f32.mxu0 %v1378
        %1595 = vmatmul.mubr.f32.gmra.mrb[0].mxu0 %v1377
        %v1596 = vpop.f32.mrb[0].mxu0
        %v1597 = vadd.f32 0.0, %v1596
        %v1598 = vpop.f32.mrb[0].mxu0
        %1599 = vmatprep.mubr.f32.mxu0 %v1381
        %1600 = vmatmul.mubr.f32.gmra.mrb[0].mxu0 %v1380
        %v1601 = vpop.f32.mrb[0].mxu0
        %v1602 = vadd.f32 0.0, %v1601
        %v1603 = vpop.f32.mrb[0].mxu0
        %1604 = vmatprep.mubr.f32.mxu0 %v1384
        %1605 = vmatmul.mubr.f32.gmra.mrb[0].mxu0 %v1383
        %v1606 = vpop.f32.mrb[0].mxu0
        %v1607 = vadd.f32 0.0, %v1606
        %v1608 = vpop.f32.mrb[0].mxu0
        %1609 = vmatprep.mubr.f32.mxu0 %v1387
        %1610 = vmatmul.mubr.f32.gmra.mrb[0].mxu0 %v1386
        %v1611 = vpop.f32.mrb[0].mxu0
        %v1612 = vadd.f32 0.0, %v1611
        %v1613 = vpop.f32.mrb[0].mxu0
        %1614 = vmatprep.mubr.f32.mxu0 %v1390
        %1615 = vmatmul.mubr.f32.gmra.mrb[0].mxu0 %v1389
        %v1616 = vpop.f32.mrb[0].mxu0
        %v1617 = vadd.f32 0.0, %v1616
        %v1618 = vpop.f32.mrb[0].mxu0
        %1619 = vmatprep.mubr.f32.mxu0 %v1393
        %1620 = vmatmul.mubr.f32.gmra.mrb[0].mxu0 %v1392
        %v1621 = vpop.f32.mrb[0].mxu0
        %v1622 = vadd.f32 0.0, %v1621
        %v1623 = vpop.f32.mrb[0].mxu0
        %1624 = vmatprep.mubr.f32.mxu0 %v1396
        %1625 = vmatmul.mubr.f32.gmra.mrb[0].mxu0 %v1395
        %v1626 = vpop.f32.mrb[0].mxu0
        %v1627 = vadd.f32 0.0, %v1626
        %v1628 = vpop.f32.mrb[0].mxu0
        %1629 = vmatprep.mubr.f32.mxu0 %v1399
        %1630 = vmatmul.mubr.f32.gmra.mrb[0].mxu0 %v1398
        %v1631 = vpop.f32.mrb[0].mxu0
        %v1632 = vadd.f32 0.0, %v1631
        %v1633 = vpop.f32.mrb[0].mxu0
        %1634 = vmatprep.mubr.f32.mxu0 %v1402
        %1635 = vmatmul.mubr.f32.gmra.mrb[0].mxu0 %v1401
        %v1636 = vpop.f32.mrb[0].mxu0
        %v1637 = vadd.f32 0.0, %v1636
        %v1638 = vpop.f32.mrb[0].mxu0
        %1639 = vmatprep.mubr.f32.mxu0 %v1405
        %1640 = vmatmul.mubr.f32.gmra.mrb[0].mxu0 %v1404
        %v1641 = vpop.f32.mrb[0].mxu0
        %v1642 = vadd.f32 0.0, %v1641
        %v1643 = vpop.f32.mrb[0].mxu0
        %1644 = vmatprep.mubr.f32.mxu0 %v1408
        %1645 = vmatmul.mubr.f32.gmra.mrb[0].mxu0 %v1407
        %v1646 = vpop.f32.mrb[0].mxu0
        %v1647 = vadd.f32 0.0, %v1646
        %v1648 = vpop.f32.mrb[0].mxu0
        %1649 = vmatprep.mubr.f32.mxu0 %v1411
        %1650 = vmatmul.mubr.f32.gmra.mrb[0].mxu0 %v1410
        %v1651 = vpop.f32.mrb[0].mxu0
        %v1652 = vadd.f32 0.0, %v1651
        %v1653 = vpop.f32.mrb[0].mxu0
        %1654 = vmatprep.mubr.f32.mxu0 %v1414
        %1655 = vmatmul.mubr.f32.gmra.mrb[0].mxu0 %v1413
        %v1656 = vpop.f32.mrb[0].mxu0
        %v1657 = vadd.f32 0.0, %v1656
        %v1658 = vpop.f32.mrb[0].mxu0
        %1659 = vmatprep.mubr.f32.mxu0 %v1417
        %1660 = vmatmul.mubr.f32.gmra.mrb[0].mxu0 %v1416
        %v1661 = vpop.f32.mrb[0].mxu0
        %v1662 = vadd.f32 0.0, %v1661
        %v1663 = vpop.f32.mrb[0].mxu0
        %1664 = vmatprep.mubr.f32.mxu0 %v1420
        %1665 = vmatmul.mubr.f32.gmra.mrb[0].mxu0 %v1419
        %v1666 = vpop.f32.mrb[0].mxu0
        %v1667 = vadd.f32 0.0, %v1666
        %v1668 = vpop.f32.mrb[0].mxu0
        %1669 = vmatprep.mubr.f32.mxu0 %v1423
        %1670 = vmatmul.mubr.f32.gmra.mrb[0].mxu0 %v1422
        %v1671 = vpop.f32.mrb[0].mxu0
        %v1672 = vadd.f32 0.0, %v1671
        %v1673 = vpop.f32.mrb[0].mxu0
        %1674 = vmatprep.mubr.f32.mxu0 %v1426
        %1675 = vmatmul.mubr.f32.gmra.mrb[0].mxu0 %v1425
        %v1676 = vpop.f32.mrb[0].mxu0
        %v1677 = vadd.f32 0.0, %v1676
        %v1678 = vpop.f32.mrb[0].mxu0
        %1679 = vmatprep.mubr.f32.mxu0 %v1429
        %1680 = vmatmul.mubr.f32.gmra.mrb[0].mxu0 %v1428
        %v1681 = vpop.f32.mrb[0].mxu0
        %v1682 = vadd.f32 0.0, %v1681
        %v1683 = vpop.f32.mrb[0].mxu0
        %1684 = vmatprep.mubr.f32.mxu0 %v1432
        %1685 = vmatmul.mubr.f32.gmra.mrb[0].mxu0 %v1431
        %v1686 = vpop.f32.mrb[0].mxu0
        %v1687 = vadd.f32 0.0, %v1686
        %v1688 = vpop.f32.mrb[0].mxu0
        %1689 = vmatprep.mubr.f32.mxu0 %v1435
        %1690 = vmatmul.mubr.f32.gmra.mrb[0].mxu0 %v1434
        %v1691 = vpop.f32.mrb[0].mxu0
        %v1692 = vadd.f32 0.0, %v1691
        %v1693 = vpop.f32.mrb[0].mxu0
        %1694 = vmatprep.mubr.f32.mxu0 %v1438
        %1695 = vmatmul.mubr.f32.gmra.mrb[0].mxu0 %v1437
        %v1696 = vpop.f32.mrb[0].mxu0
        %v1697 = vadd.f32 0.0, %v1696
        %v1698 = vpop.f32.mrb[0].mxu0
        %1699 = vmatprep.mubr.f32.mxu0 %v1441
        %1700 = vmatmul.mubr.f32.gmra.mrb[0].mxu0 %v1440
        %v1701 = vpop.f32.mrb[0].mxu0
        %v1702 = vadd.f32 0.0, %v1701
        %v1703 = vpop.f32.mrb[0].mxu0
        %1704 = vmatprep.mubr.f32.mxu0 %v1444
        %1705 = vmatmul.mubr.f32.gmra.mrb[0].mxu0 %v1443
        %v1706 = vpop.f32.mrb[0].mxu0
        %v1707 = vadd.f32 0.0, %v1706
        %v1708 = vpop.f32.mrb[0].mxu0
        %1709 = vmatprep.mubr.f32.mxu0 %v1447
        %1710 = vmatmul.mubr.f32.gmra.mrb[0].mxu0 %v1446
        %v1711 = vpop.f32.mrb[0].mxu0
        %v1712 = vadd.f32 0.0, %v1711
        %v1713 = vpop.f32.mrb[0].mxu0
        %1714 = vmatprep.mubr.f32.mxu0 %v1450
        %1715 = vmatmul.mubr.f32.gmra.mrb[0].mxu0 %v1449
        %v1716 = vpop.f32.mrb[0].mxu0
        %v1717 = vadd.f32 0.0, %v1716
        %v1718 = vpop.f32.mrb[0].mxu0
        %1719 = vmatprep.mubr.f32.mxu0 %v1453
        %1720 = vmatmul.mubr.f32.gmra.mrb[0].mxu0 %v1452
        %v1721 = vpop.f32.mrb[0].mxu0
        %v1722 = vadd.f32 0.0, %v1721
        %v1723 = vpop.f32.mrb[0].mxu0
        %1724 = vmatprep.mubr.f32.mxu0 %v1456
        %1725 = vmatmul.mubr.f32.gmra.mrb[0].mxu0 %v1455
        %v1726 = vpop.f32.mrb[0].mxu0
        %v1727 = vadd.f32 0.0, %v1726
        %v1728 = vpop.f32.mrb[0].mxu0
        %1729 = vmatprep.mubr.f32.mxu0 %v1459
        %1730 = vmatmul.mubr.f32.gmra.mrb[0].mxu0 %v1458
        %v1731 = vpop.f32.mrb[0].mxu0
        %v1732 = vadd.f32 0.0, %v1731
        %v1733 = vpop.f32.mrb[0].mxu0
        %1734 = vdwg.mxu0
        %1735 = vmatprep.subr.mxu0 0.0
        %1736 = vmatpush1.msra.mxu0 %v1494
        %1737 = vmatprep.subr.mxu0 0.0
        %1738 = vmatpush1.msra.mxu0 %v1495
        %1739 = vmatprep.subr.mxu0 0.0
        %1740 = vmatpush1.msra.mxu0 %v1496
        %1741 = vmatprep.subr.mxu0 0.0
        %1742 = vmatpush1.msra.mxu0 %v1497
        %1743 = vmatprep.subr.mxu0 0.0
        %1744 = vmatpush1.msra.mxu0 %v1498
        %1745 = vmatprep.subr.mxu0 0.0
        %1746 = vmatpush1.msra.mxu0 %v1499
        %1747 = vmatprep.subr.mxu0 0.0
        %1748 = vmatpush1.msra.mxu0 %v1500
        %1749 = vmatprep.subr.mxu0 0.0
        %1750 = vmatpush1.msra.mxu0 %v1501
        %1751 = vmatprep.subr.mxu0 0.0
        %1752 = vmatpush1.msra.mxu0 %v1502
        %1753 = vmatprep.subr.mxu0 0.0
        %1754 = vmatpush1.msra.mxu0 %v1503
        %1755 = vmatprep.subr.mxu0 0.0
        %1756 = vmatpush1.msra.mxu0 %v1504
        %1757 = vmatprep.subr.mxu0 0.0
        %1758 = vmatpush1.msra.mxu0 %v1505
        %1759 = vmatprep.subr.mxu0 0.0
        %1760 = vmatpush1.msra.mxu0 %v1506
        %1761 = vmatprep.subr.mxu0 0.0
        %1762 = vmatpush1.msra.mxu0 %v1507
        %1763 = vmatprep.subr.mxu0 0.0
        %1764 = vmatpush1.msra.mxu0 %v1508
        %1765 = vmatprep.subr.mxu0 0.0
        %1766 = vmatpush1.msra.mxu0 %v1509
        %1767 = vmatprep.subr.mxu0 0.0
        %1768 = vmatpush1.msra.mxu0 0.0
        %1769 = vmatprep.subr.mxu0 0.0
        %1770 = vmatpush1.msra.mxu0 0.0
        %1771 = vmatprep.subr.mxu0 0.0
        %1772 = vmatpush1.msra.mxu0 0.0
        %1773 = vmatprep.subr.mxu0 0.0
        %1774 = vmatpush1.msra.mxu0 0.0
        %1775 = vmatprep.subr.mxu0 0.0
        %1776 = vmatpush1.msra.mxu0 0.0
        %1777 = vmatprep.subr.mxu0 0.0
        %1778 = vmatpush1.msra.mxu0 0.0
        %1779 = vmatprep.subr.mxu0 0.0
        %1780 = vmatpush1.msra.mxu0 0.0
        %1781 = vmatprep.subr.mxu0 0.0
        %1782 = vmatpush1.msra.mxu0 0.0
        %1783 = vmatprep.subr.mxu0 0.0
        %1784 = vmatpush1.msra.mxu0 0.0
        %1785 = vmatprep.subr.mxu0 0.0
        %1786 = vmatpush1.msra.mxu0 0.0
        %1787 = vmatprep.subr.mxu0 0.0
        %1788 = vmatpush1.msra.mxu0 0.0
        %1789 = vmatprep.subr.mxu0 0.0
        %1790 = vmatpush1.msra.mxu0 0.0
        %1791 = vmatprep.subr.mxu0 0.0
        %1792 = vmatpush1.msra.mxu0 0.0
        %1793 = vmatprep.subr.mxu0 0.0
        %1794 = vmatpush1.msra.mxu0 0.0
        %1795 = vmatprep.subr.mxu0 0.0
        %1796 = vmatpush1.msra.mxu0 0.0
        %1797 = vmatprep.subr.mxu0 0.0
        %1798 = vmatpush1.msra.mxu0 0.0
        %1799 = vmatprep.mubr.f32.mxu0 0.0
        %1800 = vmatmul.mubr.f32.gmra.mrb[0].mxu0 %v1367
        %v1801 = vpop.f32.mrb[0].mxu0
        %v1802 = vadd.f32 %v1577, %v1801
        %v1803 = vpop.f32.mrb[0].mxu0
        %1804 = vmatprep.mubr.f32.mxu0 0.0
        %1805 = vmatmul.mubr.f32.gmra.mrb[0].mxu0 %v1370
        %v1806 = vpop.f32.mrb[0].mxu0
        %v1807 = vadd.f32 %v1582, %v1806
        %v1808 = vpop.f32.mrb[0].mxu0
        %1809 = vmatprep.mubr.f32.mxu0 0.0
        %1810 = vmatmul.mubr.f32.gmra.mrb[0].mxu0 %v1373
        %v1811 = vpop.f32.mrb[0].mxu0
        %v1812 = vadd.f32 %v1587, %v1811
        %v1813 = vpop.f32.mrb[0].mxu0
        %1814 = vmatprep.mubr.f32.mxu0 0.0
        %1815 = vmatmul.mubr.f32.gmra.mrb[0].mxu0 %v1376
        %v1816 = vpop.f32.mrb[0].mxu0
        %v1817 = vadd.f32 %v1592, %v1816
        %v1818 = vpop.f32.mrb[0].mxu0
        %1819 = vmatprep.mubr.f32.mxu0 0.0
        %1820 = vmatmul.mubr.f32.gmra.mrb[0].mxu0 %v1379
        %v1821 = vpop.f32.mrb[0].mxu0
        %v1822 = vadd.f32 %v1597, %v1821
        %v1823 = vpop.f32.mrb[0].mxu0
        %1824 = vmatprep.mubr.f32.mxu0 0.0
        %1825 = vmatmul.mubr.f32.gmra.mrb[0].mxu0 %v1382
        %v1826 = vpop.f32.mrb[0].mxu0
        %v1827 = vadd.f32 %v1602, %v1826
        %v1828 = vpop.f32.mrb[0].mxu0
        %1829 = vmatprep.mubr.f32.mxu0 0.0
        %1830 = vmatmul.mubr.f32.gmra.mrb[0].mxu0 %v1385
        %v1831 = vpop.f32.mrb[0].mxu0
        %v1832 = vadd.f32 %v1607, %v1831
        %v1833 = vpop.f32.mrb[0].mxu0
        %1834 = vmatprep.mubr.f32.mxu0 0.0
        %1835 = vmatmul.mubr.f32.gmra.mrb[0].mxu0 %v1388
        %v1836 = vpop.f32.mrb[0].mxu0
        %v1837 = vadd.f32 %v1612, %v1836
        %v1838 = vpop.f32.mrb[0].mxu0
        %1839 = vmatprep.mubr.f32.mxu0 0.0
        %1840 = vmatmul.mubr.f32.gmra.mrb[0].mxu0 %v1391
        %v1841 = vpop.f32.mrb[0].mxu0
        %v1842 = vadd.f32 %v1617, %v1841
        %v1843 = vpop.f32.mrb[0].mxu0
        %1844 = vmatprep.mubr.f32.mxu0 0.0
        %1845 = vmatmul.mubr.f32.gmra.mrb[0].mxu0 %v1394
        %v1846 = vpop.f32.mrb[0].mxu0
        %v1847 = vadd.f32 %v1622, %v1846
        %v1848 = vpop.f32.mrb[0].mxu0
        %1849 = vmatprep.mubr.f32.mxu0 0.0
        %1850 = vmatmul.mubr.f32.gmra.mrb[0].mxu0 %v1397
        %v1851 = vpop.f32.mrb[0].mxu0
        %v1852 = vadd.f32 %v1627, %v1851
        %v1853 = vpop.f32.mrb[0].mxu0
        %1854 = vmatprep.mubr.f32.mxu0 0.0
        %1855 = vmatmul.mubr.f32.gmra.mrb[0].mxu0 %v1400
        %v1856 = vpop.f32.mrb[0].mxu0
        %v1857 = vadd.f32 %v1632, %v1856
        %v1858 = vpop.f32.mrb[0].mxu0
        %1859 = vmatprep.mubr.f32.mxu0 0.0
        %1860 = vmatmul.mubr.f32.gmra.mrb[0].mxu0 %v1403
        %v1861 = vpop.f32.mrb[0].mxu0
        %v1862 = vadd.f32 %v1637, %v1861
        %v1863 = vpop.f32.mrb[0].mxu0
        %1864 = vmatprep.mubr.f32.mxu0 0.0
        %1865 = vmatmul.mubr.f32.gmra.mrb[0].mxu0 %v1406
        %v1866 = vpop.f32.mrb[0].mxu0
        %v1867 = vadd.f32 %v1642, %v1866
        %v1868 = vpop.f32.mrb[0].mxu0
        %1869 = vmatprep.mubr.f32.mxu0 0.0
        %1870 = vmatmul.mubr.f32.gmra.mrb[0].mxu0 %v1409
        %v1871 = vpop.f32.mrb[0].mxu0
        %v1872 = vadd.f32 %v1647, %v1871
        %v1873 = vpop.f32.mrb[0].mxu0
        %1874 = vmatprep.mubr.f32.mxu0 0.0
        %1875 = vmatmul.mubr.f32.gmra.mrb[0].mxu0 %v1412
        %v1876 = vpop.f32.mrb[0].mxu0
        %v1877 = vadd.f32 %v1652, %v1876
        %v1878 = vpop.f32.mrb[0].mxu0
        %1879 = vmatprep.mubr.f32.mxu0 0.0
        %1880 = vmatmul.mubr.f32.gmra.mrb[0].mxu0 %v1415
        %v1881 = vpop.f32.mrb[0].mxu0
        %v1882 = vadd.f32 %v1657, %v1881
        %v1883 = vpop.f32.mrb[0].mxu0
        %1884 = vmatprep.mubr.f32.mxu0 0.0
        %1885 = vmatmul.mubr.f32.gmra.mrb[0].mxu0 %v1418
        %v1886 = vpop.f32.mrb[0].mxu0
        %v1887 = vadd.f32 %v1662, %v1886
        %v1888 = vpop.f32.mrb[0].mxu0
        %1889 = vmatprep.mubr.f32.mxu0 0.0
        %1890 = vmatmul.mubr.f32.gmra.mrb[0].mxu0 %v1421
        %v1891 = vpop.f32.mrb[0].mxu0
        %v1892 = vadd.f32 %v1667, %v1891
        %v1893 = vpop.f32.mrb[0].mxu0
        %1894 = vmatprep.mubr.f32.mxu0 0.0
        %1895 = vmatmul.mubr.f32.gmra.mrb[0].mxu0 %v1424
        %v1896 = vpop.f32.mrb[0].mxu0
        %v1897 = vadd.f32 %v1672, %v1896
        %v1898 = vpop.f32.mrb[0].mxu0
        %1899 = vmatprep.mubr.f32.mxu0 0.0
        %1900 = vmatmul.mubr.f32.gmra.mrb[0].mxu0 %v1427
        %v1901 = vpop.f32.mrb[0].mxu0
        %v1902 = vadd.f32 %v1677, %v1901
        %v1903 = vpop.f32.mrb[0].mxu0
        %1904 = vmatprep.mubr.f32.mxu0 0.0
        %1905 = vmatmul.mubr.f32.gmra.mrb[0].mxu0 %v1430
        %v1906 = vpop.f32.mrb[0].mxu0
        %v1907 = vadd.f32 %v1682, %v1906
        %v1908 = vpop.f32.mrb[0].mxu0
        %1909 = vmatprep.mubr.f32.mxu0 0.0
        %1910 = vmatmul.mubr.f32.gmra.mrb[0].mxu0 %v1433
        %v1911 = vpop.f32.mrb[0].mxu0
        %v1912 = vadd.f32 %v1687, %v1911
        %v1913 = vpop.f32.mrb[0].mxu0
        %1914 = vmatprep.mubr.f32.mxu0 0.0
        %1915 = vmatmul.mubr.f32.gmra.mrb[0].mxu0 %v1436
        %v1916 = vpop.f32.mrb[0].mxu0
        %v1917 = vadd.f32 %v1692, %v1916
        %v1918 = vpop.f32.mrb[0].mxu0
        %1919 = vmatprep.mubr.f32.mxu0 0.0
        %1920 = vmatmul.mubr.f32.gmra.mrb[0].mxu0 %v1439
        %v1921 = vpop.f32.mrb[0].mxu0
        %v1922 = vadd.f32 %v1697, %v1921
        %v1923 = vpop.f32.mrb[0].mxu0
        %1924 = vmatprep.mubr.f32.mxu0 0.0
        %1925 = vmatmul.mubr.f32.gmra.mrb[0].mxu0 %v1442
        %v1926 = vpop.f32.mrb[0].mxu0
        %v1927 = vadd.f32 %v1702, %v1926
        %v1928 = vpop.f32.mrb[0].mxu0
        %1929 = vmatprep.mubr.f32.mxu0 0.0
        %1930 = vmatmul.mubr.f32.gmra.mrb[0].mxu0 %v1445
        %v1931 = vpop.f32.mrb[0].mxu0
        %v1932 = vadd.f32 %v1707, %v1931
        %v1933 = vpop.f32.mrb[0].mxu0
        %1934 = vmatprep.mubr.f32.mxu0 0.0
        %1935 = vmatmul.mubr.f32.gmra.mrb[0].mxu0 %v1448
        %v1936 = vpop.f32.mrb[0].mxu0
        %v1937 = vadd.f32 %v1712, %v1936
        %v1938 = vpop.f32.mrb[0].mxu0
        %1939 = vmatprep.mubr.f32.mxu0 0.0
        %1940 = vmatmul.mubr.f32.gmra.mrb[0].mxu0 %v1451
        %v1941 = vpop.f32.mrb[0].mxu0
        %v1942 = vadd.f32 %v1717, %v1941
        %v1943 = vpop.f32.mrb[0].mxu0
        %1944 = vmatprep.mubr.f32.mxu0 0.0
        %1945 = vmatmul.mubr.f32.gmra.mrb[0].mxu0 %v1454
        %v1946 = vpop.f32.mrb[0].mxu0
        %v1947 = vadd.f32 %v1722, %v1946
        %v1948 = vpop.f32.mrb[0].mxu0
        %1949 = vmatprep.mubr.f32.mxu0 0.0
        %1950 = vmatmul.mubr.f32.gmra.mrb[0].mxu0 %v1457
        %v1951 = vpop.f32.mrb[0].mxu0
        %v1952 = vadd.f32 %v1727, %v1951
        %v1953 = vpop.f32.mrb[0].mxu0
        %1954 = vmatprep.mubr.f32.mxu0 0.0
        %1955 = vmatmul.mubr.f32.gmra.mrb[0].mxu0 %v1460
        %v1956 = vpop.f32.mrb[0].mxu0
        %v1957 = vadd.f32 %v1732, %v1956
        %v1958 = vpop.f32.mrb[0].mxu0
        %1959 = vdwg.mxu0
        %1960 = vmatprep.subr.mxu0 0.0
        %1961 = vmatpush1.msra.mxu0 %v1316
        %1962 = vmatprep.subr.mxu0 0.0
        %1963 = vmatpush1.msra.mxu0 %v1317
        %1964 = vmatprep.subr.mxu0 0.0
        %1965 = vmatpush1.msra.mxu0 %v1318
        %1966 = vmatprep.subr.mxu0 0.0
        %1967 = vmatpush1.msra.mxu0 %v1319
        %1968 = vmatprep.subr.mxu0 0.0
        %1969 = vmatpush1.msra.mxu0 %v1320
        %1970 = vmatprep.subr.mxu0 0.0
        %1971 = vmatpush1.msra.mxu0 %v1321
        %1972 = vmatprep.subr.mxu0 0.0
        %1973 = vmatpush1.msra.mxu0 %v1322
        %1974 = vmatprep.subr.mxu0 0.0
        %1975 = vmatpush1.msra.mxu0 %v1323
        %1976 = vmatprep.subr.mxu0 0.0
        %1977 = vmatpush1.msra.mxu0 %v1324
        %1978 = vmatprep.subr.mxu0 0.0
        %1979 = vmatpush1.msra.mxu0 %v1325
        %1980 = vmatprep.subr.mxu0 0.0
        %1981 = vmatpush1.msra.mxu0 %v1326
        %1982 = vmatprep.subr.mxu0 0.0
        %1983 = vmatpush1.msra.mxu0 %v1327
        %1984 = vmatprep.subr.mxu0 0.0
        %1985 = vmatpush1.msra.mxu0 %v1328
        %1986 = vmatprep.subr.mxu0 0.0
        %1987 = vmatpush1.msra.mxu0 %v1329
        %1988 = vmatprep.subr.mxu0 0.0
        %1989 = vmatpush1.msra.mxu0 %v1330
        %1990 = vmatprep.subr.mxu0 0.0
        %1991 = vmatpush1.msra.mxu0 %v1331
        %1992 = vmatprep.subr.mxu0 0.0
        %1993 = vmatpush1.msra.mxu0 %v1332
        %1994 = vmatprep.subr.mxu0 0.0
        %1995 = vmatpush1.msra.mxu0 %v1333
        %1996 = vmatprep.subr.mxu0 0.0
        %1997 = vmatpush1.msra.mxu0 %v1334
        %1998 = vmatprep.subr.mxu0 0.0
        %1999 = vmatpush1.msra.mxu0 %v1335
        %2000 = vmatprep.subr.mxu0 0.0
        %2001 = vmatpush1.msra.mxu0 %v1336
        %2002 = vmatprep.subr.mxu0 0.0
        %2003 = vmatpush1.msra.mxu0 %v1337
        %2004 = vmatprep.subr.mxu0 0.0
        %2005 = vmatpush1.msra.mxu0 %v1338
        %2006 = vmatprep.subr.mxu0 0.0
        %2007 = vmatpush1.msra.mxu0 %v1339
        %2008 = vmatprep.subr.mxu0 0.0
        %2009 = vmatpush1.msra.mxu0 %v1340
        %2010 = vmatprep.subr.mxu0 0.0
        %2011 = vmatpush1.msra.mxu0 %v1341
        %2012 = vmatprep.subr.mxu0 0.0
        %2013 = vmatpush1.msra.mxu0 %v1342
        %2014 = vmatprep.subr.mxu0 0.0
        %2015 = vmatpush1.msra.mxu0 %v1343
        %2016 = vmatprep.subr.mxu0 0.0
        %2017 = vmatpush1.msra.mxu0 %v1344
        %2018 = vmatprep.subr.mxu0 0.0
        %2019 = vmatpush1.msra.mxu0 %v1345
        %2020 = vmatprep.subr.mxu0 0.0
        %2021 = vmatpush1.msra.mxu0 %v1346
        %2022 = vmatprep.subr.mxu0 0.0
        %2023 = vmatpush1.msra.mxu0 %v1347
        %2024 = vmatprep.mubr.f32.mxu0 %v1221
        %2025 = vmatmul.mubr.f32.gmra.mrb[0].mxu0 %v1220
        %v2026 = vpop.f32.mrb[0].mxu0
        %v2027 = vadd.f32 %v1802, %v2026
        %v2028 = vpop.f32.mrb[0].mxu0
        %2029 = vmatprep.mubr.f32.mxu0 %v1224
        %2030 = vmatmul.mubr.f32.gmra.mrb[0].mxu0 %v1223
        %v2031 = vpop.f32.mrb[0].mxu0
        %v2032 = vadd.f32 %v1807, %v2031
        %v2033 = vpop.f32.mrb[0].mxu0
        %2034 = vmatprep.mubr.f32.mxu0 %v1227
        %2035 = vmatmul.mubr.f32.gmra.mrb[0].mxu0 %v1226
        %v2036 = vpop.f32.mrb[0].mxu0
        %v2037 = vadd.f32 %v1812, %v2036
        %v2038 = vpop.f32.mrb[0].mxu0
        %2039 = vmatprep.mubr.f32.mxu0 %v1230
        %2040 = vmatmul.mubr.f32.gmra.mrb[0].mxu0 %v1229
        %v2041 = vpop.f32.mrb[0].mxu0
        %v2042 = vadd.f32 %v1817, %v2041
        %v2043 = vpop.f32.mrb[0].mxu0
        %2044 = vmatprep.mubr.f32.mxu0 %v1233
        %2045 = vmatmul.mubr.f32.gmra.mrb[0].mxu0 %v1232
        %v2046 = vpop.f32.mrb[0].mxu0
        %v2047 = vadd.f32 %v1822, %v2046
        %v2048 = vpop.f32.mrb[0].mxu0
        %2049 = vmatprep.mubr.f32.mxu0 %v1236
        %2050 = vmatmul.mubr.f32.gmra.mrb[0].mxu0 %v1235
        %v2051 = vpop.f32.mrb[0].mxu0
        %v2052 = vadd.f32 %v1827, %v2051
        %v2053 = vpop.f32.mrb[0].mxu0
        %2054 = vmatprep.mubr.f32.mxu0 %v1239
        %2055 = vmatmul.mubr.f32.gmra.mrb[0].mxu0 %v1238
        %v2056 = vpop.f32.mrb[0].mxu0
        %v2057 = vadd.f32 %v1832, %v2056
        %v2058 = vpop.f32.mrb[0].mxu0
        %2059 = vmatprep.mubr.f32.mxu0 %v1242
        %2060 = vmatmul.mubr.f32.gmra.mrb[0].mxu0 %v1241
        %v2061 = vpop.f32.mrb[0].mxu0
        %v2062 = vadd.f32 %v1837, %v2061
        %v2063 = vpop.f32.mrb[0].mxu0
        %2064 = vmatprep.mubr.f32.mxu0 %v1245
        %2065 = vmatmul.mubr.f32.gmra.mrb[0].mxu0 %v1244
        %v2066 = vpop.f32.mrb[0].mxu0
        %v2067 = vadd.f32 %v1842, %v2066
        %v2068 = vpop.f32.mrb[0].mxu0
        %2069 = vmatprep.mubr.f32.mxu0 %v1248
        %2070 = vmatmul.mubr.f32.gmra.mrb[0].mxu0 %v1247
        %v2071 = vpop.f32.mrb[0].mxu0
        %v2072 = vadd.f32 %v1847, %v2071
        %v2073 = vpop.f32.mrb[0].mxu0
        %2074 = vmatprep.mubr.f32.mxu0 %v1251
        %2075 = vmatmul.mubr.f32.gmra.mrb[0].mxu0 %v1250
        %v2076 = vpop.f32.mrb[0].mxu0
        %v2077 = vadd.f32 %v1852, %v2076
        %v2078 = vpop.f32.mrb[0].mxu0
        %2079 = vmatprep.mubr.f32.mxu0 %v1254
        %2080 = vmatmul.mubr.f32.gmra.mrb[0].mxu0 %v1253
        %v2081 = vpop.f32.mrb[0].mxu0
        %v2082 = vadd.f32 %v1857, %v2081
        %v2083 = vpop.f32.mrb[0].mxu0
        %2084 = vmatprep.mubr.f32.mxu0 %v1257
        %2085 = vmatmul.mubr.f32.gmra.mrb[0].mxu0 %v1256
        %v2086 = vpop.f32.mrb[0].mxu0
        %v2087 = vadd.f32 %v1862, %v2086
        %v2088 = vpop.f32.mrb[0].mxu0
        %2089 = vmatprep.mubr.f32.mxu0 %v1260
        %2090 = vmatmul.mubr.f32.gmra.mrb[0].mxu0 %v1259
        %v2091 = vpop.f32.mrb[0].mxu0
        %v2092 = vadd.f32 %v1867, %v2091
        %v2093 = vpop.f32.mrb[0].mxu0
        %2094 = vmatprep.mubr.f32.mxu0 %v1263
        %2095 = vmatmul.mubr.f32.gmra.mrb[0].mxu0 %v1262
        %v2096 = vpop.f32.mrb[0].mxu0
        %v2097 = vadd.f32 %v1872, %v2096
        %v2098 = vpop.f32.mrb[0].mxu0
        %2099 = vmatprep.mubr.f32.mxu0 %v1266
        %2100 = vmatmul.mubr.f32.gmra.mrb[0].mxu0 %v1265
        %v2101 = vpop.f32.mrb[0].mxu0
        %v2102 = vadd.f32 %v1877, %v2101
        %v2103 = vpop.f32.mrb[0].mxu0
        %2104 = vmatprep.mubr.f32.mxu0 %v1269
        %2105 = vmatmul.mubr.f32.gmra.mrb[0].mxu0 %v1268
        %v2106 = vpop.f32.mrb[0].mxu0
        %v2107 = vadd.f32 %v1882, %v2106
        %v2108 = vpop.f32.mrb[0].mxu0
        %2109 = vmatprep.mubr.f32.mxu0 %v1272
        %2110 = vmatmul.mubr.f32.gmra.mrb[0].mxu0 %v1271
        %v2111 = vpop.f32.mrb[0].mxu0
        %v2112 = vadd.f32 %v1887, %v2111
        %v2113 = vpop.f32.mrb[0].mxu0
        %2114 = vmatprep.mubr.f32.mxu0 %v1275
        %2115 = vmatmul.mubr.f32.gmra.mrb[0].mxu0 %v1274
        %v2116 = vpop.f32.mrb[0].mxu0
        %v2117 = vadd.f32 %v1892, %v2116
        %v2118 = vpop.f32.mrb[0].mxu0
        %2119 = vmatprep.mubr.f32.mxu0 %v1278
        %2120 = vmatmul.mubr.f32.gmra.mrb[0].mxu0 %v1277
        %v2121 = vpop.f32.mrb[0].mxu0
        %v2122 = vadd.f32 %v1897, %v2121
        %v2123 = vpop.f32.mrb[0].mxu0
        %2124 = vmatprep.mubr.f32.mxu0 %v1281
        %2125 = vmatmul.mubr.f32.gmra.mrb[0].mxu0 %v1280
        %v2126 = vpop.f32.mrb[0].mxu0
        %v2127 = vadd.f32 %v1902, %v2126
        %v2128 = vpop.f32.mrb[0].mxu0
        %2129 = vmatprep.mubr.f32.mxu0 %v1284
        %2130 = vmatmul.mubr.f32.gmra.mrb[0].mxu0 %v1283
        %v2131 = vpop.f32.mrb[0].mxu0
        %v2132 = vadd.f32 %v1907, %v2131
        %v2133 = vpop.f32.mrb[0].mxu0
        %2134 = vmatprep.mubr.f32.mxu0 %v1287
        %2135 = vmatmul.mubr.f32.gmra.mrb[0].mxu0 %v1286
        %v2136 = vpop.f32.mrb[0].mxu0
        %v2137 = vadd.f32 %v1912, %v2136
        %v2138 = vpop.f32.mrb[0].mxu0
        %2139 = vmatprep.mubr.f32.mxu0 %v1290
        %2140 = vmatmul.mubr.f32.gmra.mrb[0].mxu0 %v1289
        %v2141 = vpop.f32.mrb[0].mxu0
        %v2142 = vadd.f32 %v1917, %v2141
        %v2143 = vpop.f32.mrb[0].mxu0
        %2144 = vmatprep.mubr.f32.mxu0 %v1293
        %2145 = vmatmul.mubr.f32.gmra.mrb[0].mxu0 %v1292
        %v2146 = vpop.f32.mrb[0].mxu0
        %v2147 = vadd.f32 %v1922, %v2146
        %v2148 = vpop.f32.mrb[0].mxu0
        %2149 = vmatprep.mubr.f32.mxu0 %v1296
        %2150 = vmatmul.mubr.f32.gmra.mrb[0].mxu0 %v1295
        %v2151 = vpop.f32.mrb[0].mxu0
        %v2152 = vadd.f32 %v1927, %v2151
        %v2153 = vpop.f32.mrb[0].mxu0
        %2154 = vmatprep.mubr.f32.mxu0 %v1299
        %2155 = vmatmul.mubr.f32.gmra.mrb[0].mxu0 %v1298
        %v2156 = vpop.f32.mrb[0].mxu0
        %v2157 = vadd.f32 %v1932, %v2156
        %v2158 = vpop.f32.mrb[0].mxu0
        %2159 = vmatprep.mubr.f32.mxu0 %v1302
        %2160 = vmatmul.mubr.f32.gmra.mrb[0].mxu0 %v1301
        %v2161 = vpop.f32.mrb[0].mxu0
        %v2162 = vadd.f32 %v1937, %v2161
        %v2163 = vpop.f32.mrb[0].mxu0
        %2164 = vmatprep.mubr.f32.mxu0 %v1305
        %2165 = vmatmul.mubr.f32.gmra.mrb[0].mxu0 %v1304
        %v2166 = vpop.f32.mrb[0].mxu0
        %v2167 = vadd.f32 %v1942, %v2166
        %v2168 = vpop.f32.mrb[0].mxu0
        %2169 = vmatprep.mubr.f32.mxu0 %v1308
        %2170 = vmatmul.mubr.f32.gmra.mrb[0].mxu0 %v1307
        %v2171 = vpop.f32.mrb[0].mxu0
        %v2172 = vadd.f32 %v1947, %v2171
        %v2173 = vpop.f32.mrb[0].mxu0
        %2174 = vmatprep.mubr.f32.mxu0 %v1311
        %2175 = vmatmul.mubr.f32.gmra.mrb[0].mxu0 %v1310
        %v2176 = vpop.f32.mrb[0].mxu0
        %v2177 = vadd.f32 %v1952, %v2176
        %v2178 = vpop.f32.mrb[0].mxu0
        %2179 = vmatprep.mubr.f32.mxu0 %v1314
        %2180 = vmatmul.mubr.f32.gmra.mrb[0].mxu0 %v1313
        %v2181 = vpop.f32.mrb[0].mxu0
        %v2182 = vadd.f32 %v1957, %v2181
        %v2183 = vpop.f32.mrb[0].mxu0
        %2184 = vdwg.mxu0
        %2185 = vmatprep.subr.mxu0 0.0
        %2186 = vmatpush1.msra.mxu0 %v1348
        %2187 = vmatprep.subr.mxu0 0.0
        %2188 = vmatpush1.msra.mxu0 %v1349
        %2189 = vmatprep.subr.mxu0 0.0
        %2190 = vmatpush1.msra.mxu0 %v1350
        %2191 = vmatprep.subr.mxu0 0.0
        %2192 = vmatpush1.msra.mxu0 %v1351
        %2193 = vmatprep.subr.mxu0 0.0
        %2194 = vmatpush1.msra.mxu0 %v1352
        %2195 = vmatprep.subr.mxu0 0.0
        %2196 = vmatpush1.msra.mxu0 %v1353
        %2197 = vmatprep.subr.mxu0 0.0
        %2198 = vmatpush1.msra.mxu0 %v1354
        %2199 = vmatprep.subr.mxu0 0.0
        %2200 = vmatpush1.msra.mxu0 %v1355
        %2201 = vmatprep.subr.mxu0 0.0
        %2202 = vmatpush1.msra.mxu0 %v1356
        %2203 = vmatprep.subr.mxu0 0.0
        %2204 = vmatpush1.msra.mxu0 %v1357
        %2205 = vmatprep.subr.mxu0 0.0
        %2206 = vmatpush1.msra.mxu0 %v1358
        %2207 = vmatprep.subr.mxu0 0.0
        %2208 = vmatpush1.msra.mxu0 %v1359
        %2209 = vmatprep.subr.mxu0 0.0
        %2210 = vmatpush1.msra.mxu0 %v1360
        %2211 = vmatprep.subr.mxu0 0.0
        %2212 = vmatpush1.msra.mxu0 %v1361
        %2213 = vmatprep.subr.mxu0 0.0
        %2214 = vmatpush1.msra.mxu0 %v1362
        %2215 = vmatprep.subr.mxu0 0.0
        %2216 = vmatpush1.msra.mxu0 %v1363
        %2217 = vmatprep.subr.mxu0 0.0
        %2218 = vmatpush1.msra.mxu0 0.0
        %2219 = vmatprep.subr.mxu0 0.0
        %2220 = vmatpush1.msra.mxu0 0.0
        %2221 = vmatprep.subr.mxu0 0.0
        %2222 = vmatpush1.msra.mxu0 0.0
        %2223 = vmatprep.subr.mxu0 0.0
        %2224 = vmatpush1.msra.mxu0 0.0
        %2225 = vmatprep.subr.mxu0 0.0
        %2226 = vmatpush1.msra.mxu0 0.0
        %2227 = vmatprep.subr.mxu0 0.0
        %2228 = vmatpush1.msra.mxu0 0.0
        %2229 = vmatprep.subr.mxu0 0.0
        %2230 = vmatpush1.msra.mxu0 0.0
        %2231 = vmatprep.subr.mxu0 0.0
        %2232 = vmatpush1.msra.mxu0 0.0
        %2233 = vmatprep.subr.mxu0 0.0
        %2234 = vmatpush1.msra.mxu0 0.0
        %2235 = vmatprep.subr.mxu0 0.0
        %2236 = vmatpush1.msra.mxu0 0.0
        %2237 = vmatprep.subr.mxu0 0.0
        %2238 = vmatpush1.msra.mxu0 0.0
        %2239 = vmatprep.subr.mxu0 0.0
        %2240 = vmatpush1.msra.mxu0 0.0
        %2241 = vmatprep.subr.mxu0 0.0
        %2242 = vmatpush1.msra.mxu0 0.0
        %2243 = vmatprep.subr.mxu0 0.0
        %2244 = vmatpush1.msra.mxu0 0.0
        %2245 = vmatprep.subr.mxu0 0.0
        %2246 = vmatpush1.msra.mxu0 0.0
        %2247 = vmatprep.subr.mxu0 0.0
        %2248 = vmatpush1.msra.mxu0 0.0
        %2249 = vmatprep.mubr.f32.mxu0 0.0
        %2250 = vmatmul.mubr.f32.gmra.mrb[0].mxu0 %v1222
        %v2251 = vpop.f32.mrb[0].mxu0
        %v2252 = vadd.f32 %v2027, %v2251
        %v2253 = vpop.f32.mrb[0].mxu0
        %2254 = vmatprep.mubr.f32.mxu0 0.0
        %2255 = vmatmul.mubr.f32.gmra.mrb[0].mxu0 %v1225
        %v2256 = vpop.f32.mrb[0].mxu0
        %v2257 = vadd.f32 %v2032, %v2256
        %v2258 = vpop.f32.mrb[0].mxu0
        %2259 = vmatprep.mubr.f32.mxu0 0.0
        %2260 = vmatmul.mubr.f32.gmra.mrb[0].mxu0 %v1228
        %v2261 = vpop.f32.mrb[0].mxu0
        %v2262 = vadd.f32 %v2037, %v2261
        %v2263 = vpop.f32.mrb[0].mxu0
        %2264 = vmatprep.mubr.f32.mxu0 0.0
        %2265 = vmatmul.mubr.f32.gmra.mrb[0].mxu0 %v1231
        %v2266 = vpop.f32.mrb[0].mxu0
        %v2267 = vadd.f32 %v2042, %v2266
        %v2268 = vpop.f32.mrb[0].mxu0
        %2269 = vmatprep.mubr.f32.mxu0 0.0
        %2270 = vmatmul.mubr.f32.gmra.mrb[0].mxu0 %v1234
        %v2271 = vpop.f32.mrb[0].mxu0
        %v2272 = vadd.f32 %v2047, %v2271
        %v2273 = vpop.f32.mrb[0].mxu0
        %2274 = vmatprep.mubr.f32.mxu0 0.0
        %2275 = vmatmul.mubr.f32.gmra.mrb[0].mxu0 %v1237
        %v2276 = vpop.f32.mrb[0].mxu0
        %v2277 = vadd.f32 %v2052, %v2276
        %v2278 = vpop.f32.mrb[0].mxu0
        %2279 = vmatprep.mubr.f32.mxu0 0.0
        %2280 = vmatmul.mubr.f32.gmra.mrb[0].mxu0 %v1240
        %v2281 = vpop.f32.mrb[0].mxu0
        %v2282 = vadd.f32 %v2057, %v2281
        %v2283 = vpop.f32.mrb[0].mxu0
        %2284 = vmatprep.mubr.f32.mxu0 0.0
        %2285 = vmatmul.mubr.f32.gmra.mrb[0].mxu0 %v1243
        %v2286 = vpop.f32.mrb[0].mxu0
        %v2287 = vadd.f32 %v2062, %v2286
        %v2288 = vpop.f32.mrb[0].mxu0
        %2289 = vmatprep.mubr.f32.mxu0 0.0
        %2290 = vmatmul.mubr.f32.gmra.mrb[0].mxu0 %v1246
        %v2291 = vpop.f32.mrb[0].mxu0
        %v2292 = vadd.f32 %v2067, %v2291
        %v2293 = vpop.f32.mrb[0].mxu0
        %2294 = vmatprep.mubr.f32.mxu0 0.0
        %2295 = vmatmul.mubr.f32.gmra.mrb[0].mxu0 %v1249
        %v2296 = vpop.f32.mrb[0].mxu0
        %v2297 = vadd.f32 %v2072, %v2296
        %v2298 = vpop.f32.mrb[0].mxu0
        %2299 = vmatprep.mubr.f32.mxu0 0.0
        %2300 = vmatmul.mubr.f32.gmra.mrb[0].mxu0 %v1252
        %v2301 = vpop.f32.mrb[0].mxu0
        %v2302 = vadd.f32 %v2077, %v2301
        %v2303 = vpop.f32.mrb[0].mxu0
        %2304 = vmatprep.mubr.f32.mxu0 0.0
        %2305 = vmatmul.mubr.f32.gmra.mrb[0].mxu0 %v1255
        %v2306 = vpop.f32.mrb[0].mxu0
        %v2307 = vadd.f32 %v2082, %v2306
        %v2308 = vpop.f32.mrb[0].mxu0
        %2309 = vmatprep.mubr.f32.mxu0 0.0
        %2310 = vmatmul.mubr.f32.gmra.mrb[0].mxu0 %v1258
        %v2311 = vpop.f32.mrb[0].mxu0
        %v2312 = vadd.f32 %v2087, %v2311
        %v2313 = vpop.f32.mrb[0].mxu0
        %2314 = vmatprep.mubr.f32.mxu0 0.0
        %2315 = vmatmul.mubr.f32.gmra.mrb[0].mxu0 %v1261
        %v2316 = vpop.f32.mrb[0].mxu0
        %v2317 = vadd.f32 %v2092, %v2316
        %v2318 = vpop.f32.mrb[0].mxu0
        %2319 = vmatprep.mubr.f32.mxu0 0.0
        %2320 = vmatmul.mubr.f32.gmra.mrb[0].mxu0 %v1264
        %v2321 = vpop.f32.mrb[0].mxu0
        %v2322 = vadd.f32 %v2097, %v2321
        %v2323 = vpop.f32.mrb[0].mxu0
        %2324 = vmatprep.mubr.f32.mxu0 0.0
        %2325 = vmatmul.mubr.f32.gmra.mrb[0].mxu0 %v1267
        %v2326 = vpop.f32.mrb[0].mxu0
        %v2327 = vadd.f32 %v2102, %v2326
        %v2328 = vpop.f32.mrb[0].mxu0
        %2329 = vmatprep.mubr.f32.mxu0 0.0
        %2330 = vmatmul.mubr.f32.gmra.mrb[0].mxu0 %v1270
        %v2331 = vpop.f32.mrb[0].mxu0
        %v2332 = vadd.f32 %v2107, %v2331
        %v2333 = vpop.f32.mrb[0].mxu0
        %2334 = vmatprep.mubr.f32.mxu0 0.0
        %2335 = vmatmul.mubr.f32.gmra.mrb[0].mxu0 %v1273
        %v2336 = vpop.f32.mrb[0].mxu0
        %v2337 = vadd.f32 %v2112, %v2336
        %v2338 = vpop.f32.mrb[0].mxu0
        %2339 = vmatprep.mubr.f32.mxu0 0.0
        %2340 = vmatmul.mubr.f32.gmra.mrb[0].mxu0 %v1276
        %v2341 = vpop.f32.mrb[0].mxu0
        %v2342 = vadd.f32 %v2117, %v2341
        %v2343 = vpop.f32.mrb[0].mxu0
        %2344 = vmatprep.mubr.f32.mxu0 0.0
        %2345 = vmatmul.mubr.f32.gmra.mrb[0].mxu0 %v1279
        %v2346 = vpop.f32.mrb[0].mxu0
        %v2347 = vadd.f32 %v2122, %v2346
        %v2348 = vpop.f32.mrb[0].mxu0
        %2349 = vmatprep.mubr.f32.mxu0 0.0
        %2350 = vmatmul.mubr.f32.gmra.mrb[0].mxu0 %v1282
        %v2351 = vpop.f32.mrb[0].mxu0
        %v2352 = vadd.f32 %v2127, %v2351
        %v2353 = vpop.f32.mrb[0].mxu0
        %2354 = vmatprep.mubr.f32.mxu0 0.0
        %2355 = vmatmul.mubr.f32.gmra.mrb[0].mxu0 %v1285
        %v2356 = vpop.f32.mrb[0].mxu0
        %v2357 = vadd.f32 %v2132, %v2356
        %v2358 = vpop.f32.mrb[0].mxu0
        %2359 = vmatprep.mubr.f32.mxu0 0.0
        %2360 = vmatmul.mubr.f32.gmra.mrb[0].mxu0 %v1288
        %v2361 = vpop.f32.mrb[0].mxu0
        %v2362 = vadd.f32 %v2137, %v2361
        %v2363 = vpop.f32.mrb[0].mxu0
        %2364 = vmatprep.mubr.f32.mxu0 0.0
        %2365 = vmatmul.mubr.f32.gmra.mrb[0].mxu0 %v1291
        %v2366 = vpop.f32.mrb[0].mxu0
        %v2367 = vadd.f32 %v2142, %v2366
        %v2368 = vpop.f32.mrb[0].mxu0
        %2369 = vmatprep.mubr.f32.mxu0 0.0
        %2370 = vmatmul.mubr.f32.gmra.mrb[0].mxu0 %v1294
        %v2371 = vpop.f32.mrb[0].mxu0
        %v2372 = vadd.f32 %v2147, %v2371
        %v2373 = vpop.f32.mrb[0].mxu0
        %2374 = vmatprep.mubr.f32.mxu0 0.0
        %2375 = vmatmul.mubr.f32.gmra.mrb[0].mxu0 %v1297
        %v2376 = vpop.f32.mrb[0].mxu0
        %v2377 = vadd.f32 %v2152, %v2376
        %v2378 = vpop.f32.mrb[0].mxu0
        %2379 = vmatprep.mubr.f32.mxu0 0.0
        %2380 = vmatmul.mubr.f32.gmra.mrb[0].mxu0 %v1300
        %v2381 = vpop.f32.mrb[0].mxu0
        %v2382 = vadd.f32 %v2157, %v2381
        %v2383 = vpop.f32.mrb[0].mxu0
        %2384 = vmatprep.mubr.f32.mxu0 0.0
        %2385 = vmatmul.mubr.f32.gmra.mrb[0].mxu0 %v1303
        %v2386 = vpop.f32.mrb[0].mxu0
        %v2387 = vadd.f32 %v2162, %v2386
        %v2388 = vpop.f32.mrb[0].mxu0
        %2389 = vmatprep.mubr.f32.mxu0 0.0
        %2390 = vmatmul.mubr.f32.gmra.mrb[0].mxu0 %v1306
        %v2391 = vpop.f32.mrb[0].mxu0
        %v2392 = vadd.f32 %v2167, %v2391
        %v2393 = vpop.f32.mrb[0].mxu0
        %2394 = vmatprep.mubr.f32.mxu0 0.0
        %2395 = vmatmul.mubr.f32.gmra.mrb[0].mxu0 %v1309
        %v2396 = vpop.f32.mrb[0].mxu0
        %v2397 = vadd.f32 %v2172, %v2396
        %v2398 = vpop.f32.mrb[0].mxu0
        %2399 = vmatprep.mubr.f32.mxu0 0.0
        %2400 = vmatmul.mubr.f32.gmra.mrb[0].mxu0 %v1312
        %v2401 = vpop.f32.mrb[0].mxu0
        %v2402 = vadd.f32 %v2177, %v2401
        %v2403 = vpop.f32.mrb[0].mxu0
        %2404 = vmatprep.mubr.f32.mxu0 0.0
        %2405 = vmatmul.mubr.f32.gmra.mrb[0].mxu0 %v1315
        %v2406 = vpop.f32.mrb[0].mxu0
        %v2407 = vadd.f32 %v2182, %v2406
        %v2408 = vpop.f32.mrb[0].mxu0
        %2409 = vdwg.mxu0
        %s2410 = scalar_lea.vmem [#allocation2], 96
        %v2411 = vld [vmem:[%s2410] sm:$0xff]
        %v2412 = vld [vmem:[%s2410 + $0x8] sm:$0xff]
        %v2413 = vld [vmem:[%s2410 + $0x10] sm:$0xff]
        %v2414 = vld [vmem:[%s2410 + $0x18] sm:$0xff]
        %v2415 = vld [vmem:[%s2410 + $0x20] sm:$0xff]
        %v2416 = vld [vmem:[%s2410 + $0x28] sm:$0xff]
        %v2417 = vld [vmem:[%s2410 + $0x30] sm:$0xff]
        %v2418 = vld [vmem:[%s2410 + $0x38] sm:$0xff]
        %v2419 = vld [vmem:[%s2410 + $0x40] sm:$0xff]
        %v2420 = vld [vmem:[%s2410 + $0x48] sm:$0xff]
        %v2421 = vld [vmem:[%s2410 + $0x50] sm:$0xff]
        %v2422 = vld [vmem:[%s2410 + $0x58] sm:$0xff]
        %v2423 = vld [vmem:[%s2410 + $0x60] sm:$0xff]
        %v2424 = vld [vmem:[%s2410 + $0x68] sm:$0xff]
        %v2425 = vld [vmem:[%s2410 + $0x70] sm:$0xff]
        %v2426 = vld [vmem:[%s2410 + $0x78] sm:$0xff]
        %v2427 = vld [vmem:[%s2410 + $0x80] sm:$0xff]
        %v2428 = vld [vmem:[%s2410 + $0x88] sm:$0xff]
        %v2429 = vld [vmem:[%s2410 + $0x90] sm:$0xff]
        %v2430 = vld [vmem:[%s2410 + $0x98] sm:$0xff]
        %v2431 = vld [vmem:[%s2410 + $0xa0] sm:$0xff]
        %v2432 = vld [vmem:[%s2410 + $0xa8] sm:$0xff]
        %v2433 = vld [vmem:[%s2410 + $0xb0] sm:$0xff]
        %v2434 = vld [vmem:[%s2410 + $0xb8] sm:$0xff]
        %v2435 = vld [vmem:[%s2410 + $0xc0] sm:$0xff]
        %v2436 = vld [vmem:[%s2410 + $0xc8] sm:$0xff]
        %v2437 = vld [vmem:[%s2410 + $0xd0] sm:$0xff]
        %v2438 = vld [vmem:[%s2410 + $0xd8] sm:$0xff]
        %v2439 = vld [vmem:[%s2410 + $0xe0] sm:$0xff]
        %v2440 = vld [vmem:[%s2410 + $0xe8] sm:$0xff]
        %v2441 = vld [vmem:[%s2410 + $0xf0] sm:$0xff]
        %v2442 = vld [vmem:[%s2410 + $0xf8] sm:$0xff]
        %v2443 = vld [vmem:[%s2410 + $0x100] sm:$0xff]
        %v2444 = vld [vmem:[%s2410 + $0x108] sm:$0xff]
        %v2445 = vld [vmem:[%s2410 + $0x110] sm:$0xff]
        %v2446 = vld [vmem:[%s2410 + $0x118] sm:$0xff]
        %v2447 = vld [vmem:[%s2410 + $0x120] sm:$0xff]
        %v2448 = vld [vmem:[%s2410 + $0x128] sm:$0xff]
        %v2449 = vld [vmem:[%s2410 + $0x130] sm:$0xff]
        %v2450 = vld [vmem:[%s2410 + $0x138] sm:$0xff]
        %v2451 = vld [vmem:[%s2410 + $0x140] sm:$0xff]
        %v2452 = vld [vmem:[%s2410 + $0x148] sm:$0xff]
        %v2453 = vld [vmem:[%s2410 + $0x150] sm:$0xff]
        %v2454 = vld [vmem:[%s2410 + $0x158] sm:$0xff]
        %v2455 = vld [vmem:[%s2410 + $0x160] sm:$0xff]
        %v2456 = vld [vmem:[%s2410 + $0x168] sm:$0xff]
        %v2457 = vld [vmem:[%s2410 + $0x170] sm:$0xff]
        %v2458 = vld [vmem:[%s2410 + $0x178] sm:$0xff]
        %v2459 = vld [vmem:[%s2410 + $0x180] sm:$0xff]
        %v2460 = vld [vmem:[%s2410 + $0x188] sm:$0xff]
        %v2461 = vld [vmem:[%s2410 + $0x190] sm:$0xff]
        %v2462 = vld [vmem:[%s2410 + $0x198] sm:$0xff]
        %v2463 = vld [vmem:[%s2410 + $0x1a0] sm:$0xff]
        %v2464 = vld [vmem:[%s2410 + $0x1a8] sm:$0xff]
        %v2465 = vld [vmem:[%s2410 + $0x1b0] sm:$0xff]
        %v2466 = vld [vmem:[%s2410 + $0x1b8] sm:$0xff]
        %v2467 = vld [vmem:[%s2410 + $0x1c0] sm:$0xff]
        %v2468 = vld [vmem:[%s2410 + $0x1c8] sm:$0xff]
        %v2469 = vld [vmem:[%s2410 + $0x1d0] sm:$0xff]
        %v2470 = vld [vmem:[%s2410 + $0x1d8] sm:$0xff]
        %v2471 = vld [vmem:[%s2410 + $0x1e0] sm:$0xff]
        %v2472 = vld [vmem:[%s2410 + $0x1e8] sm:$0xff]
        %v2473 = vld [vmem:[%s2410 + $0x1f0] sm:$0xff]
        %v2474 = vld [vmem:[%s2410 + $0x1f8] sm:$0xff]
        %v2475 = vld [vmem:[%s2410 + $0x200] sm:$0xff]
        %v2476 = vld [vmem:[%s2410 + $0x208] sm:$0xff]
        %v2477 = vld [vmem:[%s2410 + $0x210] sm:$0xff]
        %v2478 = vld [vmem:[%s2410 + $0x218] sm:$0xff]
        %v2479 = vld [vmem:[%s2410 + $0x220] sm:$0xff]
        %v2480 = vld [vmem:[%s2410 + $0x228] sm:$0xff]
        %v2481 = vld [vmem:[%s2410 + $0x230] sm:$0xff]
        %v2482 = vld [vmem:[%s2410 + $0x238] sm:$0xff]
        %v2483 = vld [vmem:[%s2410 + $0x240] sm:$0xff]
        %v2484 = vld [vmem:[%s2410 + $0x248] sm:$0xff]
        %v2485 = vld [vmem:[%s2410 + $0x250] sm:$0xff]
        %v2486 = vld [vmem:[%s2410 + $0x258] sm:$0xff]
        %v2487 = vld [vmem:[%s2410 + $0x260] sm:$0xff]
        %v2488 = vld [vmem:[%s2410 + $0x268] sm:$0xff]
        %v2489 = vld [vmem:[%s2410 + $0x270] sm:$0xff]
        %v2490 = vld [vmem:[%s2410 + $0x278] sm:$0xff]
        %v2491 = vld [vmem:[%s2410 + $0x280] sm:$0xff]
        %v2492 = vld [vmem:[%s2410 + $0x288] sm:$0xff]
        %v2493 = vld [vmem:[%s2410 + $0x290] sm:$0xff]
        %v2494 = vld [vmem:[%s2410 + $0x298] sm:$0xff]
        %v2495 = vld [vmem:[%s2410 + $0x2a0] sm:$0xff]
        %v2496 = vld [vmem:[%s2410 + $0x2a8] sm:$0xff]
        %v2497 = vld [vmem:[%s2410 + $0x2b0] sm:$0xff]
        %v2498 = vld [vmem:[%s2410 + $0x2b8] sm:$0xff]
        %v2499 = vld [vmem:[%s2410 + $0x2c0] sm:$0xff]
        %v2500 = vld [vmem:[%s2410 + $0x2c8] sm:$0xff]
        %v2501 = vld [vmem:[%s2410 + $0x2d0] sm:$0xff]
        %v2502 = vld [vmem:[%s2410 + $0x2d8] sm:$0xff]
        %v2503 = vld [vmem:[%s2410 + $0x2e0] sm:$0xff]
        %v2504 = vld [vmem:[%s2410 + $0x2e8] sm:$0xff]
        %v2505 = vld [vmem:[%s2410 + $0x2f0] sm:$0xff]
        %v2506 = vld [vmem:[%s2410 + $0x2f8] sm:$0xff]
        %s2507 = scalar_lea.vmem [#allocation3], 768
        %v2508 = vld [vmem:[%s2507] sm:$0xff]
        %v2509 = vld [vmem:[%s2507 + $0x8] sm:$0xff]
        %v2510 = vld [vmem:[%s2507 + $0x10] sm:$0xff]
        %v2511 = vld [vmem:[%s2507 + $0x18] sm:$0xff]
        %v2512 = vld [vmem:[%s2507 + $0x20] sm:$0xff]
        %v2513 = vld [vmem:[%s2507 + $0x28] sm:$0xff]
        %v2514 = vld [vmem:[%s2507 + $0x30] sm:$0xff]
        %v2515 = vld [vmem:[%s2507 + $0x38] sm:$0xff]
        %v2516 = vld [vmem:[%s2507 + $0x40] sm:$0xff]
        %v2517 = vld [vmem:[%s2507 + $0x48] sm:$0xff]
        %v2518 = vld [vmem:[%s2507 + $0x50] sm:$0xff]
        %v2519 = vld [vmem:[%s2507 + $0x58] sm:$0xff]
        %v2520 = vld [vmem:[%s2507 + $0x60] sm:$0xff]
        %v2521 = vld [vmem:[%s2507 + $0x68] sm:$0xff]
        %v2522 = vld [vmem:[%s2507 + $0x70] sm:$0xff]
        %v2523 = vld [vmem:[%s2507 + $0x78] sm:$0xff]
        %v2524 = vld [vmem:[%s2507 + $0x80] sm:$0xff]
        %v2525 = vld [vmem:[%s2507 + $0x88] sm:$0xff]
        %v2526 = vld [vmem:[%s2507 + $0x90] sm:$0xff]
        %v2527 = vld [vmem:[%s2507 + $0x98] sm:$0xff]
        %v2528 = vld [vmem:[%s2507 + $0xa0] sm:$0xff]
        %v2529 = vld [vmem:[%s2507 + $0xa8] sm:$0xff]
        %v2530 = vld [vmem:[%s2507 + $0xb0] sm:$0xff]
        %v2531 = vld [vmem:[%s2507 + $0xb8] sm:$0xff]
        %v2532 = vld [vmem:[%s2507 + $0xc0] sm:$0xff]
        %v2533 = vld [vmem:[%s2507 + $0xc8] sm:$0xff]
        %v2534 = vld [vmem:[%s2507 + $0xd0] sm:$0xff]
        %v2535 = vld [vmem:[%s2507 + $0xd8] sm:$0xff]
        %v2536 = vld [vmem:[%s2507 + $0xe0] sm:$0xff]
        %v2537 = vld [vmem:[%s2507 + $0xe8] sm:$0xff]
        %v2538 = vld [vmem:[%s2507 + $0xf0] sm:$0xff]
        %v2539 = vld [vmem:[%s2507 + $0xf8] sm:$0xff]
        %v2540 = vld [vmem:[%s2507 + $0x100] sm:$0xff]
        %v2541 = vld [vmem:[%s2507 + $0x108] sm:$0xff]
        %v2542 = vld [vmem:[%s2507 + $0x110] sm:$0xff]
        %v2543 = vld [vmem:[%s2507 + $0x118] sm:$0xff]
        %v2544 = vld [vmem:[%s2507 + $0x120] sm:$0xff]
        %v2545 = vld [vmem:[%s2507 + $0x128] sm:$0xff]
        %v2546 = vld [vmem:[%s2507 + $0x130] sm:$0xff]
        %v2547 = vld [vmem:[%s2507 + $0x138] sm:$0xff]
        %v2548 = vld [vmem:[%s2507 + $0x140] sm:$0xff]
        %v2549 = vld [vmem:[%s2507 + $0x148] sm:$0xff]
        %v2550 = vld [vmem:[%s2507 + $0x150] sm:$0xff]
        %v2551 = vld [vmem:[%s2507 + $0x158] sm:$0xff]
        %v2552 = vld [vmem:[%s2507 + $0x160] sm:$0xff]
        %v2553 = vld [vmem:[%s2507 + $0x168] sm:$0xff]
        %v2554 = vld [vmem:[%s2507 + $0x170] sm:$0xff]
        %v2555 = vld [vmem:[%s2507 + $0x178] sm:$0xff]
        %2556 = vmatprep.subr.mxu0 0.0
        %2557 = vmatpush1.msra.mxu0 %v2508
        %2558 = vmatprep.subr.mxu0 0.0
        %2559 = vmatpush1.msra.mxu0 %v2509
        %2560 = vmatprep.subr.mxu0 0.0
        %2561 = vmatpush1.msra.mxu0 %v2510
        %2562 = vmatprep.subr.mxu0 0.0
        %2563 = vmatpush1.msra.mxu0 %v2511
        %2564 = vmatprep.subr.mxu0 0.0
        %2565 = vmatpush1.msra.mxu0 %v2512
        %2566 = vmatprep.subr.mxu0 0.0
        %2567 = vmatpush1.msra.mxu0 %v2513
        %2568 = vmatprep.subr.mxu0 0.0
        %2569 = vmatpush1.msra.mxu0 %v2514
        %2570 = vmatprep.subr.mxu0 0.0
        %2571 = vmatpush1.msra.mxu0 %v2515
        %2572 = vmatprep.subr.mxu0 0.0
        %2573 = vmatpush1.msra.mxu0 %v2516
        %2574 = vmatprep.subr.mxu0 0.0
        %2575 = vmatpush1.msra.mxu0 %v2517
        %2576 = vmatprep.subr.mxu0 0.0
        %2577 = vmatpush1.msra.mxu0 %v2518
        %2578 = vmatprep.subr.mxu0 0.0
        %2579 = vmatpush1.msra.mxu0 %v2519
        %2580 = vmatprep.subr.mxu0 0.0
        %2581 = vmatpush1.msra.mxu0 %v2520
        %2582 = vmatprep.subr.mxu0 0.0
        %2583 = vmatpush1.msra.mxu0 %v2521
        %2584 = vmatprep.subr.mxu0 0.0
        %2585 = vmatpush1.msra.mxu0 %v2522
        %2586 = vmatprep.subr.mxu0 0.0
        %2587 = vmatpush1.msra.mxu0 %v2523
        %2588 = vmatprep.subr.mxu0 0.0
        %2589 = vmatpush1.msra.mxu0 %v2524
        %2590 = vmatprep.subr.mxu0 0.0
        %2591 = vmatpush1.msra.mxu0 %v2525
        %2592 = vmatprep.subr.mxu0 0.0
        %2593 = vmatpush1.msra.mxu0 %v2526
        %2594 = vmatprep.subr.mxu0 0.0
        %2595 = vmatpush1.msra.mxu0 %v2527
        %2596 = vmatprep.subr.mxu0 0.0
        %2597 = vmatpush1.msra.mxu0 %v2528
        %2598 = vmatprep.subr.mxu0 0.0
        %2599 = vmatpush1.msra.mxu0 %v2529
        %2600 = vmatprep.subr.mxu0 0.0
        %2601 = vmatpush1.msra.mxu0 %v2530
        %2602 = vmatprep.subr.mxu0 0.0
        %2603 = vmatpush1.msra.mxu0 %v2531
        %2604 = vmatprep.subr.mxu0 0.0
        %2605 = vmatpush1.msra.mxu0 %v2532
        %2606 = vmatprep.subr.mxu0 0.0
        %2607 = vmatpush1.msra.mxu0 %v2533
        %2608 = vmatprep.subr.mxu0 0.0
        %2609 = vmatpush1.msra.mxu0 %v2534
        %2610 = vmatprep.subr.mxu0 0.0
        %2611 = vmatpush1.msra.mxu0 %v2535
        %2612 = vmatprep.subr.mxu0 0.0
        %2613 = vmatpush1.msra.mxu0 %v2536
        %2614 = vmatprep.subr.mxu0 0.0
        %2615 = vmatpush1.msra.mxu0 %v2537
        %2616 = vmatprep.subr.mxu0 0.0
        %2617 = vmatpush1.msra.mxu0 %v2538
        %2618 = vmatprep.subr.mxu0 0.0
        %2619 = vmatpush1.msra.mxu0 %v2539
        %2620 = vmatprep.mubr.f32.mxu0 %v2412
        %2621 = vmatmul.mubr.f32.gmra.mrb[0].mxu0 %v2411
        %v2622 = vpop.f32.mrb[0].mxu0
        %v2623 = vadd.f32 0.0, %v2622
        %v2624 = vpop.f32.mrb[0].mxu0
        %2625 = vmatprep.mubr.f32.mxu0 %v2415
        %2626 = vmatmul.mubr.f32.gmra.mrb[0].mxu0 %v2414
        %v2627 = vpop.f32.mrb[0].mxu0
        %v2628 = vadd.f32 0.0, %v2627
        %v2629 = vpop.f32.mrb[0].mxu0
        %2630 = vmatprep.mubr.f32.mxu0 %v2418
        %2631 = vmatmul.mubr.f32.gmra.mrb[0].mxu0 %v2417
        %v2632 = vpop.f32.mrb[0].mxu0
        %v2633 = vadd.f32 0.0, %v2632
        %v2634 = vpop.f32.mrb[0].mxu0
        %2635 = vmatprep.mubr.f32.mxu0 %v2421
        %2636 = vmatmul.mubr.f32.gmra.mrb[0].mxu0 %v2420
        %v2637 = vpop.f32.mrb[0].mxu0
        %v2638 = vadd.f32 0.0, %v2637
        %v2639 = vpop.f32.mrb[0].mxu0
        %2640 = vmatprep.mubr.f32.mxu0 %v2424
        %2641 = vmatmul.mubr.f32.gmra.mrb[0].mxu0 %v2423
        %v2642 = vpop.f32.mrb[0].mxu0
        %v2643 = vadd.f32 0.0, %v2642
        %v2644 = vpop.f32.mrb[0].mxu0
        %2645 = vmatprep.mubr.f32.mxu0 %v2427
        %2646 = vmatmul.mubr.f32.gmra.mrb[0].mxu0 %v2426
        %v2647 = vpop.f32.mrb[0].mxu0
        %v2648 = vadd.f32 0.0, %v2647
        %v2649 = vpop.f32.mrb[0].mxu0
        %2650 = vmatprep.mubr.f32.mxu0 %v2430
        %2651 = vmatmul.mubr.f32.gmra.mrb[0].mxu0 %v2429
        %v2652 = vpop.f32.mrb[0].mxu0
        %v2653 = vadd.f32 0.0, %v2652
        %v2654 = vpop.f32.mrb[0].mxu0
        %2655 = vmatprep.mubr.f32.mxu0 %v2433
        %2656 = vmatmul.mubr.f32.gmra.mrb[0].mxu0 %v2432
        %v2657 = vpop.f32.mrb[0].mxu0
        %v2658 = vadd.f32 0.0, %v2657
        %v2659 = vpop.f32.mrb[0].mxu0
        %2660 = vmatprep.mubr.f32.mxu0 %v2436
        %2661 = vmatmul.mubr.f32.gmra.mrb[0].mxu0 %v2435
        %v2662 = vpop.f32.mrb[0].mxu0
        %v2663 = vadd.f32 0.0, %v2662
        %v2664 = vpop.f32.mrb[0].mxu0
        %2665 = vmatprep.mubr.f32.mxu0 %v2439
        %2666 = vmatmul.mubr.f32.gmra.mrb[0].mxu0 %v2438
        %v2667 = vpop.f32.mrb[0].mxu0
        %v2668 = vadd.f32 0.0, %v2667
        %v2669 = vpop.f32.mrb[0].mxu0
        %2670 = vmatprep.mubr.f32.mxu0 %v2442
        %2671 = vmatmul.mubr.f32.gmra.mrb[0].mxu0 %v2441
        %v2672 = vpop.f32.mrb[0].mxu0
        %v2673 = vadd.f32 0.0, %v2672
        %v2674 = vpop.f32.mrb[0].mxu0
        %2675 = vmatprep.mubr.f32.mxu0 %v2445
        %2676 = vmatmul.mubr.f32.gmra.mrb[0].mxu0 %v2444
        %v2677 = vpop.f32.mrb[0].mxu0
        %v2678 = vadd.f32 0.0, %v2677
        %v2679 = vpop.f32.mrb[0].mxu0
        %2680 = vmatprep.mubr.f32.mxu0 %v2448
        %2681 = vmatmul.mubr.f32.gmra.mrb[0].mxu0 %v2447
        %v2682 = vpop.f32.mrb[0].mxu0
        %v2683 = vadd.f32 0.0, %v2682
        %v2684 = vpop.f32.mrb[0].mxu0
        %2685 = vmatprep.mubr.f32.mxu0 %v2451
        %2686 = vmatmul.mubr.f32.gmra.mrb[0].mxu0 %v2450
        %v2687 = vpop.f32.mrb[0].mxu0
        %v2688 = vadd.f32 0.0, %v2687
        %v2689 = vpop.f32.mrb[0].mxu0
        %2690 = vmatprep.mubr.f32.mxu0 %v2454
        %2691 = vmatmul.mubr.f32.gmra.mrb[0].mxu0 %v2453
        %v2692 = vpop.f32.mrb[0].mxu0
        %v2693 = vadd.f32 0.0, %v2692
        %v2694 = vpop.f32.mrb[0].mxu0
        %2695 = vmatprep.mubr.f32.mxu0 %v2457
        %2696 = vmatmul.mubr.f32.gmra.mrb[0].mxu0 %v2456
        %v2697 = vpop.f32.mrb[0].mxu0
        %v2698 = vadd.f32 0.0, %v2697
        %v2699 = vpop.f32.mrb[0].mxu0
        %2700 = vmatprep.mubr.f32.mxu0 %v2460
        %2701 = vmatmul.mubr.f32.gmra.mrb[0].mxu0 %v2459
        %v2702 = vpop.f32.mrb[0].mxu0
        %v2703 = vadd.f32 0.0, %v2702
        %v2704 = vpop.f32.mrb[0].mxu0
        %2705 = vmatprep.mubr.f32.mxu0 %v2463
        %2706 = vmatmul.mubr.f32.gmra.mrb[0].mxu0 %v2462
        %v2707 = vpop.f32.mrb[0].mxu0
        %v2708 = vadd.f32 0.0, %v2707
        %v2709 = vpop.f32.mrb[0].mxu0
        %2710 = vmatprep.mubr.f32.mxu0 %v2466
        %2711 = vmatmul.mubr.f32.gmra.mrb[0].mxu0 %v2465
        %v2712 = vpop.f32.mrb[0].mxu0
        %v2713 = vadd.f32 0.0, %v2712
        %v2714 = vpop.f32.mrb[0].mxu0
        %2715 = vmatprep.mubr.f32.mxu0 %v2469
        %2716 = vmatmul.mubr.f32.gmra.mrb[0].mxu0 %v2468
        %v2717 = vpop.f32.mrb[0].mxu0
        %v2718 = vadd.f32 0.0, %v2717
        %v2719 = vpop.f32.mrb[0].mxu0
        %2720 = vmatprep.mubr.f32.mxu0 %v2472
        %2721 = vmatmul.mubr.f32.gmra.mrb[0].mxu0 %v2471
        %v2722 = vpop.f32.mrb[0].mxu0
        %v2723 = vadd.f32 0.0, %v2722
        %v2724 = vpop.f32.mrb[0].mxu0
        %2725 = vmatprep.mubr.f32.mxu0 %v2475
        %2726 = vmatmul.mubr.f32.gmra.mrb[0].mxu0 %v2474
        %v2727 = vpop.f32.mrb[0].mxu0
        %v2728 = vadd.f32 0.0, %v2727
        %v2729 = vpop.f32.mrb[0].mxu0
        %2730 = vmatprep.mubr.f32.mxu0 %v2478
        %2731 = vmatmul.mubr.f32.gmra.mrb[0].mxu0 %v2477
        %v2732 = vpop.f32.mrb[0].mxu0
        %v2733 = vadd.f32 0.0, %v2732
        %v2734 = vpop.f32.mrb[0].mxu0
        %2735 = vmatprep.mubr.f32.mxu0 %v2481
        %2736 = vmatmul.mubr.f32.gmra.mrb[0].mxu0 %v2480
        %v2737 = vpop.f32.mrb[0].mxu0
        %v2738 = vadd.f32 0.0, %v2737
        %v2739 = vpop.f32.mrb[0].mxu0
        %2740 = vmatprep.mubr.f32.mxu0 %v2484
        %2741 = vmatmul.mubr.f32.gmra.mrb[0].mxu0 %v2483
        %v2742 = vpop.f32.mrb[0].mxu0
        %v2743 = vadd.f32 0.0, %v2742
        %v2744 = vpop.f32.mrb[0].mxu0
        %2745 = vmatprep.mubr.f32.mxu0 %v2487
        %2746 = vmatmul.mubr.f32.gmra.mrb[0].mxu0 %v2486
        %v2747 = vpop.f32.mrb[0].mxu0
        %v2748 = vadd.f32 0.0, %v2747
        %v2749 = vpop.f32.mrb[0].mxu0
        %2750 = vmatprep.mubr.f32.mxu0 %v2490
        %2751 = vmatmul.mubr.f32.gmra.mrb[0].mxu0 %v2489
        %v2752 = vpop.f32.mrb[0].mxu0
        %v2753 = vadd.f32 0.0, %v2752
        %v2754 = vpop.f32.mrb[0].mxu0
        %2755 = vmatprep.mubr.f32.mxu0 %v2493
        %2756 = vmatmul.mubr.f32.gmra.mrb[0].mxu0 %v2492
        %v2757 = vpop.f32.mrb[0].mxu0
        %v2758 = vadd.f32 0.0, %v2757
        %v2759 = vpop.f32.mrb[0].mxu0
        %2760 = vmatprep.mubr.f32.mxu0 %v2496
        %2761 = vmatmul.mubr.f32.gmra.mrb[0].mxu0 %v2495
        %v2762 = vpop.f32.mrb[0].mxu0
        %v2763 = vadd.f32 0.0, %v2762
        %v2764 = vpop.f32.mrb[0].mxu0
        %2765 = vmatprep.mubr.f32.mxu0 %v2499
        %2766 = vmatmul.mubr.f32.gmra.mrb[0].mxu0 %v2498
        %v2767 = vpop.f32.mrb[0].mxu0
        %v2768 = vadd.f32 0.0, %v2767
        %v2769 = vpop.f32.mrb[0].mxu0
        %2770 = vmatprep.mubr.f32.mxu0 %v2502
        %2771 = vmatmul.mubr.f32.gmra.mrb[0].mxu0 %v2501
        %v2772 = vpop.f32.mrb[0].mxu0
        %v2773 = vadd.f32 0.0, %v2772
        %v2774 = vpop.f32.mrb[0].mxu0
        %2775 = vmatprep.mubr.f32.mxu0 %v2505
        %2776 = vmatmul.mubr.f32.gmra.mrb[0].mxu0 %v2504
        %v2777 = vpop.f32.mrb[0].mxu0
        %v2778 = vadd.f32 0.0, %v2777
        %v2779 = vpop.f32.mrb[0].mxu0
        %2780 = vdwg.mxu0
        %2781 = vmatprep.subr.mxu0 0.0
        %2782 = vmatpush1.msra.mxu0 %v2540
        %2783 = vmatprep.subr.mxu0 0.0
        %2784 = vmatpush1.msra.mxu0 %v2541
        %2785 = vmatprep.subr.mxu0 0.0
        %2786 = vmatpush1.msra.mxu0 %v2542
        %2787 = vmatprep.subr.mxu0 0.0
        %2788 = vmatpush1.msra.mxu0 %v2543
        %2789 = vmatprep.subr.mxu0 0.0
        %2790 = vmatpush1.msra.mxu0 %v2544
        %2791 = vmatprep.subr.mxu0 0.0
        %2792 = vmatpush1.msra.mxu0 %v2545
        %2793 = vmatprep.subr.mxu0 0.0
        %2794 = vmatpush1.msra.mxu0 %v2546
        %2795 = vmatprep.subr.mxu0 0.0
        %2796 = vmatpush1.msra.mxu0 %v2547
        %2797 = vmatprep.subr.mxu0 0.0
        %2798 = vmatpush1.msra.mxu0 %v2548
        %2799 = vmatprep.subr.mxu0 0.0
        %2800 = vmatpush1.msra.mxu0 %v2549
        %2801 = vmatprep.subr.mxu0 0.0
        %2802 = vmatpush1.msra.mxu0 %v2550
        %2803 = vmatprep.subr.mxu0 0.0
        %2804 = vmatpush1.msra.mxu0 %v2551
        %2805 = vmatprep.subr.mxu0 0.0
        %2806 = vmatpush1.msra.mxu0 %v2552
        %2807 = vmatprep.subr.mxu0 0.0
        %2808 = vmatpush1.msra.mxu0 %v2553
        %2809 = vmatprep.subr.mxu0 0.0
        %2810 = vmatpush1.msra.mxu0 %v2554
        %2811 = vmatprep.subr.mxu0 0.0
        %2812 = vmatpush1.msra.mxu0 %v2555
        %2813 = vmatprep.subr.mxu0 0.0
        %2814 = vmatpush1.msra.mxu0 0.0
        %2815 = vmatprep.subr.mxu0 0.0
        %2816 = vmatpush1.msra.mxu0 0.0
        %2817 = vmatprep.subr.mxu0 0.0
        %2818 = vmatpush1.msra.mxu0 0.0
        %2819 = vmatprep.subr.mxu0 0.0
        %2820 = vmatpush1.msra.mxu0 0.0
        %2821 = vmatprep.subr.mxu0 0.0
        %2822 = vmatpush1.msra.mxu0 0.0
        %2823 = vmatprep.subr.mxu0 0.0
        %2824 = vmatpush1.msra.mxu0 0.0
        %2825 = vmatprep.subr.mxu0 0.0
        %2826 = vmatpush1.msra.mxu0 0.0
        %2827 = vmatprep.subr.mxu0 0.0
        %2828 = vmatpush1.msra.mxu0 0.0
        %2829 = vmatprep.subr.mxu0 0.0
        %2830 = vmatpush1.msra.mxu0 0.0
        %2831 = vmatprep.subr.mxu0 0.0
        %2832 = vmatpush1.msra.mxu0 0.0
        %2833 = vmatprep.subr.mxu0 0.0
        %2834 = vmatpush1.msra.mxu0 0.0
        %2835 = vmatprep.subr.mxu0 0.0
        %2836 = vmatpush1.msra.mxu0 0.0
        %2837 = vmatprep.subr.mxu0 0.0
        %2838 = vmatpush1.msra.mxu0 0.0
        %2839 = vmatprep.subr.mxu0 0.0
        %2840 = vmatpush1.msra.mxu0 0.0
        %2841 = vmatprep.subr.mxu0 0.0
        %2842 = vmatpush1.msra.mxu0 0.0
        %2843 = vmatprep.subr.mxu0 0.0
        %2844 = vmatpush1.msra.mxu0 0.0
        %2845 = vmatprep.mubr.f32.mxu0 0.0
        %2846 = vmatmul.mubr.f32.gmra.mrb[0].mxu0 %v2413
        %v2847 = vpop.f32.mrb[0].mxu0
        %v2848 = vadd.f32 %v2623, %v2847
        %v2849 = vpop.f32.mrb[0].mxu0
        %2850 = vmatprep.mubr.f32.mxu0 0.0
        %2851 = vmatmul.mubr.f32.gmra.mrb[0].mxu0 %v2416
        %v2852 = vpop.f32.mrb[0].mxu0
        %v2853 = vadd.f32 %v2628, %v2852
        %v2854 = vpop.f32.mrb[0].mxu0
        %2855 = vmatprep.mubr.f32.mxu0 0.0
        %2856 = vmatmul.mubr.f32.gmra.mrb[0].mxu0 %v2419
        %v2857 = vpop.f32.mrb[0].mxu0
        %v2858 = vadd.f32 %v2633, %v2857
        %v2859 = vpop.f32.mrb[0].mxu0
        %2860 = vmatprep.mubr.f32.mxu0 0.0
        %2861 = vmatmul.mubr.f32.gmra.mrb[0].mxu0 %v2422
        %v2862 = vpop.f32.mrb[0].mxu0
        %v2863 = vadd.f32 %v2638, %v2862
        %v2864 = vpop.f32.mrb[0].mxu0
        %2865 = vmatprep.mubr.f32.mxu0 0.0
        %2866 = vmatmul.mubr.f32.gmra.mrb[0].mxu0 %v2425
        %v2867 = vpop.f32.mrb[0].mxu0
        %v2868 = vadd.f32 %v2643, %v2867
        %v2869 = vpop.f32.mrb[0].mxu0
        %2870 = vmatprep.mubr.f32.mxu0 0.0
        %2871 = vmatmul.mubr.f32.gmra.mrb[0].mxu0 %v2428
        %v2872 = vpop.f32.mrb[0].mxu0
        %v2873 = vadd.f32 %v2648, %v2872
        %v2874 = vpop.f32.mrb[0].mxu0
        %2875 = vmatprep.mubr.f32.mxu0 0.0
        %2876 = vmatmul.mubr.f32.gmra.mrb[0].mxu0 %v2431
        %v2877 = vpop.f32.mrb[0].mxu0
        %v2878 = vadd.f32 %v2653, %v2877
        %v2879 = vpop.f32.mrb[0].mxu0
        %2880 = vmatprep.mubr.f32.mxu0 0.0
        %2881 = vmatmul.mubr.f32.gmra.mrb[0].mxu0 %v2434
        %v2882 = vpop.f32.mrb[0].mxu0
        %v2883 = vadd.f32 %v2658, %v2882
        %v2884 = vpop.f32.mrb[0].mxu0
        %2885 = vmatprep.mubr.f32.mxu0 0.0
        %2886 = vmatmul.mubr.f32.gmra.mrb[0].mxu0 %v2437
        %v2887 = vpop.f32.mrb[0].mxu0
        %v2888 = vadd.f32 %v2663, %v2887
        %v2889 = vpop.f32.mrb[0].mxu0
        %2890 = vmatprep.mubr.f32.mxu0 0.0
        %2891 = vmatmul.mubr.f32.gmra.mrb[0].mxu0 %v2440
        %v2892 = vpop.f32.mrb[0].mxu0
        %v2893 = vadd.f32 %v2668, %v2892
        %v2894 = vpop.f32.mrb[0].mxu0
        %2895 = vmatprep.mubr.f32.mxu0 0.0
        %2896 = vmatmul.mubr.f32.gmra.mrb[0].mxu0 %v2443
        %v2897 = vpop.f32.mrb[0].mxu0
        %v2898 = vadd.f32 %v2673, %v2897
        %v2899 = vpop.f32.mrb[0].mxu0
        %2900 = vmatprep.mubr.f32.mxu0 0.0
        %2901 = vmatmul.mubr.f32.gmra.mrb[0].mxu0 %v2446
        %v2902 = vpop.f32.mrb[0].mxu0
        %v2903 = vadd.f32 %v2678, %v2902
        %v2904 = vpop.f32.mrb[0].mxu0
        %2905 = vmatprep.mubr.f32.mxu0 0.0
        %2906 = vmatmul.mubr.f32.gmra.mrb[0].mxu0 %v2449
        %v2907 = vpop.f32.mrb[0].mxu0
        %v2908 = vadd.f32 %v2683, %v2907
        %v2909 = vpop.f32.mrb[0].mxu0
        %2910 = vmatprep.mubr.f32.mxu0 0.0
        %2911 = vmatmul.mubr.f32.gmra.mrb[0].mxu0 %v2452
        %v2912 = vpop.f32.mrb[0].mxu0
        %v2913 = vadd.f32 %v2688, %v2912
        %v2914 = vpop.f32.mrb[0].mxu0
        %2915 = vmatprep.mubr.f32.mxu0 0.0
        %2916 = vmatmul.mubr.f32.gmra.mrb[0].mxu0 %v2455
        %v2917 = vpop.f32.mrb[0].mxu0
        %v2918 = vadd.f32 %v2693, %v2917
        %v2919 = vpop.f32.mrb[0].mxu0
        %2920 = vmatprep.mubr.f32.mxu0 0.0
        %2921 = vmatmul.mubr.f32.gmra.mrb[0].mxu0 %v2458
        %v2922 = vpop.f32.mrb[0].mxu0
        %v2923 = vadd.f32 %v2698, %v2922
        %v2924 = vpop.f32.mrb[0].mxu0
        %2925 = vmatprep.mubr.f32.mxu0 0.0
        %2926 = vmatmul.mubr.f32.gmra.mrb[0].mxu0 %v2461
        %v2927 = vpop.f32.mrb[0].mxu0
        %v2928 = vadd.f32 %v2703, %v2927
        %v2929 = vpop.f32.mrb[0].mxu0
        %2930 = vmatprep.mubr.f32.mxu0 0.0
        %2931 = vmatmul.mubr.f32.gmra.mrb[0].mxu0 %v2464
        %v2932 = vpop.f32.mrb[0].mxu0
        %v2933 = vadd.f32 %v2708, %v2932
        %v2934 = vpop.f32.mrb[0].mxu0
        %2935 = vmatprep.mubr.f32.mxu0 0.0
        %2936 = vmatmul.mubr.f32.gmra.mrb[0].mxu0 %v2467
        %v2937 = vpop.f32.mrb[0].mxu0
        %v2938 = vadd.f32 %v2713, %v2937
        %v2939 = vpop.f32.mrb[0].mxu0
        %2940 = vmatprep.mubr.f32.mxu0 0.0
        %2941 = vmatmul.mubr.f32.gmra.mrb[0].mxu0 %v2470
        %v2942 = vpop.f32.mrb[0].mxu0
        %v2943 = vadd.f32 %v2718, %v2942
        %v2944 = vpop.f32.mrb[0].mxu0
        %2945 = vmatprep.mubr.f32.mxu0 0.0
        %2946 = vmatmul.mubr.f32.gmra.mrb[0].mxu0 %v2473
        %v2947 = vpop.f32.mrb[0].mxu0
        %v2948 = vadd.f32 %v2723, %v2947
        %v2949 = vpop.f32.mrb[0].mxu0
        %2950 = vmatprep.mubr.f32.mxu0 0.0
        %2951 = vmatmul.mubr.f32.gmra.mrb[0].mxu0 %v2476
        %v2952 = vpop.f32.mrb[0].mxu0
        %v2953 = vadd.f32 %v2728, %v2952
        %v2954 = vpop.f32.mrb[0].mxu0
        %2955 = vmatprep.mubr.f32.mxu0 0.0
        %2956 = vmatmul.mubr.f32.gmra.mrb[0].mxu0 %v2479
        %v2957 = vpop.f32.mrb[0].mxu0
        %v2958 = vadd.f32 %v2733, %v2957
        %v2959 = vpop.f32.mrb[0].mxu0
        %2960 = vmatprep.mubr.f32.mxu0 0.0
        %2961 = vmatmul.mubr.f32.gmra.mrb[0].mxu0 %v2482
        %v2962 = vpop.f32.mrb[0].mxu0
        %v2963 = vadd.f32 %v2738, %v2962
        %v2964 = vpop.f32.mrb[0].mxu0
        %2965 = vmatprep.mubr.f32.mxu0 0.0
        %2966 = vmatmul.mubr.f32.gmra.mrb[0].mxu0 %v2485
        %v2967 = vpop.f32.mrb[0].mxu0
        %v2968 = vadd.f32 %v2743, %v2967
        %v2969 = vpop.f32.mrb[0].mxu0
        %2970 = vmatprep.mubr.f32.mxu0 0.0
        %2971 = vmatmul.mubr.f32.gmra.mrb[0].mxu0 %v2488
        %v2972 = vpop.f32.mrb[0].mxu0
        %v2973 = vadd.f32 %v2748, %v2972
        %v2974 = vpop.f32.mrb[0].mxu0
        %2975 = vmatprep.mubr.f32.mxu0 0.0
        %2976 = vmatmul.mubr.f32.gmra.mrb[0].mxu0 %v2491
        %v2977 = vpop.f32.mrb[0].mxu0
        %v2978 = vadd.f32 %v2753, %v2977
        %v2979 = vpop.f32.mrb[0].mxu0
        %2980 = vmatprep.mubr.f32.mxu0 0.0
        %2981 = vmatmul.mubr.f32.gmra.mrb[0].mxu0 %v2494
        %v2982 = vpop.f32.mrb[0].mxu0
        %v2983 = vadd.f32 %v2758, %v2982
        %v2984 = vpop.f32.mrb[0].mxu0
        %2985 = vmatprep.mubr.f32.mxu0 0.0
        %2986 = vmatmul.mubr.f32.gmra.mrb[0].mxu0 %v2497
        %v2987 = vpop.f32.mrb[0].mxu0
        %v2988 = vadd.f32 %v2763, %v2987
        %v2989 = vpop.f32.mrb[0].mxu0
        %2990 = vmatprep.mubr.f32.mxu0 0.0
        %2991 = vmatmul.mubr.f32.gmra.mrb[0].mxu0 %v2500
        %v2992 = vpop.f32.mrb[0].mxu0
        %v2993 = vadd.f32 %v2768, %v2992
        %v2994 = vpop.f32.mrb[0].mxu0
        %2995 = vmatprep.mubr.f32.mxu0 0.0
        %2996 = vmatmul.mubr.f32.gmra.mrb[0].mxu0 %v2503
        %v2997 = vpop.f32.mrb[0].mxu0
        %v2998 = vadd.f32 %v2773, %v2997
        %v2999 = vpop.f32.mrb[0].mxu0
        %3000 = vmatprep.mubr.f32.mxu0 0.0
        %3001 = vmatmul.mubr.f32.gmra.mrb[0].mxu0 %v2506
        %v3002 = vpop.f32.mrb[0].mxu0
        %v3003 = vadd.f32 %v2778, %v3002
        %v3004 = vpop.f32.mrb[0].mxu0
        %3005 = vdwg.mxu0
        %v3006 = vadd.f32 %v2252, %v2848
        %v3007 = vadd.f32 %v2257, %v2853
        %v3008 = vadd.f32 %v2262, %v2858
        %v3009 = vadd.f32 %v2267, %v2863
        %v3010 = vadd.f32 %v2272, %v2868
        %v3011 = vadd.f32 %v2277, %v2873
        %v3012 = vadd.f32 %v2282, %v2878
        %v3013 = vadd.f32 %v2287, %v2883
        %v3014 = vadd.f32 %v2292, %v2888
        %v3015 = vadd.f32 %v2297, %v2893
        %v3016 = vadd.f32 %v2302, %v2898
        %v3017 = vadd.f32 %v2307, %v2903
        %v3018 = vadd.f32 %v2312, %v2908
        %v3019 = vadd.f32 %v2317, %v2913
        %v3020 = vadd.f32 %v2322, %v2918
        %v3021 = vadd.f32 %v2327, %v2923
        %v3022 = vadd.f32 %v2332, %v2928
        %v3023 = vadd.f32 %v2337, %v2933
        %v3024 = vadd.f32 %v2342, %v2938
        %v3025 = vadd.f32 %v2347, %v2943
        %v3026 = vadd.f32 %v2352, %v2948
        %v3027 = vadd.f32 %v2357, %v2953
        %v3028 = vadd.f32 %v2362, %v2958
        %v3029 = vadd.f32 %v2367, %v2963
        %v3030 = vadd.f32 %v2372, %v2968
        %v3031 = vadd.f32 %v2377, %v2973
        %v3032 = vadd.f32 %v2382, %v2978
        %v3033 = vadd.f32 %v2387, %v2983
        %v3034 = vadd.f32 %v2392, %v2988
        %v3035 = vadd.f32 %v2397, %v2993
        %v3036 = vadd.f32 %v2402, %v2998
        %v3037 = vadd.f32 %v2407, %v3003
        %v3038 = vld [vmem:[%s5] sm:$0x1]
        %v3040 = vlaneseq
        %v3041 = vshrl.u32 %v3040, 7
        %v3042 = vsub.s32 0, %v3041
        %v3043 = vrot.slane %v3038, %v3042
        %v3045 = vmul.f32 %v3006, %v3043
        %v3046 = vmul.f32 %v3007, %v3043
        %v3047 = vmul.f32 %v3008, %v3043
        %v3048 = vmul.f32 %v3009, %v3043
        %v3049 = vmul.f32 %v3010, %v3043
        %v3050 = vmul.f32 %v3011, %v3043
        %v3051 = vmul.f32 %v3012, %v3043
        %v3052 = vmul.f32 %v3013, %v3043
        %v3053 = vmul.f32 %v3014, %v3043
        %v3054 = vmul.f32 %v3015, %v3043
        %v3055 = vmul.f32 %v3016, %v3043
        %v3056 = vmul.f32 %v3017, %v3043
        %v3057 = vmul.f32 %v3018, %v3043
        %v3058 = vmul.f32 %v3019, %v3043
        %v3059 = vmul.f32 %v3020, %v3043
        %v3060 = vmul.f32 %v3021, %v3043
        %v3061 = vmul.f32 %v3022, %v3043
        %v3062 = vmul.f32 %v3023, %v3043
        %v3063 = vmul.f32 %v3024, %v3043
        %v3064 = vmul.f32 %v3025, %v3043
        %v3065 = vmul.f32 %v3026, %v3043
        %v3066 = vmul.f32 %v3027, %v3043
        %v3067 = vmul.f32 %v3028, %v3043
        %v3068 = vmul.f32 %v3029, %v3043
        %v3069 = vmul.f32 %v3030, %v3043
        %v3070 = vmul.f32 %v3031, %v3043
        %v3071 = vmul.f32 %v3032, %v3043
        %v3072 = vmul.f32 %v3033, %v3043
        %v3073 = vmul.f32 %v3034, %v3043
        %v3074 = vmul.f32 %v3035, %v3043
        %v3075 = vmul.f32 %v3036, %v3043
        %v3076 = vmul.f32 %v3037, %v3043
        %v3077 = vld [vmem:[%s6] sm:$0x1]
        %v3079 = vlaneseq
        %v3080 = vshrl.u32 %v3079, 7
        %v3081 = vsub.s32 0, %v3080
        %v3082 = vrot.slane %v3077, %v3081
        %v3084 = vadd.f32 %v3045, %v3082
        %v3085 = vadd.f32 %v3046, %v3082
        %v3086 = vadd.f32 %v3047, %v3082
        %v3087 = vadd.f32 %v3048, %v3082
        %v3088 = vadd.f32 %v3049, %v3082
        %v3089 = vadd.f32 %v3050, %v3082
        %v3090 = vadd.f32 %v3051, %v3082
        %v3091 = vadd.f32 %v3052, %v3082
        %v3092 = vadd.f32 %v3053, %v3082
        %v3093 = vadd.f32 %v3054, %v3082
        %v3094 = vadd.f32 %v3055, %v3082
        %v3095 = vadd.f32 %v3056, %v3082
        %v3096 = vadd.f32 %v3057, %v3082
        %v3097 = vadd.f32 %v3058, %v3082
        %v3098 = vadd.f32 %v3059, %v3082
        %v3099 = vadd.f32 %v3060, %v3082
        %v3100 = vadd.f32 %v3061, %v3082
        %v3101 = vadd.f32 %v3062, %v3082
        %v3102 = vadd.f32 %v3063, %v3082
        %v3103 = vadd.f32 %v3064, %v3082
        %v3104 = vadd.f32 %v3065, %v3082
        %v3105 = vadd.f32 %v3066, %v3082
        %v3106 = vadd.f32 %v3067, %v3082
        %v3107 = vadd.f32 %v3068, %v3082
        %v3108 = vadd.f32 %v3069, %v3082
        %v3109 = vadd.f32 %v3070, %v3082
        %v3110 = vadd.f32 %v3071, %v3082
        %v3111 = vadd.f32 %v3072, %v3082
        %v3112 = vadd.f32 %v3073, %v3082
        %v3113 = vadd.f32 %v3074, %v3082
        %v3114 = vadd.f32 %v3075, %v3082
        %v3115 = vadd.f32 %v3076, %v3082
        %v3116 = vmax.f32 %v3084, 0.0
        %v3117 = vmax.f32 %v3085, 0.0
        %v3118 = vmax.f32 %v3086, 0.0
        %v3119 = vmax.f32 %v3087, 0.0
        %v3120 = vmax.f32 %v3088, 0.0
        %v3121 = vmax.f32 %v3089, 0.0
        %v3122 = vmax.f32 %v3090, 0.0
        %v3123 = vmax.f32 %v3091, 0.0
        %v3124 = vmax.f32 %v3092, 0.0
        %v3125 = vmax.f32 %v3093, 0.0
        %v3126 = vmax.f32 %v3094, 0.0
        %v3127 = vmax.f32 %v3095, 0.0
        %v3128 = vmax.f32 %v3096, 0.0
        %v3129 = vmax.f32 %v3097, 0.0
        %v3130 = vmax.f32 %v3098, 0.0
        %v3131 = vmax.f32 %v3099, 0.0
        %v3132 = vmax.f32 %v3100, 0.0
        %v3133 = vmax.f32 %v3101, 0.0
        %v3134 = vmax.f32 %v3102, 0.0
        %v3135 = vmax.f32 %v3103, 0.0
        %v3136 = vmax.f32 %v3104, 0.0
        %v3137 = vmax.f32 %v3105, 0.0
        %v3138 = vmax.f32 %v3106, 0.0
        %v3139 = vmax.f32 %v3107, 0.0
        %v3140 = vmax.f32 %v3108, 0.0
        %v3141 = vmax.f32 %v3109, 0.0
        %v3142 = vmax.f32 %v3110, 0.0
        %v3143 = vmax.f32 %v3111, 0.0
        %v3144 = vmax.f32 %v3112, 0.0
        %v3145 = vmax.f32 %v3113, 0.0
        %v3146 = vmax.f32 %v3114, 0.0
        %v3147 = vmax.f32 %v3115, 0.0
        %3148 = vst [vmem:[%s310] sm:$0xff] %v3116
        %3149 = vst [vmem:[%s310 + $0x8] sm:$0xff] %v3117
        %3150 = vst [vmem:[%s310 + $0x10] sm:$0xff] %v3118
        %3151 = vst [vmem:[%s310 + $0x18] sm:$0xff] %v3119
        %3152 = vst [vmem:[%s310 + $0x20] sm:$0xff] %v3120
        %3153 = vst [vmem:[%s310 + $0x28] sm:$0xff] %v3121
        %3154 = vst [vmem:[%s310 + $0x30] sm:$0xff] %v3122
        %3155 = vst [vmem:[%s310 + $0x38] sm:$0xff] %v3123
        %3156 = vst [vmem:[%s310 + $0x40] sm:$0xff] %v3124
        %3157 = vst [vmem:[%s310 + $0x48] sm:$0xff] %v3125
        %3158 = vst [vmem:[%s310 + $0x50] sm:$0xff] %v3126
        %3159 = vst [vmem:[%s310 + $0x58] sm:$0xff] %v3127
        %3160 = vst [vmem:[%s310 + $0x60] sm:$0xff] %v3128
        %3161 = vst [vmem:[%s310 + $0x68] sm:$0xff] %v3129
        %3162 = vst [vmem:[%s310 + $0x70] sm:$0xff] %v3130
        %3163 = vst [vmem:[%s310 + $0x78] sm:$0xff] %v3131
        %3164 = vst [vmem:[%s310 + $0x80] sm:$0xff] %v3132
        %3165 = vst [vmem:[%s310 + $0x88] sm:$0xff] %v3133
        %3166 = vst [vmem:[%s310 + $0x90] sm:$0xff] %v3134
        %3167 = vst [vmem:[%s310 + $0x98] sm:$0xff] %v3135
        %3168 = vst [vmem:[%s310 + $0xa0] sm:$0xff] %v3136
        %3169 = vst [vmem:[%s310 + $0xa8] sm:$0xff] %v3137
        %3170 = vst [vmem:[%s310 + $0xb0] sm:$0xff] %v3138
        %3171 = vst [vmem:[%s310 + $0xb8] sm:$0xff] %v3139
        %3172 = vst [vmem:[%s310 + $0xc0] sm:$0xff] %v3140
        %3173 = vst [vmem:[%s310 + $0xc8] sm:$0xff] %v3141
        %3174 = vst [vmem:[%s310 + $0xd0] sm:$0xff] %v3142
        %3175 = vst [vmem:[%s310 + $0xd8] sm:$0xff] %v3143
        %3176 = vst [vmem:[%s310 + $0xe0] sm:$0xff] %v3144
        %3177 = vst [vmem:[%s310 + $0xe8] sm:$0xff] %v3145
        %3178 = vst [vmem:[%s310 + $0xf0] sm:$0xff] %v3146
        %3179 = vst [vmem:[%s310 + $0xf8] sm:$0xff] %v3147
        %s3180 = sand.u32 %s198, 1
        %s3181 = scalar_lea.sflag [#allocation5], %s3180
        %s3182 = sand.u32 %s198, 1
        %s3183 = smul.addr %s3182, 256
        %s3184 = scalar_lea.vmem [#allocation6], %s3183
        // Predicated region
        $region57: #{tpu_custom_call.1} parent=47 // pred_check
          %p3185 = pneg %p208
        $region58: #{tpu_custom_call.1} parent=47 // pred_check_branch
          %3187 = sbr.rel (%p3185) target = $region60
        $region59: #{tpu_custom_call.1} parent=47 // pred_region
          %s3189 = ssub.s32 4096, 4096
          %3190 = vsyncadd %s3181, %s3189
          %s3191 = smul.addr %s27, 32
          %s3192 = smul.addr %s26, 32
          %s3193 = sadd.s32 %s3191, %s3192
          %s3194 = smul.addr %s3193, 128
          %s3195 = scalar_lea.hbm %s7, %s3194
          %s3196 = sshll.u32 %s3184, 4
          %s3197 = int_to_ptr.vmem [resolvable:$true] %s3196
          %3202 = dma.vmem_to_hbm [thread:$0]  %s3197, 4096, %s3195, %s3181, 128, 128, 8
        $region60: #{tpu_custom_call.1} parent=47 // pred_fallthru
          _
      $region48: #{tpu_custom_call.1} parent=5 // pred_fallthru
        _
      %p3203 = scmp.le.s32.totalorder 2, %s17
      // Predicated region
      $region61: #{tpu_custom_call.1} parent=5 // pred_check
        %p3204 = pneg %p3203
      $region62: #{tpu_custom_call.1} parent=5 // pred_check_branch
        %3206 = sbr.rel (%p3204) target = $region64
      $region63: #{tpu_custom_call.1} parent=5 // pred_region
        %s3207 = ssub.s32 %s17, 2
        // Predicated region
        $region65: #{tpu_custom_call.1} parent=63 // pred_check
          %p3208 = pneg %p214
        $region66: #{tpu_custom_call.1} parent=63 // pred_check_branch
          %3210 = sbr.rel (%p3208) target = $region68
        $region67: #{tpu_custom_call.1} parent=63 // pred_region
          %s3211 = sand.u32 %s199, 1
          %s3212 = scalar_lea.sflag [#allocation5], %s3211
          %s3213 = sand.u32 %s199, 1
          %s3214 = smul.addr %s3213, 256
          %s3215 = scalar_lea.vmem [#allocation6], %s3214
          %3216 = dma.done %s3212, 4096
        $region68: #{tpu_custom_call.1} parent=63 // pred_fallthru
          _
      $region64: #{tpu_custom_call.1} parent=5 // pred_fallthru
        _
    $region6: #{tpu_custom_call.1} parent=1 // loop_footer
      %s21 = sadd.s32 1, %s17
    $region7: #{tpu_custom_call.1} parent=1 // loop_footer_branch
      %16 = sbr.rel target = $region3
    $region8: #{tpu_custom_call.1} parent=1 // loop_exit
      _
    %3217 = vsyncpa [#allocation4], 1
    %s3218 = scalar_lea.sflag [#allocation4], 1
    %3219 = vsyncpa %s3218, 1
    %3220 = vsyncpa [#allocation5], 1
    %s3221 = scalar_lea.sflag [#allocation5], 1
    %3222 = vsyncpa %s3221, 1

</llo_original>
